<compile_context>
chip_gen: v7x
topology: tpu7x:2x2x1
jax: 0.10.0
libtpu: 0.0.40
codegen_flags: <defaults>
</compile_context>

<pallas_src>
import functools
import math

import jax
import jax.numpy as jnp
from jax import lax
from jax.experimental import pallas as pl
from jax.experimental.pallas import tpu as pltpu

EPS = 1e-5  # PyTorch nn.LayerNorm default
LANE = 128


# ----------------------------- in-kernel helpers -----------------------------

def _ln(x, g, b):
    """LayerNorm over the last axis (biased variance, eps=1e-5), float32 math."""
    mu = jnp.mean(x, axis=-1, keepdims=True)
    var = jnp.mean(jnp.square(x - mu), axis=-1, keepdims=True)
    return (x - mu) * lax.rsqrt(var + EPS) * g + b


def _gelu_exact(x):
    """Exact (erf-based) GELU, matching torch.nn.GELU() default."""
    return 0.5 * x * (1.0 + lax.erf(x * (1.0 / math.sqrt(2.0))))


def _bf16(x):
    return x.astype(jnp.bfloat16)


# ------------------------------ fused Pallas kernel ---------------------------

def vit1d_kernel(x_ref,
                 pe_g1, pe_b1, pe_w, pe_wb, pe_g2, pe_b2,
                 cls_ref, pos_ref,
                 a_lg, a_lb, a_wqkv, a_wo, a_bo,
                 f_lg, f_lb, f_w1, f_b1, f_w2, f_b2,
                 h_lg, h_lb, h_w, h_wb,
                 o_ref,
                 *, depth, heads, dim_head, scale):
    # ---- patch embedding: LN -> Linear -> LN (one batch element) ----
    xp = x_ref[0]                                                # [n, patch_dim] f32
    h = _ln(xp, pe_g1[...], pe_b1[...])
    emb = jnp.dot(_bf16(h), pe_w[...],
                  preferred_element_type=jnp.float32) + pe_wb[...]
    emb = _ln(emb, pe_g2[...], pe_b2[...])                       # [n, dim]

    # ---- cls token concat + positional embedding (fused in-kernel) ----
    x = jnp.concatenate([cls_ref[...], emb], axis=0) + pos_ref[...]   # [N, dim]
    n_tok = x.shape[0]
    dim = x.shape[1]

    # ---- transformer layers (statically unrolled; weights stacked on depth) ----
    for l in range(depth):
        # -------- attention block (pre-LN, residual) --------
        hln = _ln(x, a_lg[l], a_lb[l])                           # [N, dim] f32
        hb = jnp.broadcast_to(_bf16(hln)[None], (3 * heads, n_tok, dim))
        # head-batched q/k/v: weights are [3*heads, dim, dim_head]
        qkv = jnp.einsum('gnd,gde->gne', hb, a_wqkv[l],
                         preferred_element_type=jnp.float32)     # [3h, N, dh]
        q = qkv[:heads]
        k = qkv[heads:2 * heads]
        v = qkv[2 * heads:]
        # scores: contract dim_head of q and k (no explicit k.T transpose)
        dots = jnp.einsum('hnd,hmd->hnm', _bf16(q), _bf16(k),
                          preferred_element_type=jnp.float32) * scale
        dots = dots - jnp.max(dots, axis=-1, keepdims=True)
        e = jnp.exp(dots)
        attn = e * pl.reciprocal(jnp.sum(e, axis=-1, keepdims=True), approx=True)
        out = jnp.einsum('hnm,hmd->hnd', _bf16(attn), _bf16(v),
                         preferred_element_type=jnp.float32)     # [h, N, dh]
        # output projection per head, then sum over heads (replaces concat)
        proj = jnp.einsum('hnd,hde->hne', _bf16(out), a_wo[l],
                          preferred_element_type=jnp.float32)    # [h, N, dim]
        x = jnp.sum(proj, axis=0) + a_bo[l] + x                  # residual

        # -------- feed-forward block (pre-LN, residual) --------
        hln = _ln(x, f_lg[l], f_lb[l])
        hmid = jnp.dot(_bf16(hln), f_w1[l],
                       preferred_element_type=jnp.float32) + f_b1[l]
        hmid = _gelu_exact(hmid)
        hout = jnp.dot(_bf16(hmid), f_w2[l],
                       preferred_element_type=jnp.float32) + f_b2[l]
        x = hout + x                                             # residual

    # ---- classification head on the cls token (lane-padded output) ----
    cls_out = x[0:1, :]                                          # [1, dim]
    hcl = _ln(cls_out, h_lg[...], h_lb[...])
    logits = jnp.dot(_bf16(hcl), h_w[...],
                     preferred_element_type=jnp.float32) + h_wb[...]   # [1, nc_pad]
    o_ref[0] = logits


# ------------------------------ wrapper ---------------------------------------

def vit1d_forward(series, fp, *, patch_size, heads, dim_head, num_classes):
    b, c, L = series.shape
    n = L // patch_size
    patch_dim = patch_size * c
    # rearrange 'b c (n p) -> b n (p c)'  (pure layout glue, stays in JAX)
    x = (series.reshape(b, c, n, patch_size)
               .transpose(0, 2, 3, 1)
               .reshape(b, n, patch_dim))

    fp = dict(fp)
    fp["pos"] = fp["pos"][: n + 1]                    # matches pos_embedding[:, :n+1]

    depth = fp["a_wqkv"].shape[0]
    nc_pad = fp["h_w"].shape[1]
    scale = dim_head ** (-0.5)

    order = ["pe_g1", "pe_b1", "pe_w", "pe_wb", "pe_g2", "pe_b2",
             "cls", "pos",
             "a_lg", "a_lb", "a_wqkv", "a_wo", "a_bo",
             "f_lg", "f_lb", "f_w1", "f_b1", "f_w2", "f_b2",
             "h_lg", "h_lb", "h_w", "h_wb"]
    args = [fp[k] for k in order]

    def whole(a):
        nd = a.ndim
        return pl.BlockSpec(a.shape, lambda i, _nd=nd: (0,) * _nd)

    kern = functools.partial(vit1d_kernel, depth=depth, heads=heads,
                             dim_head=dim_head, scale=scale)

    logits = pl.pallas_call(
        kern,
        out_shape=jax.ShapeDtypeStruct((b, 1, nc_pad), jnp.float32),
        grid=(b,),
        in_specs=[pl.BlockSpec((1, n, patch_dim), lambda i: (i, 0, 0))]
                 + [whole(a) for a in args],
        out_specs=pl.BlockSpec((1, 1, nc_pad), lambda i: (i, 0, 0)),
        compiler_params=pltpu.CompilerParams(
            dimension_semantics=("parallel",)),
    )(x, *args)

    return logits[:, 0, :num_classes]


# ------------------------------ parameters ------------------------------------

def init_params(key, *, patch_dim, dim, depth, heads, dim_head, mlp_dim,
                num_patches, num_classes):
    """PyTorch-like parameter layout (float32)."""
    inner = heads * dim_head
    kit = iter(jax.random.split(key, 4 + 4 * depth))

    def mat(shape, scale=0.02):
        return jax.random.normal(next(kit), shape, jnp.float32) * scale

    ones = lambda s: jnp.ones(s, jnp.float32)
    zeros = lambda s: jnp.zeros(s, jnp.float32)

    params = {
        "patch": {"g1": ones((patch_dim,)), "b1": zeros((patch_dim,)),
                  "w": mat((patch_dim, dim)), "wb": zeros((dim,)),
                  "g2": ones((dim,)), "b2": zeros((dim,))},
        "pos_embedding": mat((1, num_patches + 1, dim), scale=1.0),
        "cls_token": mat((dim,), scale=1.0),
        "layers": [],
        "head": {"ln_g": ones((dim,)), "ln_b": zeros((dim,)),
                 "w": mat((dim, num_classes)), "wb": zeros((num_classes,))},
    }
    for _ in range(depth):
        params["layers"].append({
            "attn": {"ln_g": ones((dim,)), "ln_b": zeros((dim,)),
                     "wqkv": mat((dim, 3 * inner)),
                     "wo": mat((inner, dim)), "bo": zeros((dim,))},
            "ff": {"ln_g": ones((dim,)), "ln_b": zeros((dim,)),
                   "w1": mat((dim, mlp_dim)), "b1": zeros((mlp_dim,)),
                   "w2": mat((mlp_dim, dim)), "b2": zeros((dim,))},
        })
    return params


def prepare_params(params, *, heads, dim_head):
    """Restructure for the fused kernel: stack per-layer weights on a depth axis,
    reorder qkv/out-proj weights per head, bf16 matmul weights, lane-pad head."""
    bf16 = jnp.bfloat16
    p = params["patch"]
    layers = params["layers"]

    def stack(fn):
        return jnp.stack([fn(lyr) for lyr in layers], axis=0)

    def split_qkv(w):                       # [dim, 3*inner] -> [3*heads, dim, dh]
        dim = w.shape[0]
        return (w.reshape(dim, 3, heads, dim_head)
                 .transpose(1, 2, 0, 3)
                 .reshape(3 * heads, dim, dim_head))

    hd = params["head"]
    nc = hd["w"].shape[1]
    nc_pad = -(-nc // LANE) * LANE          # 230 -> 256 (zero-padded, sliced off later)

    return {
        "pe_g1": p["g1"][None, :], "pe_b1": p["b1"][None, :],
        "pe_w": p["w"].astype(bf16), "pe_wb": p["wb"][None, :],
        "pe_g2": p["g2"][None, :], "pe_b2": p["b2"][None, :],
        "cls": params["cls_token"][None, :],
        "pos": params["pos_embedding"][0],
        "a_lg": stack(lambda l: l["attn"]["ln_g"][None, :]),
        "a_lb": stack(lambda l: l["attn"]["ln_b"][None, :]),
        "a_wqkv": stack(lambda l: split_qkv(l["attn"]["wqkv"])).astype(bf16),
        "a_wo": stack(lambda l: l["attn"]["wo"].reshape(heads, dim_head, -1)).astype(bf16),
        "a_bo": stack(lambda l: l["attn"]["bo"][None, :]),
        "f_lg": stack(lambda l: l["ff"]["ln_g"][None, :]),
        "f_lb": stack(lambda l: l["ff"]["ln_b"][None, :]),
        "f_w1": stack(lambda l: l["ff"]["w1"]).astype(bf16),
        "f_b1": stack(lambda l: l["ff"]["b1"][None, :]),
        "f_w2": stack(lambda l: l["ff"]["w2"]).astype(bf16),
        "f_b2": stack(lambda l: l["ff"]["b2"][None, :]),
        "h_lg": hd["ln_g"][None, :], "h_lb": hd["ln_b"][None, :],
        "h_w": jnp.pad(hd["w"], ((0, 0), (0, nc_pad - nc))).astype(bf16),
        "h_wb": jnp.pad(hd["wb"], (0, nc_pad - nc))[None, :],
    }


# ----------------------------------- main --------------------------------------

if __name__ == "__main__":
    # Small, self-consistent hyper-parameters (scaled-down ViT1D).
    batch = 2
    channels = 1
    seq_len = 160
    patch_size = 20
    dim = 64
    depth = 2
    heads = 2
    dim_head = 32
    mlp_dim = 128
    num_classes = 230

    num_patches = seq_len // patch_size
    patch_dim = channels * patch_size

    key = jax.random.PRNGKey(0)
    k_in, k_par = jax.random.split(key)

    series = jax.random.normal(k_in, (batch, channels, seq_len), jnp.float32)
    params = init_params(k_par, patch_dim=patch_dim, dim=dim, depth=depth,
                         heads=heads, dim_head=dim_head, mlp_dim=mlp_dim,
                         num_patches=num_patches, num_classes=num_classes)
    fused_params = prepare_params(params, heads=heads, dim_head=dim_head)

    fwd = jax.jit(functools.partial(vit1d_forward, patch_size=patch_size,
                                    heads=heads, dim_head=dim_head,
                                    num_classes=num_classes))
    out = fwd(series, fused_params)
    out = jax.block_until_ready(out)
    assert out.shape == (batch, num_classes), out.shape
    assert bool(jnp.all(jnp.isfinite(out)))
    print("KERNEL_OK")
</pallas_src>

<mosaic_0001>
module attributes {stable_mosaic.version = 11 : i64} {
  func.func @vit1d_kernel(%arg0: i32, %arg1: memref<1x8x20xf32, #tpu.memory_space<vmem>>, %arg2: memref<1x20xf32, #tpu.memory_space<vmem>>, %arg3: memref<1x20xf32, #tpu.memory_space<vmem>>, %arg4: memref<20x64xbf16, #tpu.memory_space<vmem>>, %arg5: memref<1x64xf32, #tpu.memory_space<vmem>>, %arg6: memref<1x64xf32, #tpu.memory_space<vmem>>, %arg7: memref<1x64xf32, #tpu.memory_space<vmem>>, %arg8: memref<1x64xf32, #tpu.memory_space<vmem>>, %arg9: memref<9x64xf32, #tpu.memory_space<vmem>>, %arg10: memref<2x1x64xf32, #tpu.memory_space<vmem>>, %arg11: memref<2x1x64xf32, #tpu.memory_space<vmem>>, %arg12: memref<2x6x64x32xbf16, #tpu.memory_space<vmem>>, %arg13: memref<2x2x32x64xbf16, #tpu.memory_space<vmem>>, %arg14: memref<2x1x64xf32, #tpu.memory_space<vmem>>, %arg15: memref<2x1x64xf32, #tpu.memory_space<vmem>>, %arg16: memref<2x1x64xf32, #tpu.memory_space<vmem>>, %arg17: memref<2x64x128xbf16, #tpu.memory_space<vmem>>, %arg18: memref<2x1x128xf32, #tpu.memory_space<vmem>>, %arg19: memref<2x128x64xbf16, #tpu.memory_space<vmem>>, %arg20: memref<2x1x64xf32, #tpu.memory_space<vmem>>, %arg21: memref<1x64xf32, #tpu.memory_space<vmem>>, %arg22: memref<1x64xf32, #tpu.memory_space<vmem>>, %arg23: memref<64x256xbf16, #tpu.memory_space<vmem>>, %arg24: memref<1x256xf32, #tpu.memory_space<vmem>>, %arg25: memref<1x1x256xf32, #tpu.memory_space<vmem>>) attributes {dimension_semantics = [#tpu.dimension_semantics<parallel>], iteration_bounds = array<i64: 2>, scalar_prefetch = 0 : i64, scratch_operands = 0 : i64, tpu.core_type = #tpu.core_type<tc>, window_params = [{transform_indices = @transform_0, window_bounds = array<i64: 1, 8, 20>}, {pipeline_mode = #tpu.pipeline_mode<synchronous>, transform_indices = @transform_1, window_bounds = array<i64: 1, 20>}, {pipeline_mode = #tpu.pipeline_mode<synchronous>, transform_indices = @transform_2, window_bounds = array<i64: 1, 20>}, {pipeline_mode = #tpu.pipeline_mode<synchronous>, transform_indices = @transform_3, window_bounds = array<i64: 20, 64>}, {pipeline_mode = #tpu.pipeline_mode<synchronous>, transform_indices = @transform_4, window_bounds = array<i64: 1, 64>}, {pipeline_mode = #tpu.pipeline_mode<synchronous>, transform_indices = @transform_5, window_bounds = array<i64: 1, 64>}, {pipeline_mode = #tpu.pipeline_mode<synchronous>, transform_indices = @transform_6, window_bounds = array<i64: 1, 64>}, {pipeline_mode = #tpu.pipeline_mode<synchronous>, transform_indices = @transform_7, window_bounds = array<i64: 1, 64>}, {pipeline_mode = #tpu.pipeline_mode<synchronous>, transform_indices = @transform_8, window_bounds = array<i64: 9, 64>}, {pipeline_mode = #tpu.pipeline_mode<synchronous>, transform_indices = @transform_9, window_bounds = array<i64: 2, 1, 64>}, {pipeline_mode = #tpu.pipeline_mode<synchronous>, transform_indices = @transform_10, window_bounds = array<i64: 2, 1, 64>}, {pipeline_mode = #tpu.pipeline_mode<synchronous>, transform_indices = @transform_11, window_bounds = array<i64: 2, 6, 64, 32>}, {pipeline_mode = #tpu.pipeline_mode<synchronous>, transform_indices = @transform_12, window_bounds = array<i64: 2, 2, 32, 64>}, {pipeline_mode = #tpu.pipeline_mode<synchronous>, transform_indices = @transform_13, window_bounds = array<i64: 2, 1, 64>}, {pipeline_mode = #tpu.pipeline_mode<synchronous>, transform_indices = @transform_14, window_bounds = array<i64: 2, 1, 64>}, {pipeline_mode = #tpu.pipeline_mode<synchronous>, transform_indices = @transform_15, window_bounds = array<i64: 2, 1, 64>}, {pipeline_mode = #tpu.pipeline_mode<synchronous>, transform_indices = @transform_16, window_bounds = array<i64: 2, 64, 128>}, {pipeline_mode = #tpu.pipeline_mode<synchronous>, transform_indices = @transform_17, window_bounds = array<i64: 2, 1, 128>}, {pipeline_mode = #tpu.pipeline_mode<synchronous>, transform_indices = @transform_18, window_bounds = array<i64: 2, 128, 64>}, {pipeline_mode = #tpu.pipeline_mode<synchronous>, transform_indices = @transform_19, window_bounds = array<i64: 2, 1, 64>}, {pipeline_mode = #tpu.pipeline_mode<synchronous>, transform_indices = @transform_20, window_bounds = array<i64: 1, 64>}, {pipeline_mode = #tpu.pipeline_mode<synchronous>, transform_indices = @transform_21, window_bounds = array<i64: 1, 64>}, {pipeline_mode = #tpu.pipeline_mode<synchronous>, transform_indices = @transform_22, window_bounds = array<i64: 64, 256>}, {pipeline_mode = #tpu.pipeline_mode<synchronous>, transform_indices = @transform_23, window_bounds = array<i64: 1, 256>}, {transform_indices = @transform_24, window_bounds = array<i64: 1, 1, 256>}]} {
    %c0 = arith.constant 0 : index
    %c0_0 = arith.constant 0 : index
    %c0_1 = arith.constant 0 : index
    %0 = vector.load %arg1[%c0, %c0_0, %c0_1] : memref<1x8x20xf32, #tpu.memory_space<vmem>>, vector<1x8x20xf32>
    %1 = vector.shape_cast %0 : vector<1x8x20xf32> to vector<8x20xf32>
    %c0_2 = arith.constant 0 : index
    %c0_3 = arith.constant 0 : index
    %2 = vector.load %arg2[%c0_2, %c0_3] : memref<1x20xf32, #tpu.memory_space<vmem>>, vector<1x20xf32>
    %c0_4 = arith.constant 0 : index
    %c0_5 = arith.constant 0 : index
    %3 = vector.load %arg3[%c0_4, %c0_5] : memref<1x20xf32, #tpu.memory_space<vmem>>, vector<1x20xf32>
    %cst = arith.constant dense<0.000000e+00> : vector<8xf32>
    %4 = vector.multi_reduction <add>, %1, %cst [1] : vector<8x20xf32> to vector<8xf32>
    %5 = vector.shape_cast %4 : vector<8xf32> to vector<8x1xf32>
    %cst_6 = arith.constant 2.000000e+01 : f32
    %6 = vector.broadcast %cst_6 : f32 to vector<8x1xf32>
    %7 = arith.divf %5, %6 : vector<8x1xf32>
    %8 = vector.broadcast %7 : vector<8x1xf32> to vector<8x20xf32>
    %9 = arith.subf %1, %8 : vector<8x20xf32>
    %10 = arith.mulf %9, %9 : vector<8x20xf32>
    %cst_7 = arith.constant dense<0.000000e+00> : vector<8xf32>
    %11 = vector.multi_reduction <add>, %10, %cst_7 [1] : vector<8x20xf32> to vector<8xf32>
    %12 = vector.shape_cast %11 : vector<8xf32> to vector<8x1xf32>
    %cst_8 = arith.constant 2.000000e+01 : f32
    %13 = vector.broadcast %cst_8 : f32 to vector<8x1xf32>
    %14 = arith.divf %12, %13 : vector<8x1xf32>
    %15 = vector.broadcast %7 : vector<8x1xf32> to vector<8x20xf32>
    %16 = arith.subf %1, %15 : vector<8x20xf32>
    %cst_9 = arith.constant 9.99999974E-6 : f32
    %17 = vector.broadcast %cst_9 : f32 to vector<8x1xf32>
    %18 = arith.addf %14, %17 : vector<8x1xf32>
    %19 = math.rsqrt %18 : vector<8x1xf32>
    %20 = vector.broadcast %19 : vector<8x1xf32> to vector<8x20xf32>
    %21 = arith.mulf %16, %20 : vector<8x20xf32>
    %22 = vector.broadcast %2 : vector<1x20xf32> to vector<8x20xf32>
    %23 = arith.mulf %21, %22 : vector<8x20xf32>
    %24 = vector.broadcast %3 : vector<1x20xf32> to vector<8x20xf32>
    %25 = arith.addf %23, %24 : vector<8x20xf32>
    %26 = arith.truncf %25 : vector<8x20xf32> to vector<8x20xbf16>
    %c0_10 = arith.constant 0 : index
    %c0_11 = arith.constant 0 : index
    %27 = vector.load %arg4[%c0_10, %c0_11] : memref<20x64xbf16, #tpu.memory_space<vmem>>, vector<20x64xbf16>
    %cst_12 = arith.constant dense<0.000000e+00> : vector<8x64xf32>
    %28 = tpu.matmul %26, %27, %cst_12 {dimension_numbers = #tpu.dot_dimension_numbers<[1], [0], [0], [1], [0, 0, 1, 1], [], []>} : vector<8x20xbf16>, vector<20x64xbf16>, vector<8x64xf32> -> vector<8x64xf32>
    %c0_13 = arith.constant 0 : index
    %c0_14 = arith.constant 0 : index
    %29 = vector.load %arg5[%c0_13, %c0_14] : memref<1x64xf32, #tpu.memory_space<vmem>>, vector<1x64xf32>
    %30 = vector.broadcast %29 : vector<1x64xf32> to vector<8x64xf32>
    %31 = arith.addf %28, %30 : vector<8x64xf32>
    %c0_15 = arith.constant 0 : index
    %c0_16 = arith.constant 0 : index
    %32 = vector.load %arg6[%c0_15, %c0_16] : memref<1x64xf32, #tpu.memory_space<vmem>>, vector<1x64xf32>
    %c0_17 = arith.constant 0 : index
    %c0_18 = arith.constant 0 : index
    %33 = vector.load %arg7[%c0_17, %c0_18] : memref<1x64xf32, #tpu.memory_space<vmem>>, vector<1x64xf32>
    %cst_19 = arith.constant dense<0.000000e+00> : vector<8xf32>
    %34 = vector.multi_reduction <add>, %31, %cst_19 [1] : vector<8x64xf32> to vector<8xf32>
    %35 = vector.shape_cast %34 : vector<8xf32> to vector<8x1xf32>
    %cst_20 = arith.constant 6.400000e+01 : f32
    %36 = vector.broadcast %cst_20 : f32 to vector<8x1xf32>
    %37 = arith.divf %35, %36 : vector<8x1xf32>
    %38 = vector.broadcast %37 : vector<8x1xf32> to vector<8x64xf32>
    %39 = arith.subf %31, %38 : vector<8x64xf32>
    %40 = arith.mulf %39, %39 : vector<8x64xf32>
    %cst_21 = arith.constant dense<0.000000e+00> : vector<8xf32>
    %41 = vector.multi_reduction <add>, %40, %cst_21 [1] : vector<8x64xf32> to vector<8xf32>
    %42 = vector.shape_cast %41 : vector<8xf32> to vector<8x1xf32>
    %cst_22 = arith.constant 6.400000e+01 : f32
    %43 = vector.broadcast %cst_22 : f32 to vector<8x1xf32>
    %44 = arith.divf %42, %43 : vector<8x1xf32>
    %45 = vector.broadcast %37 : vector<8x1xf32> to vector<8x64xf32>
    %46 = arith.subf %31, %45 : vector<8x64xf32>
    %cst_23 = arith.constant 9.99999974E-6 : f32
    %47 = vector.broadcast %cst_23 : f32 to vector<8x1xf32>
    %48 = arith.addf %44, %47 : vector<8x1xf32>
    %49 = math.rsqrt %48 : vector<8x1xf32>
    %50 = vector.broadcast %49 : vector<8x1xf32> to vector<8x64xf32>
    %51 = arith.mulf %46, %50 : vector<8x64xf32>
    %52 = vector.broadcast %32 : vector<1x64xf32> to vector<8x64xf32>
    %53 = arith.mulf %51, %52 : vector<8x64xf32>
    %54 = vector.broadcast %33 : vector<1x64xf32> to vector<8x64xf32>
    %55 = arith.addf %53, %54 : vector<8x64xf32>
    %c0_24 = arith.constant 0 : index
    %c0_25 = arith.constant 0 : index
    %56 = vector.load %arg8[%c0_24, %c0_25] : memref<1x64xf32, #tpu.memory_space<vmem>>, vector<1x64xf32>
    %57 = tpu.concatenate %56, %55 in 0 : vector<1x64xf32>, vector<8x64xf32> -> vector<9x64xf32>
    %c0_26 = arith.constant 0 : index
    %c0_27 = arith.constant 0 : index
    %58 = vector.load %arg9[%c0_26, %c0_27] : memref<9x64xf32, #tpu.memory_space<vmem>>, vector<9x64xf32>
    %59 = arith.addf %57, %58 : vector<9x64xf32>
    %c0_28 = arith.constant 0 : index
    %c0_29 = arith.constant 0 : index
    %c0_30 = arith.constant 0 : index
    %60 = vector.load %arg10[%c0_28, %c0_29, %c0_30] : memref<2x1x64xf32, #tpu.memory_space<vmem>>, vector<1x1x64xf32>
    %61 = vector.shape_cast %60 : vector<1x1x64xf32> to vector<1x64xf32>
    %c0_31 = arith.constant 0 : index
    %c0_32 = arith.constant 0 : index
    %c0_33 = arith.constant 0 : index
    %62 = vector.load %arg11[%c0_31, %c0_32, %c0_33] : memref<2x1x64xf32, #tpu.memory_space<vmem>>, vector<1x1x64xf32>
    %63 = vector.shape_cast %62 : vector<1x1x64xf32> to vector<1x64xf32>
    %cst_34 = arith.constant dense<0.000000e+00> : vector<9xf32>
    %64 = vector.multi_reduction <add>, %59, %cst_34 [1] : vector<9x64xf32> to vector<9xf32>
    %65 = vector.shape_cast %64 : vector<9xf32> to vector<9x1xf32>
    %cst_35 = arith.constant 6.400000e+01 : f32
    %66 = vector.broadcast %cst_35 : f32 to vector<9x1xf32>
    %67 = arith.divf %65, %66 : vector<9x1xf32>
    %68 = vector.broadcast %67 : vector<9x1xf32> to vector<9x64xf32>
    %69 = arith.subf %59, %68 : vector<9x64xf32>
    %70 = arith.mulf %69, %69 : vector<9x64xf32>
    %cst_36 = arith.constant dense<0.000000e+00> : vector<9xf32>
    %71 = vector.multi_reduction <add>, %70, %cst_36 [1] : vector<9x64xf32> to vector<9xf32>
    %72 = vector.shape_cast %71 : vector<9xf32> to vector<9x1xf32>
    %cst_37 = arith.constant 6.400000e+01 : f32
    %73 = vector.broadcast %cst_37 : f32 to vector<9x1xf32>
    %74 = arith.divf %72, %73 : vector<9x1xf32>
    %75 = vector.broadcast %67 : vector<9x1xf32> to vector<9x64xf32>
    %76 = arith.subf %59, %75 : vector<9x64xf32>
    %cst_38 = arith.constant 9.99999974E-6 : f32
    %77 = vector.broadcast %cst_38 : f32 to vector<9x1xf32>
    %78 = arith.addf %74, %77 : vector<9x1xf32>
    %79 = math.rsqrt %78 : vector<9x1xf32>
    %80 = vector.broadcast %79 : vector<9x1xf32> to vector<9x64xf32>
    %81 = arith.mulf %76, %80 : vector<9x64xf32>
    %82 = vector.broadcast %61 : vector<1x64xf32> to vector<9x64xf32>
    %83 = arith.mulf %81, %82 : vector<9x64xf32>
    %84 = vector.broadcast %63 : vector<1x64xf32> to vector<9x64xf32>
    %85 = arith.addf %83, %84 : vector<9x64xf32>
    %86 = arith.truncf %85 : vector<9x64xf32> to vector<9x64xbf16>
    %87 = vector.shape_cast %86 : vector<9x64xbf16> to vector<1x9x64xbf16>
    %88 = vector.shape_cast %87 : vector<1x9x64xbf16> to vector<1x9x64xbf16>
    %89 = vector.broadcast %88 : vector<1x9x64xbf16> to vector<6x9x64xbf16>
    %c0_39 = arith.constant 0 : index
    %c0_40 = arith.constant 0 : index
    %c0_41 = arith.constant 0 : index
    %c0_42 = arith.constant 0 : index
    %90 = vector.load %arg12[%c0_39, %c0_40, %c0_41, %c0_42] : memref<2x6x64x32xbf16, #tpu.memory_space<vmem>>, vector<1x6x64x32xbf16>
    %91 = vector.shape_cast %90 : vector<1x6x64x32xbf16> to vector<6x64x32xbf16>
    "tpu.trace_start"() <{level = 10 : i32, message = "gnd,gde->gne"}> : () -> ()
    %cst_43 = arith.constant dense<0.000000e+00> : vector<6x9x32xf32>
    %92 = tpu.matmul %89, %91, %cst_43 {dimension_numbers = #tpu.dot_dimension_numbers<[2], [1], [1], [2], [0, 0, 0, 1, 1, 2], [0], [0]>} : vector<6x9x64xbf16>, vector<6x64x32xbf16>, vector<6x9x32xf32> -> vector<6x9x32xf32>
    "tpu.trace_stop"() : () -> ()
    %93 = vector.extract_strided_slice %92 {offsets = [0, 0, 0], sizes = [2, 9, 32], strides = [1, 1, 1]} : vector<6x9x32xf32> to vector<2x9x32xf32>
    %94 = vector.extract_strided_slice %92 {offsets = [2, 0, 0], sizes = [2, 9, 32], strides = [1, 1, 1]} : vector<6x9x32xf32> to vector<2x9x32xf32>
    %95 = vector.extract_strided_slice %92 {offsets = [4, 0, 0], sizes = [2, 9, 32], strides = [1, 1, 1]} : vector<6x9x32xf32> to vector<2x9x32xf32>
    %96 = arith.truncf %93 : vector<2x9x32xf32> to vector<2x9x32xbf16>
    %97 = arith.truncf %94 : vector<2x9x32xf32> to vector<2x9x32xbf16>
    "tpu.trace_start"() <{level = 10 : i32, message = "hnd,hmd->hnm"}> : () -> ()
    %cst_44 = arith.constant dense<0.000000e+00> : vector<2x9x9xf32>
    %98 = tpu.matmul %96, %97, %cst_44 {dimension_numbers = #tpu.dot_dimension_numbers<[2], [2], [1], [1], [0, 0, 0, 1, 1, 1], [0], [0]>} : vector<2x9x32xbf16>, vector<2x9x32xbf16>, vector<2x9x9xf32> -> vector<2x9x9xf32>
    "tpu.trace_stop"() : () -> ()
    %cst_45 = arith.constant 0.176776692 : f32
    %99 = vector.broadcast %cst_45 : f32 to vector<2x9x9xf32>
    %100 = arith.mulf %98, %99 : vector<2x9x9xf32>
    %cst_46 = arith.constant dense<0xFF800000> : vector<2x9xf32>
    %101 = vector.multi_reduction <maximumf>, %100, %cst_46 [2] : vector<2x9x9xf32> to vector<2x9xf32>
    %102 = vector.shape_cast %101 : vector<2x9xf32> to vector<2x9x1xf32>
    %103 = vector.broadcast %102 : vector<2x9x1xf32> to vector<2x9x9xf32>
    %104 = arith.subf %100, %103 : vector<2x9x9xf32>
    %105 = math.exp %104 : vector<2x9x9xf32>
    %cst_47 = arith.constant dense<0.000000e+00> : vector<2x9xf32>
    %106 = vector.multi_reduction <add>, %105, %cst_47 [2] : vector<2x9x9xf32> to vector<2x9xf32>
    %107 = vector.shape_cast %106 : vector<2x9xf32> to vector<2x9x1xf32>
    %108 = tpu.reciprocal %107 {approx = true} : vector<2x9x1xf32> -> vector<2x9x1xf32>
    %109 = vector.broadcast %108 : vector<2x9x1xf32> to vector<2x9x9xf32>
    %110 = arith.mulf %105, %109 : vector<2x9x9xf32>
    %111 = arith.truncf %110 : vector<2x9x9xf32> to vector<2x9x9xbf16>
    %112 = arith.truncf %95 : vector<2x9x32xf32> to vector<2x9x32xbf16>
    "tpu.trace_start"() <{level = 10 : i32, message = "hnm,hmd->hnd"}> : () -> ()
    %cst_48 = arith.constant dense<0.000000e+00> : vector<2x9x32xf32>
    %113 = tpu.matmul %111, %112, %cst_48 {dimension_numbers = #tpu.dot_dimension_numbers<[2], [1], [1], [2], [0, 0, 0, 1, 1, 2], [0], [0]>} : vector<2x9x9xbf16>, vector<2x9x32xbf16>, vector<2x9x32xf32> -> vector<2x9x32xf32>
    "tpu.trace_stop"() : () -> ()
    %114 = arith.truncf %113 : vector<2x9x32xf32> to vector<2x9x32xbf16>
    %c0_49 = arith.constant 0 : index
    %c0_50 = arith.constant 0 : index
    %c0_51 = arith.constant 0 : index
    %c0_52 = arith.constant 0 : index
    %115 = vector.load %arg13[%c0_49, %c0_50, %c0_51, %c0_52] : memref<2x2x32x64xbf16, #tpu.memory_space<vmem>>, vector<1x2x32x64xbf16>
    %116 = vector.shape_cast %115 : vector<1x2x32x64xbf16> to vector<2x32x64xbf16>
    "tpu.trace_start"() <{level = 10 : i32, message = "hnd,hde->hne"}> : () -> ()
    %cst_53 = arith.constant dense<0.000000e+00> : vector<2x9x64xf32>
    %117 = tpu.matmul %114, %116, %cst_53 {dimension_numbers = #tpu.dot_dimension_numbers<[2], [1], [1], [2], [0, 0, 0, 1, 1, 2], [0], [0]>} : vector<2x9x32xbf16>, vector<2x32x64xbf16>, vector<2x9x64xf32> -> vector<2x9x64xf32>
    "tpu.trace_stop"() : () -> ()
    %cst_54 = arith.constant dense<0.000000e+00> : vector<9x64xf32>
    %118 = vector.multi_reduction <add>, %117, %cst_54 [0] : vector<2x9x64xf32> to vector<9x64xf32>
    %c0_55 = arith.constant 0 : index
    %c0_56 = arith.constant 0 : index
    %c0_57 = arith.constant 0 : index
    %119 = vector.load %arg14[%c0_55, %c0_56, %c0_57] : memref<2x1x64xf32, #tpu.memory_space<vmem>>, vector<1x1x64xf32>
    %120 = vector.shape_cast %119 : vector<1x1x64xf32> to vector<1x64xf32>
    %121 = vector.broadcast %120 : vector<1x64xf32> to vector<9x64xf32>
    %122 = arith.addf %118, %121 : vector<9x64xf32>
    %123 = arith.addf %122, %59 : vector<9x64xf32>
    %c0_58 = arith.constant 0 : index
    %c0_59 = arith.constant 0 : index
    %c0_60 = arith.constant 0 : index
    %124 = vector.load %arg15[%c0_58, %c0_59, %c0_60] : memref<2x1x64xf32, #tpu.memory_space<vmem>>, vector<1x1x64xf32>
    %125 = vector.shape_cast %124 : vector<1x1x64xf32> to vector<1x64xf32>
    %c0_61 = arith.constant 0 : index
    %c0_62 = arith.constant 0 : index
    %c0_63 = arith.constant 0 : index
    %126 = vector.load %arg16[%c0_61, %c0_62, %c0_63] : memref<2x1x64xf32, #tpu.memory_space<vmem>>, vector<1x1x64xf32>
    %127 = vector.shape_cast %126 : vector<1x1x64xf32> to vector<1x64xf32>
    %cst_64 = arith.constant dense<0.000000e+00> : vector<9xf32>
    %128 = vector.multi_reduction <add>, %123, %cst_64 [1] : vector<9x64xf32> to vector<9xf32>
    %129 = vector.shape_cast %128 : vector<9xf32> to vector<9x1xf32>
    %cst_65 = arith.constant 6.400000e+01 : f32
    %130 = vector.broadcast %cst_65 : f32 to vector<9x1xf32>
    %131 = arith.divf %129, %130 : vector<9x1xf32>
    %132 = vector.broadcast %131 : vector<9x1xf32> to vector<9x64xf32>
    %133 = arith.subf %123, %132 : vector<9x64xf32>
    %134 = arith.mulf %133, %133 : vector<9x64xf32>
    %cst_66 = arith.constant dense<0.000000e+00> : vector<9xf32>
    %135 = vector.multi_reduction <add>, %134, %cst_66 [1] : vector<9x64xf32> to vector<9xf32>
    %136 = vector.shape_cast %135 : vector<9xf32> to vector<9x1xf32>
    %cst_67 = arith.constant 6.400000e+01 : f32
    %137 = vector.broadcast %cst_67 : f32 to vector<9x1xf32>
    %138 = arith.divf %136, %137 : vector<9x1xf32>
    %139 = vector.broadcast %131 : vector<9x1xf32> to vector<9x64xf32>
    %140 = arith.subf %123, %139 : vector<9x64xf32>
    %cst_68 = arith.constant 9.99999974E-6 : f32
    %141 = vector.broadcast %cst_68 : f32 to vector<9x1xf32>
    %142 = arith.addf %138, %141 : vector<9x1xf32>
    %143 = math.rsqrt %142 : vector<9x1xf32>
    %144 = vector.broadcast %143 : vector<9x1xf32> to vector<9x64xf32>
    %145 = arith.mulf %140, %144 : vector<9x64xf32>
    %146 = vector.broadcast %125 : vector<1x64xf32> to vector<9x64xf32>
    %147 = arith.mulf %145, %146 : vector<9x64xf32>
    %148 = vector.broadcast %127 : vector<1x64xf32> to vector<9x64xf32>
    %149 = arith.addf %147, %148 : vector<9x64xf32>
    %150 = arith.truncf %149 : vector<9x64xf32> to vector<9x64xbf16>
    %c0_69 = arith.constant 0 : index
    %c0_70 = arith.constant 0 : index
    %c0_71 = arith.constant 0 : index
    %151 = vector.load %arg17[%c0_69, %c0_70, %c0_71] : memref<2x64x128xbf16, #tpu.memory_space<vmem>>, vector<1x64x128xbf16>
    %152 = vector.shape_cast %151 : vector<1x64x128xbf16> to vector<64x128xbf16>
    %cst_72 = arith.constant dense<0.000000e+00> : vector<9x128xf32>
    %153 = tpu.matmul %150, %152, %cst_72 {dimension_numbers = #tpu.dot_dimension_numbers<[1], [0], [0], [1], [0, 0, 1, 1], [], []>} : vector<9x64xbf16>, vector<64x128xbf16>, vector<9x128xf32> -> vector<9x128xf32>
    %c0_73 = arith.constant 0 : index
    %c0_74 = arith.constant 0 : index
    %c0_75 = arith.constant 0 : index
    %154 = vector.load %arg18[%c0_73, %c0_74, %c0_75] : memref<2x1x128xf32, #tpu.memory_space<vmem>>, vector<1x1x128xf32>
    %155 = vector.shape_cast %154 : vector<1x1x128xf32> to vector<1x128xf32>
    %156 = vector.broadcast %155 : vector<1x128xf32> to vector<9x128xf32>
    %157 = arith.addf %153, %156 : vector<9x128xf32>
    %cst_76 = arith.constant 5.000000e-01 : f32
    %158 = vector.broadcast %cst_76 : f32 to vector<9x128xf32>
    %159 = arith.mulf %158, %157 : vector<9x128xf32>
    %cst_77 = arith.constant 0.707106769 : f32
    %160 = vector.broadcast %cst_77 : f32 to vector<9x128xf32>
    %161 = arith.mulf %157, %160 : vector<9x128xf32>
    %162 = math.erf %161 : vector<9x128xf32>
    %cst_78 = arith.constant 1.000000e+00 : f32
    %163 = vector.broadcast %cst_78 : f32 to vector<9x128xf32>
    %164 = arith.addf %163, %162 : vector<9x128xf32>
    %165 = arith.mulf %159, %164 : vector<9x128xf32>
    %166 = arith.truncf %165 : vector<9x128xf32> to vector<9x128xbf16>
    %c0_79 = arith.constant 0 : index
    %c0_80 = arith.constant 0 : index
    %c0_81 = arith.constant 0 : index
    %167 = vector.load %arg19[%c0_79, %c0_80, %c0_81] : memref<2x128x64xbf16, #tpu.memory_space<vmem>>, vector<1x128x64xbf16>
    %168 = vector.shape_cast %167 : vector<1x128x64xbf16> to vector<128x64xbf16>
    %cst_82 = arith.constant dense<0.000000e+00> : vector<9x64xf32>
    %169 = tpu.matmul %166, %168, %cst_82 {dimension_numbers = #tpu.dot_dimension_numbers<[1], [0], [0], [1], [0, 0, 1, 1], [], []>} : vector<9x128xbf16>, vector<128x64xbf16>, vector<9x64xf32> -> vector<9x64xf32>
    %c0_83 = arith.constant 0 : index
    %c0_84 = arith.constant 0 : index
    %c0_85 = arith.constant 0 : index
    %170 = vector.load %arg20[%c0_83, %c0_84, %c0_85] : memref<2x1x64xf32, #tpu.memory_space<vmem>>, vector<1x1x64xf32>
    %171 = vector.shape_cast %170 : vector<1x1x64xf32> to vector<1x64xf32>
    %172 = vector.broadcast %171 : vector<1x64xf32> to vector<9x64xf32>
    %173 = arith.addf %169, %172 : vector<9x64xf32>
    %174 = arith.addf %173, %123 : vector<9x64xf32>
    %c1 = arith.constant 1 : index
    %c0_86 = arith.constant 0 : index
    %c0_87 = arith.constant 0 : index
    %175 = vector.load %arg10[%c1, %c0_86, %c0_87] : memref<2x1x64xf32, #tpu.memory_space<vmem>>, vector<1x1x64xf32>
    %176 = vector.shape_cast %175 : vector<1x1x64xf32> to vector<1x64xf32>
    %c1_88 = arith.constant 1 : index
    %c0_89 = arith.constant 0 : index
    %c0_90 = arith.constant 0 : index
    %177 = vector.load %arg11[%c1_88, %c0_89, %c0_90] : memref<2x1x64xf32, #tpu.memory_space<vmem>>, vector<1x1x64xf32>
    %178 = vector.shape_cast %177 : vector<1x1x64xf32> to vector<1x64xf32>
    %cst_91 = arith.constant dense<0.000000e+00> : vector<9xf32>
    %179 = vector.multi_reduction <add>, %174, %cst_91 [1] : vector<9x64xf32> to vector<9xf32>
    %180 = vector.shape_cast %179 : vector<9xf32> to vector<9x1xf32>
    %cst_92 = arith.constant 6.400000e+01 : f32
    %181 = vector.broadcast %cst_92 : f32 to vector<9x1xf32>
    %182 = arith.divf %180, %181 : vector<9x1xf32>
    %183 = vector.broadcast %182 : vector<9x1xf32> to vector<9x64xf32>
    %184 = arith.subf %174, %183 : vector<9x64xf32>
    %185 = arith.mulf %184, %184 : vector<9x64xf32>
    %cst_93 = arith.constant dense<0.000000e+00> : vector<9xf32>
    %186 = vector.multi_reduction <add>, %185, %cst_93 [1] : vector<9x64xf32> to vector<9xf32>
    %187 = vector.shape_cast %186 : vector<9xf32> to vector<9x1xf32>
    %cst_94 = arith.constant 6.400000e+01 : f32
    %188 = vector.broadcast %cst_94 : f32 to vector<9x1xf32>
    %189 = arith.divf %187, %188 : vector<9x1xf32>
    %190 = vector.broadcast %182 : vector<9x1xf32> to vector<9x64xf32>
    %191 = arith.subf %174, %190 : vector<9x64xf32>
    %cst_95 = arith.constant 9.99999974E-6 : f32
    %192 = vector.broadcast %cst_95 : f32 to vector<9x1xf32>
    %193 = arith.addf %189, %192 : vector<9x1xf32>
    %194 = math.rsqrt %193 : vector<9x1xf32>
    %195 = vector.broadcast %194 : vector<9x1xf32> to vector<9x64xf32>
    %196 = arith.mulf %191, %195 : vector<9x64xf32>
    %197 = vector.broadcast %176 : vector<1x64xf32> to vector<9x64xf32>
    %198 = arith.mulf %196, %197 : vector<9x64xf32>
    %199 = vector.broadcast %178 : vector<1x64xf32> to vector<9x64xf32>
    %200 = arith.addf %198, %199 : vector<9x64xf32>
    %201 = arith.truncf %200 : vector<9x64xf32> to vector<9x64xbf16>
    %202 = vector.shape_cast %201 : vector<9x64xbf16> to vector<1x9x64xbf16>
    %203 = vector.shape_cast %202 : vector<1x9x64xbf16> to vector<1x9x64xbf16>
    %204 = vector.broadcast %203 : vector<1x9x64xbf16> to vector<6x9x64xbf16>
    %c1_96 = arith.constant 1 : index
    %c0_97 = arith.constant 0 : index
    %c0_98 = arith.constant 0 : index
    %c0_99 = arith.constant 0 : index
    %205 = vector.load %arg12[%c1_96, %c0_97, %c0_98, %c0_99] : memref<2x6x64x32xbf16, #tpu.memory_space<vmem>>, vector<1x6x64x32xbf16>
    %206 = vector.shape_cast %205 : vector<1x6x64x32xbf16> to vector<6x64x32xbf16>
    "tpu.trace_start"() <{level = 10 : i32, message = "gnd,gde->gne"}> : () -> ()
    %cst_100 = arith.constant dense<0.000000e+00> : vector<6x9x32xf32>
    %207 = tpu.matmul %204, %206, %cst_100 {dimension_numbers = #tpu.dot_dimension_numbers<[2], [1], [1], [2], [0, 0, 0, 1, 1, 2], [0], [0]>} : vector<6x9x64xbf16>, vector<6x64x32xbf16>, vector<6x9x32xf32> -> vector<6x9x32xf32>
    "tpu.trace_stop"() : () -> ()
    %208 = vector.extract_strided_slice %207 {offsets = [0, 0, 0], sizes = [2, 9, 32], strides = [1, 1, 1]} : vector<6x9x32xf32> to vector<2x9x32xf32>
    %209 = vector.extract_strided_slice %207 {offsets = [2, 0, 0], sizes = [2, 9, 32], strides = [1, 1, 1]} : vector<6x9x32xf32> to vector<2x9x32xf32>
    %210 = vector.extract_strided_slice %207 {offsets = [4, 0, 0], sizes = [2, 9, 32], strides = [1, 1, 1]} : vector<6x9x32xf32> to vector<2x9x32xf32>
    %211 = arith.truncf %208 : vector<2x9x32xf32> to vector<2x9x32xbf16>
    %212 = arith.truncf %209 : vector<2x9x32xf32> to vector<2x9x32xbf16>
    "tpu.trace_start"() <{level = 10 : i32, message = "hnd,hmd->hnm"}> : () -> ()
    %cst_101 = arith.constant dense<0.000000e+00> : vector<2x9x9xf32>
    %213 = tpu.matmul %211, %212, %cst_101 {dimension_numbers = #tpu.dot_dimension_numbers<[2], [2], [1], [1], [0, 0, 0, 1, 1, 1], [0], [0]>} : vector<2x9x32xbf16>, vector<2x9x32xbf16>, vector<2x9x9xf32> -> vector<2x9x9xf32>
    "tpu.trace_stop"() : () -> ()
    %cst_102 = arith.constant 0.176776692 : f32
    %214 = vector.broadcast %cst_102 : f32 to vector<2x9x9xf32>
    %215 = arith.mulf %213, %214 : vector<2x9x9xf32>
    %cst_103 = arith.constant dense<0xFF800000> : vector<2x9xf32>
    %216 = vector.multi_reduction <maximumf>, %215, %cst_103 [2] : vector<2x9x9xf32> to vector<2x9xf32>
    %217 = vector.shape_cast %216 : vector<2x9xf32> to vector<2x9x1xf32>
    %218 = vector.broadcast %217 : vector<2x9x1xf32> to vector<2x9x9xf32>
    %219 = arith.subf %215, %218 : vector<2x9x9xf32>
    %220 = math.exp %219 : vector<2x9x9xf32>
    %cst_104 = arith.constant dense<0.000000e+00> : vector<2x9xf32>
    %221 = vector.multi_reduction <add>, %220, %cst_104 [2] : vector<2x9x9xf32> to vector<2x9xf32>
    %222 = vector.shape_cast %221 : vector<2x9xf32> to vector<2x9x1xf32>
    %223 = tpu.reciprocal %222 {approx = true} : vector<2x9x1xf32> -> vector<2x9x1xf32>
    %224 = vector.broadcast %223 : vector<2x9x1xf32> to vector<2x9x9xf32>
    %225 = arith.mulf %220, %224 : vector<2x9x9xf32>
    %226 = arith.truncf %225 : vector<2x9x9xf32> to vector<2x9x9xbf16>
    %227 = arith.truncf %210 : vector<2x9x32xf32> to vector<2x9x32xbf16>
    "tpu.trace_start"() <{level = 10 : i32, message = "hnm,hmd->hnd"}> : () -> ()
    %cst_105 = arith.constant dense<0.000000e+00> : vector<2x9x32xf32>
    %228 = tpu.matmul %226, %227, %cst_105 {dimension_numbers = #tpu.dot_dimension_numbers<[2], [1], [1], [2], [0, 0, 0, 1, 1, 2], [0], [0]>} : vector<2x9x9xbf16>, vector<2x9x32xbf16>, vector<2x9x32xf32> -> vector<2x9x32xf32>
    "tpu.trace_stop"() : () -> ()
    %229 = arith.truncf %228 : vector<2x9x32xf32> to vector<2x9x32xbf16>
    %c1_106 = arith.constant 1 : index
    %c0_107 = arith.constant 0 : index
    %c0_108 = arith.constant 0 : index
    %c0_109 = arith.constant 0 : index
    %230 = vector.load %arg13[%c1_106, %c0_107, %c0_108, %c0_109] : memref<2x2x32x64xbf16, #tpu.memory_space<vmem>>, vector<1x2x32x64xbf16>
    %231 = vector.shape_cast %230 : vector<1x2x32x64xbf16> to vector<2x32x64xbf16>
    "tpu.trace_start"() <{level = 10 : i32, message = "hnd,hde->hne"}> : () -> ()
    %cst_110 = arith.constant dense<0.000000e+00> : vector<2x9x64xf32>
    %232 = tpu.matmul %229, %231, %cst_110 {dimension_numbers = #tpu.dot_dimension_numbers<[2], [1], [1], [2], [0, 0, 0, 1, 1, 2], [0], [0]>} : vector<2x9x32xbf16>, vector<2x32x64xbf16>, vector<2x9x64xf32> -> vector<2x9x64xf32>
    "tpu.trace_stop"() : () -> ()
    %cst_111 = arith.constant dense<0.000000e+00> : vector<9x64xf32>
    %233 = vector.multi_reduction <add>, %232, %cst_111 [0] : vector<2x9x64xf32> to vector<9x64xf32>
    %c1_112 = arith.constant 1 : index
    %c0_113 = arith.constant 0 : index
    %c0_114 = arith.constant 0 : index
    %234 = vector.load %arg14[%c1_112, %c0_113, %c0_114] : memref<2x1x64xf32, #tpu.memory_space<vmem>>, vector<1x1x64xf32>
    %235 = vector.shape_cast %234 : vector<1x1x64xf32> to vector<1x64xf32>
    %236 = vector.broadcast %235 : vector<1x64xf32> to vector<9x64xf32>
    %237 = arith.addf %233, %236 : vector<9x64xf32>
    %238 = arith.addf %237, %174 : vector<9x64xf32>
    %c1_115 = arith.constant 1 : index
    %c0_116 = arith.constant 0 : index
    %c0_117 = arith.constant 0 : index
    %239 = vector.load %arg15[%c1_115, %c0_116, %c0_117] : memref<2x1x64xf32, #tpu.memory_space<vmem>>, vector<1x1x64xf32>
    %240 = vector.shape_cast %239 : vector<1x1x64xf32> to vector<1x64xf32>
    %c1_118 = arith.constant 1 : index
    %c0_119 = arith.constant 0 : index
    %c0_120 = arith.constant 0 : index
    %241 = vector.load %arg16[%c1_118, %c0_119, %c0_120] : memref<2x1x64xf32, #tpu.memory_space<vmem>>, vector<1x1x64xf32>
    %242 = vector.shape_cast %241 : vector<1x1x64xf32> to vector<1x64xf32>
    %cst_121 = arith.constant dense<0.000000e+00> : vector<9xf32>
    %243 = vector.multi_reduction <add>, %238, %cst_121 [1] : vector<9x64xf32> to vector<9xf32>
    %244 = vector.shape_cast %243 : vector<9xf32> to vector<9x1xf32>
    %cst_122 = arith.constant 6.400000e+01 : f32
    %245 = vector.broadcast %cst_122 : f32 to vector<9x1xf32>
    %246 = arith.divf %244, %245 : vector<9x1xf32>
    %247 = vector.broadcast %246 : vector<9x1xf32> to vector<9x64xf32>
    %248 = arith.subf %238, %247 : vector<9x64xf32>
    %249 = arith.mulf %248, %248 : vector<9x64xf32>
    %cst_123 = arith.constant dense<0.000000e+00> : vector<9xf32>
    %250 = vector.multi_reduction <add>, %249, %cst_123 [1] : vector<9x64xf32> to vector<9xf32>
    %251 = vector.shape_cast %250 : vector<9xf32> to vector<9x1xf32>
    %cst_124 = arith.constant 6.400000e+01 : f32
    %252 = vector.broadcast %cst_124 : f32 to vector<9x1xf32>
    %253 = arith.divf %251, %252 : vector<9x1xf32>
    %254 = vector.broadcast %246 : vector<9x1xf32> to vector<9x64xf32>
    %255 = arith.subf %238, %254 : vector<9x64xf32>
    %cst_125 = arith.constant 9.99999974E-6 : f32
    %256 = vector.broadcast %cst_125 : f32 to vector<9x1xf32>
    %257 = arith.addf %253, %256 : vector<9x1xf32>
    %258 = math.rsqrt %257 : vector<9x1xf32>
    %259 = vector.broadcast %258 : vector<9x1xf32> to vector<9x64xf32>
    %260 = arith.mulf %255, %259 : vector<9x64xf32>
    %261 = vector.broadcast %240 : vector<1x64xf32> to vector<9x64xf32>
    %262 = arith.mulf %260, %261 : vector<9x64xf32>
    %263 = vector.broadcast %242 : vector<1x64xf32> to vector<9x64xf32>
    %264 = arith.addf %262, %263 : vector<9x64xf32>
    %265 = arith.truncf %264 : vector<9x64xf32> to vector<9x64xbf16>
    %c1_126 = arith.constant 1 : index
    %c0_127 = arith.constant 0 : index
    %c0_128 = arith.constant 0 : index
    %266 = vector.load %arg17[%c1_126, %c0_127, %c0_128] : memref<2x64x128xbf16, #tpu.memory_space<vmem>>, vector<1x64x128xbf16>
    %267 = vector.shape_cast %266 : vector<1x64x128xbf16> to vector<64x128xbf16>
    %cst_129 = arith.constant dense<0.000000e+00> : vector<9x128xf32>
    %268 = tpu.matmul %265, %267, %cst_129 {dimension_numbers = #tpu.dot_dimension_numbers<[1], [0], [0], [1], [0, 0, 1, 1], [], []>} : vector<9x64xbf16>, vector<64x128xbf16>, vector<9x128xf32> -> vector<9x128xf32>
    %c1_130 = arith.constant 1 : index
    %c0_131 = arith.constant 0 : index
    %c0_132 = arith.constant 0 : index
    %269 = vector.load %arg18[%c1_130, %c0_131, %c0_132] : memref<2x1x128xf32, #tpu.memory_space<vmem>>, vector<1x1x128xf32>
    %270 = vector.shape_cast %269 : vector<1x1x128xf32> to vector<1x128xf32>
    %271 = vector.broadcast %270 : vector<1x128xf32> to vector<9x128xf32>
    %272 = arith.addf %268, %271 : vector<9x128xf32>
    %cst_133 = arith.constant 5.000000e-01 : f32
    %273 = vector.broadcast %cst_133 : f32 to vector<9x128xf32>
    %274 = arith.mulf %273, %272 : vector<9x128xf32>
    %cst_134 = arith.constant 0.707106769 : f32
    %275 = vector.broadcast %cst_134 : f32 to vector<9x128xf32>
    %276 = arith.mulf %272, %275 : vector<9x128xf32>
    %277 = math.erf %276 : vector<9x128xf32>
    %cst_135 = arith.constant 1.000000e+00 : f32
    %278 = vector.broadcast %cst_135 : f32 to vector<9x128xf32>
    %279 = arith.addf %278, %277 : vector<9x128xf32>
    %280 = arith.mulf %274, %279 : vector<9x128xf32>
    %281 = arith.truncf %280 : vector<9x128xf32> to vector<9x128xbf16>
    %c1_136 = arith.constant 1 : index
    %c0_137 = arith.constant 0 : index
    %c0_138 = arith.constant 0 : index
    %282 = vector.load %arg19[%c1_136, %c0_137, %c0_138] : memref<2x128x64xbf16, #tpu.memory_space<vmem>>, vector<1x128x64xbf16>
    %283 = vector.shape_cast %282 : vector<1x128x64xbf16> to vector<128x64xbf16>
    %cst_139 = arith.constant dense<0.000000e+00> : vector<9x64xf32>
    %284 = tpu.matmul %281, %283, %cst_139 {dimension_numbers = #tpu.dot_dimension_numbers<[1], [0], [0], [1], [0, 0, 1, 1], [], []>} : vector<9x128xbf16>, vector<128x64xbf16>, vector<9x64xf32> -> vector<9x64xf32>
    %c1_140 = arith.constant 1 : index
    %c0_141 = arith.constant 0 : index
    %c0_142 = arith.constant 0 : index
    %285 = vector.load %arg20[%c1_140, %c0_141, %c0_142] : memref<2x1x64xf32, #tpu.memory_space<vmem>>, vector<1x1x64xf32>
    %286 = vector.shape_cast %285 : vector<1x1x64xf32> to vector<1x64xf32>
    %287 = vector.broadcast %286 : vector<1x64xf32> to vector<9x64xf32>
    %288 = arith.addf %284, %287 : vector<9x64xf32>
    %289 = arith.addf %288, %238 : vector<9x64xf32>
    %290 = vector.extract_strided_slice %289 {offsets = [0, 0], sizes = [1, 64], strides = [1, 1]} : vector<9x64xf32> to vector<1x64xf32>
    %c0_143 = arith.constant 0 : index
    %c0_144 = arith.constant 0 : index
    %291 = vector.load %arg21[%c0_143, %c0_144] : memref<1x64xf32, #tpu.memory_space<vmem>>, vector<1x64xf32>
    %c0_145 = arith.constant 0 : index
    %c0_146 = arith.constant 0 : index
    %292 = vector.load %arg22[%c0_145, %c0_146] : memref<1x64xf32, #tpu.memory_space<vmem>>, vector<1x64xf32>
    %cst_147 = arith.constant dense<0.000000e+00> : vector<1xf32>
    %293 = vector.multi_reduction <add>, %290, %cst_147 [1] : vector<1x64xf32> to vector<1xf32>
    %294 = vector.shape_cast %293 : vector<1xf32> to vector<1x1xf32>
    %cst_148 = arith.constant 6.400000e+01 : f32
    %295 = vector.broadcast %cst_148 : f32 to vector<1x1xf32>
    %296 = arith.divf %294, %295 : vector<1x1xf32>
    %297 = vector.broadcast %296 : vector<1x1xf32> to vector<1x64xf32>
    %298 = arith.subf %290, %297 : vector<1x64xf32>
    %299 = arith.mulf %298, %298 : vector<1x64xf32>
    %cst_149 = arith.constant dense<0.000000e+00> : vector<1xf32>
    %300 = vector.multi_reduction <add>, %299, %cst_149 [1] : vector<1x64xf32> to vector<1xf32>
    %301 = vector.shape_cast %300 : vector<1xf32> to vector<1x1xf32>
    %cst_150 = arith.constant 6.400000e+01 : f32
    %302 = vector.broadcast %cst_150 : f32 to vector<1x1xf32>
    %303 = arith.divf %301, %302 : vector<1x1xf32>
    %304 = vector.broadcast %296 : vector<1x1xf32> to vector<1x64xf32>
    %305 = arith.subf %290, %304 : vector<1x64xf32>
    %cst_151 = arith.constant 9.99999974E-6 : f32
    %306 = vector.broadcast %cst_151 : f32 to vector<1x1xf32>
    %307 = arith.addf %303, %306 : vector<1x1xf32>
    %308 = math.rsqrt %307 : vector<1x1xf32>
    %309 = vector.broadcast %308 : vector<1x1xf32> to vector<1x64xf32>
    %310 = arith.mulf %305, %309 : vector<1x64xf32>
    %311 = arith.mulf %310, %291 : vector<1x64xf32>
    %312 = arith.addf %311, %292 : vector<1x64xf32>
    %313 = arith.truncf %312 : vector<1x64xf32> to vector<1x64xbf16>
    %c0_152 = arith.constant 0 : index
    %c0_153 = arith.constant 0 : index
    %314 = vector.load %arg23[%c0_152, %c0_153] : memref<64x256xbf16, #tpu.memory_space<vmem>>, vector<64x256xbf16>
    %cst_154 = arith.constant dense<0.000000e+00> : vector<1x256xf32>
    %315 = tpu.matmul %313, %314, %cst_154 {dimension_numbers = #tpu.dot_dimension_numbers<[1], [0], [0], [1], [0, 0, 1, 1], [], []>} : vector<1x64xbf16>, vector<64x256xbf16>, vector<1x256xf32> -> vector<1x256xf32>
    %c0_155 = arith.constant 0 : index
    %c0_156 = arith.constant 0 : index
    %316 = vector.load %arg24[%c0_155, %c0_156] : memref<1x256xf32, #tpu.memory_space<vmem>>, vector<1x256xf32>
    %317 = arith.addf %315, %316 : vector<1x256xf32>
    %c0_157 = arith.constant 0 : index
    %c0_158 = arith.constant 0 : index
    %c0_159 = arith.constant 0 : index
    %318 = vector.load %arg25[%c0_157, %c0_158, %c0_159] : memref<1x1x256xf32, #tpu.memory_space<vmem>>, vector<1x1x256xf32>
    %319 = vector.shape_cast %318 : vector<1x1x256xf32> to vector<1x256xf32>
    %320 = vector.shape_cast %317 : vector<1x256xf32> to vector<1x1x256xf32>
    tpu.vector_store %arg25[%c0_157, %c0_158, %c0_159], %320 {strides = array<i32>} : memref<1x1x256xf32, #tpu.memory_space<vmem>>, vector<1x1x256xf32>,
    return
  }
  func.func @transform_0(%arg0: i32) -> (i32, i32, i32) {
    %c0_i32 = arith.constant 0 : i32
    %c0_i32_0 = arith.constant 0 : i32
    %c0_i32_1 = arith.constant 0 : i32
    return %arg0, %c0_i32, %c0_i32_0 : i32, i32, i32
  }
  func.func @transform_1(%arg0: i32) -> (i32, i32) {
    %c0_i32 = arith.constant 0 : i32
    %c0_i32_0 = arith.constant 0 : i32
    %c0_i32_1 = arith.constant 0 : i32
    return %c0_i32, %c0_i32_0 : i32, i32
  }
  func.func @transform_2(%arg0: i32) -> (i32, i32) {
    %c0_i32 = arith.constant 0 : i32
    %c0_i32_0 = arith.constant 0 : i32
    %c0_i32_1 = arith.constant 0 : i32
    return %c0_i32, %c0_i32_0 : i32, i32
  }
  func.func @transform_3(%arg0: i32) -> (i32, i32) {
    %c0_i32 = arith.constant 0 : i32
    %c0_i32_0 = arith.constant 0 : i32
    %c0_i32_1 = arith.constant 0 : i32
    return %c0_i32, %c0_i32_0 : i32, i32
  }
  func.func @transform_4(%arg0: i32) -> (i32, i32) {
    %c0_i32 = arith.constant 0 : i32
    %c0_i32_0 = arith.constant 0 : i32
    %c0_i32_1 = arith.constant 0 : i32
    return %c0_i32, %c0_i32_0 : i32, i32
  }
  func.func @transform_5(%arg0: i32) -> (i32, i32) {
    %c0_i32 = arith.constant 0 : i32
    %c0_i32_0 = arith.constant 0 : i32
    %c0_i32_1 = arith.constant 0 : i32
    return %c0_i32, %c0_i32_0 : i32, i32
  }
  func.func @transform_6(%arg0: i32) -> (i32, i32) {
    %c0_i32 = arith.constant 0 : i32
    %c0_i32_0 = arith.constant 0 : i32
    %c0_i32_1 = arith.constant 0 : i32
    return %c0_i32, %c0_i32_0 : i32, i32
  }
  func.func @transform_7(%arg0: i32) -> (i32, i32) {
    %c0_i32 = arith.constant 0 : i32
    %c0_i32_0 = arith.constant 0 : i32
    %c0_i32_1 = arith.constant 0 : i32
    return %c0_i32, %c0_i32_0 : i32, i32
  }
  func.func @transform_8(%arg0: i32) -> (i32, i32) {
    %c0_i32 = arith.constant 0 : i32
    %c0_i32_0 = arith.constant 0 : i32
    %c0_i32_1 = arith.constant 0 : i32
    return %c0_i32, %c0_i32_0 : i32, i32
  }
  func.func @transform_9(%arg0: i32) -> (i32, i32, i32) {
    %c0_i32 = arith.constant 0 : i32
    %c0_i32_0 = arith.constant 0 : i32
    %c0_i32_1 = arith.constant 0 : i32
    %c0_i32_2 = arith.constant 0 : i32
    return %c0_i32, %c0_i32_0, %c0_i32_1 : i32, i32, i32
  }
  func.func @transform_10(%arg0: i32) -> (i32, i32, i32) {
    %c0_i32 = arith.constant 0 : i32
    %c0_i32_0 = arith.constant 0 : i32
    %c0_i32_1 = arith.constant 0 : i32
    %c0_i32_2 = arith.constant 0 : i32
    return %c0_i32, %c0_i32_0, %c0_i32_1 : i32, i32, i32
  }
  func.func @transform_11(%arg0: i32) -> (i32, i32, i32, i32) {
    %c0_i32 = arith.constant 0 : i32
    %c0_i32_0 = arith.constant 0 : i32
    %c0_i32_1 = arith.constant 0 : i32
    %c0_i32_2 = arith.constant 0 : i32
    %c0_i32_3 = arith.constant 0 : i32
    return %c0_i32, %c0_i32_0, %c0_i32_1, %c0_i32_2 : i32, i32, i32, i32
  }
  func.func @transform_12(%arg0: i32) -> (i32, i32, i32, i32) {
    %c0_i32 = arith.constant 0 : i32
    %c0_i32_0 = arith.constant 0 : i32
    %c0_i32_1 = arith.constant 0 : i32
    %c0_i32_2 = arith.constant 0 : i32
    %c0_i32_3 = arith.constant 0 : i32
    return %c0_i32, %c0_i32_0, %c0_i32_1, %c0_i32_2 : i32, i32, i32, i32
  }
  func.func @transform_13(%arg0: i32) -> (i32, i32, i32) {
    %c0_i32 = arith.constant 0 : i32
    %c0_i32_0 = arith.constant 0 : i32
    %c0_i32_1 = arith.constant 0 : i32
    %c0_i32_2 = arith.constant 0 : i32
    return %c0_i32, %c0_i32_0, %c0_i32_1 : i32, i32, i32
  }
  func.func @transform_14(%arg0: i32) -> (i32, i32, i32) {
    %c0_i32 = arith.constant 0 : i32
    %c0_i32_0 = arith.constant 0 : i32
    %c0_i32_1 = arith.constant 0 : i32
    %c0_i32_2 = arith.constant 0 : i32
    return %c0_i32, %c0_i32_0, %c0_i32_1 : i32, i32, i32
  }
  func.func @transform_15(%arg0: i32) -> (i32, i32, i32) {
    %c0_i32 = arith.constant 0 : i32
    %c0_i32_0 = arith.constant 0 : i32
    %c0_i32_1 = arith.constant 0 : i32
    %c0_i32_2 = arith.constant 0 : i32
    return %c0_i32, %c0_i32_0, %c0_i32_1 : i32, i32, i32
  }
  func.func @transform_16(%arg0: i32) -> (i32, i32, i32) {
    %c0_i32 = arith.constant 0 : i32
    %c0_i32_0 = arith.constant 0 : i32
    %c0_i32_1 = arith.constant 0 : i32
    %c0_i32_2 = arith.constant 0 : i32
    return %c0_i32, %c0_i32_0, %c0_i32_1 : i32, i32, i32
  }
  func.func @transform_17(%arg0: i32) -> (i32, i32, i32) {
    %c0_i32 = arith.constant 0 : i32
    %c0_i32_0 = arith.constant 0 : i32
    %c0_i32_1 = arith.constant 0 : i32
    %c0_i32_2 = arith.constant 0 : i32
    return %c0_i32, %c0_i32_0, %c0_i32_1 : i32, i32, i32
  }
  func.func @transform_18(%arg0: i32) -> (i32, i32, i32) {
    %c0_i32 = arith.constant 0 : i32
    %c0_i32_0 = arith.constant 0 : i32
    %c0_i32_1 = arith.constant 0 : i32
    %c0_i32_2 = arith.constant 0 : i32
    return %c0_i32, %c0_i32_0, %c0_i32_1 : i32, i32, i32
  }
  func.func @transform_19(%arg0: i32) -> (i32, i32, i32) {
    %c0_i32 = arith.constant 0 : i32
    %c0_i32_0 = arith.constant 0 : i32
    %c0_i32_1 = arith.constant 0 : i32
    %c0_i32_2 = arith.constant 0 : i32
    return %c0_i32, %c0_i32_0, %c0_i32_1 : i32, i32, i32
  }
  func.func @transform_20(%arg0: i32) -> (i32, i32) {
    %c0_i32 = arith.constant 0 : i32
    %c0_i32_0 = arith.constant 0 : i32
    %c0_i32_1 = arith.constant 0 : i32
    return %c0_i32, %c0_i32_0 : i32, i32
  }
  func.func @transform_21(%arg0: i32) -> (i32, i32) {
    %c0_i32 = arith.constant 0 : i32
    %c0_i32_0 = arith.constant 0 : i32
    %c0_i32_1 = arith.constant 0 : i32
    return %c0_i32, %c0_i32_0 : i32, i32
  }
  func.func @transform_22(%arg0: i32) -> (i32, i32) {
    %c0_i32 = arith.constant 0 : i32
    %c0_i32_0 = arith.constant 0 : i32
    %c0_i32_1 = arith.constant 0 : i32
    return %c0_i32, %c0_i32_0 : i32, i32
  }
  func.func @transform_23(%arg0: i32) -> (i32, i32) {
    %c0_i32 = arith.constant 0 : i32
    %c0_i32_0 = arith.constant 0 : i32
    %c0_i32_1 = arith.constant 0 : i32
    return %c0_i32, %c0_i32_0 : i32, i32
  }
  func.func @transform_24(%arg0: i32) -> (i32, i32, i32) {
    %c0_i32 = arith.constant 0 : i32
    %c0_i32_0 = arith.constant 0 : i32
    %c0_i32_1 = arith.constant 0 : i32
    return %arg0, %c0_i32, %c0_i32_0 : i32, i32, i32
  }
}

</mosaic_0001>

<llo_original>
// kernel: vit1d_forward.1
$region0: #{vit1d_forward.1}
  #allocation0 [shape = 'u32[]', space=smem, size = 0x4, offset = 0x4, fixed_abs, tag = 'smem constant byte address 0x4 - core index']
  #allocation1 [shape = 'u32[144,128]{1,0:T(1,128)}', space=vmem, size = 0x12000, scoped, tag = 'internal scratch']
  %s0 = inlined_call_operand.vmem [shape: f32[2,8,20], index: 0, kind: input, shape index: {}]
  %s1 = inlined_call_operand.vmem [shape: f32[1,20], index: 1, kind: input, shape index: {}]
  %s2 = inlined_call_operand.vmem [shape: f32[1,20], index: 2, kind: input, shape index: {}]
  %s3 = inlined_call_operand.vmem [shape: bf16[20,64], index: 3, kind: input, shape index: {}]
  %s4 = inlined_call_operand.vmem [shape: f32[1,64], index: 4, kind: input, shape index: {}]
  %s5 = inlined_call_operand.vmem [shape: f32[1,64], index: 5, kind: input, shape index: {}]
  %s6 = inlined_call_operand.vmem [shape: f32[1,64], index: 6, kind: input, shape index: {}]
  %s7 = inlined_call_operand.vmem [shape: f32[1,64], index: 7, kind: input, shape index: {}]
  %s8 = inlined_call_operand.vmem [shape: f32[9,64], index: 8, kind: input, shape index: {}]
  %s9 = inlined_call_operand.vmem [shape: f32[2,1,64], index: 9, kind: input, shape index: {}]
  %s10 = inlined_call_operand.vmem [shape: f32[2,1,64], index: 10, kind: input, shape index: {}]
  %s11 = inlined_call_operand.vmem [shape: bf16[2,6,64,32], index: 11, kind: input, shape index: {}]
  %s12 = inlined_call_operand.vmem [shape: bf16[2,2,32,64], index: 12, kind: input, shape index: {}]
  %s13 = inlined_call_operand.vmem [shape: f32[2,1,64], index: 13, kind: input, shape index: {}]
  %s14 = inlined_call_operand.vmem [shape: f32[2,1,64], index: 14, kind: input, shape index: {}]
  %s15 = inlined_call_operand.vmem [shape: f32[2,1,64], index: 15, kind: input, shape index: {}]
  %s16 = inlined_call_operand.vmem [shape: bf16[2,64,128], index: 16, kind: input, shape index: {}]
  %s17 = inlined_call_operand.vmem [shape: f32[2,1,128], index: 17, kind: input, shape index: {}]
  %s18 = inlined_call_operand.vmem [shape: bf16[2,128,64], index: 18, kind: input, shape index: {}]
  %s19 = inlined_call_operand.vmem [shape: f32[2,1,64], index: 19, kind: input, shape index: {}]
  %s20 = inlined_call_operand.vmem [shape: f32[1,64], index: 20, kind: input, shape index: {}]
  %s21 = inlined_call_operand.vmem [shape: f32[1,64], index: 21, kind: input, shape index: {}]
  %s22 = inlined_call_operand.vmem [shape: bf16[64,256], index: 22, kind: input, shape index: {}]
  %s23 = inlined_call_operand.vmem [shape: f32[1,256], index: 23, kind: input, shape index: {}]
  %s24 = inlined_call_operand.vmem [shape: f32[2,1,256], index: 24, kind: output, shape index: {}]
  %s25 = sld [smem:[#allocation0]]
  $region129: #{vit1d_forward.1} parent=0
    _
  %s27 = ssub.s32 1, %s25
  %s28 = scalar_select 0, %s27, %s25
  loop: start=0, step=1, limit=4
  $region2: #{vit1d_forward.1} parent=0 // loop_pre_header
    _
  $region3: #{vit1d_forward.1} parent=0 // loop_header
    %s30 = sphi 0, %s34
    %p31 = scmp.ge.s32.totalorder %s30, 4
    %s40 = sphi 0, %s42
    %s43 = sphi 0, %s40
    %s44 = sphi 0, %s43
    %s60 = sphi 0, %s44
    %s64 = sphi 0, %s64
    %s66 = sphi 0, %s64
    %s67 = sphi 0, %s66
    %s81 = sphi 0, %s67
    %s85 = sphi 0, %s85
    %s87 = sphi 0, %s85
    %s88 = sphi 0, %s87
    %s102 = sphi 0, %s88
    %s106 = sphi 0, %s106
    %s108 = sphi 0, %s106
    %s109 = sphi 0, %s108
    %s123 = sphi 0, %s109
    %s127 = sphi 0, %s127
    %s129 = sphi 0, %s127
    %s130 = sphi 0, %s129
    %s144 = sphi 0, %s130
    %s148 = sphi 0, %s148
    %s150 = sphi 0, %s148
    %s151 = sphi 0, %s150
    %s165 = sphi 0, %s151
    %s169 = sphi 0, %s169
    %s171 = sphi 0, %s169
    %s172 = sphi 0, %s171
    %s186 = sphi 0, %s172
    %s190 = sphi 0, %s190
    %s192 = sphi 0, %s190
    %s193 = sphi 0, %s192
    %s207 = sphi 0, %s193
    %s211 = sphi 0, %s211
    %s213 = sphi 0, %s211
    %s214 = sphi 0, %s213
    %s228 = sphi 0, %s214
    %s232 = sphi 0, %s232
    %s234 = sphi 0, %s232
    %s235 = sphi 0, %s234
    %s249 = sphi 0, %s235
    %s253 = sphi 0, %s253
    %s255 = sphi 0, %s253
    %s256 = sphi 0, %s255
    %s270 = sphi 0, %s256
    %s274 = sphi 0, %s274
    %s276 = sphi 0, %s274
    %s277 = sphi 0, %s276
    %s291 = sphi 0, %s277
    %s295 = sphi 0, %s295
    %s297 = sphi 0, %s295
    %s298 = sphi 0, %s297
    %s312 = sphi 0, %s298
    %s316 = sphi 0, %s316
    %s318 = sphi 0, %s316
    %s319 = sphi 0, %s318
    %s333 = sphi 0, %s319
    %s337 = sphi 0, %s337
    %s339 = sphi 0, %s337
    %s340 = sphi 0, %s339
    %s354 = sphi 0, %s340
    %s358 = sphi 0, %s358
    %s360 = sphi 0, %s358
    %s361 = sphi 0, %s360
    %s375 = sphi 0, %s361
    %s379 = sphi 0, %s379
    %s381 = sphi 0, %s379
    %s382 = sphi 0, %s381
    %s396 = sphi 0, %s382
    %s400 = sphi 0, %s400
    %s402 = sphi 0, %s400
    %s403 = sphi 0, %s402
    %s417 = sphi 0, %s403
    %s421 = sphi 0, %s421
    %s423 = sphi 0, %s421
    %s424 = sphi 0, %s423
    %s438 = sphi 0, %s424
    %s442 = sphi 0, %s442
    %s444 = sphi 0, %s442
    %s445 = sphi 0, %s444
    %s459 = sphi 0, %s445
    %s463 = sphi 0, %s463
    %s465 = sphi 0, %s463
    %s466 = sphi 0, %s465
    %s480 = sphi 0, %s466
    %s484 = sphi 0, %s484
    %s486 = sphi 0, %s484
    %s487 = sphi 0, %s486
    %s501 = sphi 0, %s487
    %s505 = sphi 0, %s505
    %s507 = sphi 0, %s505
    %s508 = sphi 0, %s507
    %s522 = sphi 0, %s508
    %s526 = sphi 0, %s526
    %s528 = sphi 0, %s526
    %s529 = sphi 0, %s528
    %s543 = sphi 0, %s529
    %s549 = sphi 0, %s551
    %s552 = sphi 0, %s549
    %s553 = sphi 0, %s552
    %s569 = sphi 0, %s553
  $region4: #{vit1d_forward.1} parent=0 // loop_header_branch
    %33 = sbr.rel (%p31) target = $region8
  $region5: #{vit1d_forward.1} parent=0 // loop_body
    %s35 = ssub.s32 %s30, 1
    %s36 = ssub.s32 %s30, 2
    %s37 = sadd.s32 %s30, 1
    %s38 = ssub.s32 %s30, %s37
    %p39 = scmp.eq.s32.totalorder %s38, 0
    %s41 = sadd.s32 %s40, 1
    %s42 = scalar_select %p39, %s40, %s41
    %p45 = pneg %p39
    %p46 = scmp.eq.s32.totalorder %s30, 1
    %p47 = por %p45, %p46
    %p48 = scmp.ne.s32.totalorder %s40, %s43
    %p49 = scmp.eq.s32.totalorder %s30, 0
    %p50 = por %p48, %p49
    %p51 = scmp.ne.s32.totalorder %s40, %s43
    %p52 = scmp.eq.s32.totalorder %s35, 1
    %p53 = por %p51, %p52
    %p54 = scmp.ne.s32.totalorder %s43, %s44
    %p55 = scmp.eq.s32.totalorder %s35, 0
    %p56 = por %p54, %p55
    %p57 = scmp.ne.s32.totalorder %s43, %s44
    %p58 = scmp.eq.s32.totalorder %s36, 1
    %p59 = por %p57, %p58
    %p61 = scmp.ne.s32.totalorder %s44, %s60
    %p62 = scmp.eq.s32.totalorder %s36, 0
    %p63 = por %p61, %p62
    %s65 = sadd.s32 %s64, 1
    %p68 = scmp.eq.s32.totalorder %s30, 1
    %p69 = scmp.ne.s32.totalorder %s64, %s66
    %p70 = scmp.eq.s32.totalorder %s30, 0
    %p71 = por %p69, %p70
    %p72 = scmp.ne.s32.totalorder %s64, %s66
    %p73 = scmp.eq.s32.totalorder %s35, 1
    %p74 = por %p72, %p73
    %p75 = scmp.ne.s32.totalorder %s66, %s67
    %p76 = scmp.eq.s32.totalorder %s35, 0
    %p77 = por %p75, %p76
    %p78 = scmp.ne.s32.totalorder %s66, %s67
    %p79 = scmp.eq.s32.totalorder %s36, 1
    %p80 = por %p78, %p79
    %p82 = scmp.ne.s32.totalorder %s67, %s81
    %p83 = scmp.eq.s32.totalorder %s36, 0
    %p84 = por %p82, %p83
    %s86 = sadd.s32 %s85, 1
    %p89 = scmp.eq.s32.totalorder %s30, 1
    %p90 = scmp.ne.s32.totalorder %s85, %s87
    %p91 = scmp.eq.s32.totalorder %s30, 0
    %p92 = por %p90, %p91
    %p93 = scmp.ne.s32.totalorder %s85, %s87
    %p94 = scmp.eq.s32.totalorder %s35, 1
    %p95 = por %p93, %p94
    %p96 = scmp.ne.s32.totalorder %s87, %s88
    %p97 = scmp.eq.s32.totalorder %s35, 0
    %p98 = por %p96, %p97
    %p99 = scmp.ne.s32.totalorder %s87, %s88
    %p100 = scmp.eq.s32.totalorder %s36, 1
    %p101 = por %p99, %p100
    %p103 = scmp.ne.s32.totalorder %s88, %s102
    %p104 = scmp.eq.s32.totalorder %s36, 0
    %p105 = por %p103, %p104
    %s107 = sadd.s32 %s106, 1
    %p110 = scmp.eq.s32.totalorder %s30, 1
    %p111 = scmp.ne.s32.totalorder %s106, %s108
    %p112 = scmp.eq.s32.totalorder %s30, 0
    %p113 = por %p111, %p112
    %p114 = scmp.ne.s32.totalorder %s106, %s108
    %p115 = scmp.eq.s32.totalorder %s35, 1
    %p116 = por %p114, %p115
    %p117 = scmp.ne.s32.totalorder %s108, %s109
    %p118 = scmp.eq.s32.totalorder %s35, 0
    %p119 = por %p117, %p118
    %p120 = scmp.ne.s32.totalorder %s108, %s109
    %p121 = scmp.eq.s32.totalorder %s36, 1
    %p122 = por %p120, %p121
    %p124 = scmp.ne.s32.totalorder %s109, %s123
    %p125 = scmp.eq.s32.totalorder %s36, 0
    %p126 = por %p124, %p125
    %s128 = sadd.s32 %s127, 1
    %p131 = scmp.eq.s32.totalorder %s30, 1
    %p132 = scmp.ne.s32.totalorder %s127, %s129
    %p133 = scmp.eq.s32.totalorder %s30, 0
    %p134 = por %p132, %p133
    %p135 = scmp.ne.s32.totalorder %s127, %s129
    %p136 = scmp.eq.s32.totalorder %s35, 1
    %p137 = por %p135, %p136
    %p138 = scmp.ne.s32.totalorder %s129, %s130
    %p139 = scmp.eq.s32.totalorder %s35, 0
    %p140 = por %p138, %p139
    %p141 = scmp.ne.s32.totalorder %s129, %s130
    %p142 = scmp.eq.s32.totalorder %s36, 1
    %p143 = por %p141, %p142
    %p145 = scmp.ne.s32.totalorder %s130, %s144
    %p146 = scmp.eq.s32.totalorder %s36, 0
    %p147 = por %p145, %p146
    %s149 = sadd.s32 %s148, 1
    %p152 = scmp.eq.s32.totalorder %s30, 1
    %p153 = scmp.ne.s32.totalorder %s148, %s150
    %p154 = scmp.eq.s32.totalorder %s30, 0
    %p155 = por %p153, %p154
    %p156 = scmp.ne.s32.totalorder %s148, %s150
    %p157 = scmp.eq.s32.totalorder %s35, 1
    %p158 = por %p156, %p157
    %p159 = scmp.ne.s32.totalorder %s150, %s151
    %p160 = scmp.eq.s32.totalorder %s35, 0
    %p161 = por %p159, %p160
    %p162 = scmp.ne.s32.totalorder %s150, %s151
    %p163 = scmp.eq.s32.totalorder %s36, 1
    %p164 = por %p162, %p163
    %p166 = scmp.ne.s32.totalorder %s151, %s165
    %p167 = scmp.eq.s32.totalorder %s36, 0
    %p168 = por %p166, %p167
    %s170 = sadd.s32 %s169, 1
    %p173 = scmp.eq.s32.totalorder %s30, 1
    %p174 = scmp.ne.s32.totalorder %s169, %s171
    %p175 = scmp.eq.s32.totalorder %s30, 0
    %p176 = por %p174, %p175
    %p177 = scmp.ne.s32.totalorder %s169, %s171
    %p178 = scmp.eq.s32.totalorder %s35, 1
    %p179 = por %p177, %p178
    %p180 = scmp.ne.s32.totalorder %s171, %s172
    %p181 = scmp.eq.s32.totalorder %s35, 0
    %p182 = por %p180, %p181
    %p183 = scmp.ne.s32.totalorder %s171, %s172
    %p184 = scmp.eq.s32.totalorder %s36, 1
    %p185 = por %p183, %p184
    %p187 = scmp.ne.s32.totalorder %s172, %s186
    %p188 = scmp.eq.s32.totalorder %s36, 0
    %p189 = por %p187, %p188
    %s191 = sadd.s32 %s190, 1
    %p194 = scmp.eq.s32.totalorder %s30, 1
    %p195 = scmp.ne.s32.totalorder %s190, %s192
    %p196 = scmp.eq.s32.totalorder %s30, 0
    %p197 = por %p195, %p196
    %p198 = scmp.ne.s32.totalorder %s190, %s192
    %p199 = scmp.eq.s32.totalorder %s35, 1
    %p200 = por %p198, %p199
    %p201 = scmp.ne.s32.totalorder %s192, %s193
    %p202 = scmp.eq.s32.totalorder %s35, 0
    %p203 = por %p201, %p202
    %p204 = scmp.ne.s32.totalorder %s192, %s193
    %p205 = scmp.eq.s32.totalorder %s36, 1
    %p206 = por %p204, %p205
    %p208 = scmp.ne.s32.totalorder %s193, %s207
    %p209 = scmp.eq.s32.totalorder %s36, 0
    %p210 = por %p208, %p209
    %s212 = sadd.s32 %s211, 1
    %p215 = scmp.eq.s32.totalorder %s30, 1
    %p216 = scmp.ne.s32.totalorder %s211, %s213
    %p217 = scmp.eq.s32.totalorder %s30, 0
    %p218 = por %p216, %p217
    %p219 = scmp.ne.s32.totalorder %s211, %s213
    %p220 = scmp.eq.s32.totalorder %s35, 1
    %p221 = por %p219, %p220
    %p222 = scmp.ne.s32.totalorder %s213, %s214
    %p223 = scmp.eq.s32.totalorder %s35, 0
    %p224 = por %p222, %p223
    %p225 = scmp.ne.s32.totalorder %s213, %s214
    %p226 = scmp.eq.s32.totalorder %s36, 1
    %p227 = por %p225, %p226
    %p229 = scmp.ne.s32.totalorder %s214, %s228
    %p230 = scmp.eq.s32.totalorder %s36, 0
    %p231 = por %p229, %p230
    %s233 = sadd.s32 %s232, 1
    %p236 = scmp.eq.s32.totalorder %s30, 1
    %p237 = scmp.ne.s32.totalorder %s232, %s234
    %p238 = scmp.eq.s32.totalorder %s30, 0
    %p239 = por %p237, %p238
    %p240 = scmp.ne.s32.totalorder %s232, %s234
    %p241 = scmp.eq.s32.totalorder %s35, 1
    %p242 = por %p240, %p241
    %p243 = scmp.ne.s32.totalorder %s234, %s235
    %p244 = scmp.eq.s32.totalorder %s35, 0
    %p245 = por %p243, %p244
    %p246 = scmp.ne.s32.totalorder %s234, %s235
    %p247 = scmp.eq.s32.totalorder %s36, 1
    %p248 = por %p246, %p247
    %p250 = scmp.ne.s32.totalorder %s235, %s249
    %p251 = scmp.eq.s32.totalorder %s36, 0
    %p252 = por %p250, %p251
    %s254 = sadd.s32 %s253, 1
    %p257 = scmp.eq.s32.totalorder %s30, 1
    %p258 = scmp.ne.s32.totalorder %s253, %s255
    %p259 = scmp.eq.s32.totalorder %s30, 0
    %p260 = por %p258, %p259
    %p261 = scmp.ne.s32.totalorder %s253, %s255
    %p262 = scmp.eq.s32.totalorder %s35, 1
    %p263 = por %p261, %p262
    %p264 = scmp.ne.s32.totalorder %s255, %s256
    %p265 = scmp.eq.s32.totalorder %s35, 0
    %p266 = por %p264, %p265
    %p267 = scmp.ne.s32.totalorder %s255, %s256
    %p268 = scmp.eq.s32.totalorder %s36, 1
    %p269 = por %p267, %p268
    %p271 = scmp.ne.s32.totalorder %s256, %s270
    %p272 = scmp.eq.s32.totalorder %s36, 0
    %p273 = por %p271, %p272
    %s275 = sadd.s32 %s274, 1
    %p278 = scmp.eq.s32.totalorder %s30, 1
    %p279 = scmp.ne.s32.totalorder %s274, %s276
    %p280 = scmp.eq.s32.totalorder %s30, 0
    %p281 = por %p279, %p280
    %p282 = scmp.ne.s32.totalorder %s274, %s276
    %p283 = scmp.eq.s32.totalorder %s35, 1
    %p284 = por %p282, %p283
    %p285 = scmp.ne.s32.totalorder %s276, %s277
    %p286 = scmp.eq.s32.totalorder %s35, 0
    %p287 = por %p285, %p286
    %p288 = scmp.ne.s32.totalorder %s276, %s277
    %p289 = scmp.eq.s32.totalorder %s36, 1
    %p290 = por %p288, %p289
    %p292 = scmp.ne.s32.totalorder %s277, %s291
    %p293 = scmp.eq.s32.totalorder %s36, 0
    %p294 = por %p292, %p293
    %s296 = sadd.s32 %s295, 1
    %p299 = scmp.eq.s32.totalorder %s30, 1
    %p300 = scmp.ne.s32.totalorder %s295, %s297
    %p301 = scmp.eq.s32.totalorder %s30, 0
    %p302 = por %p300, %p301
    %p303 = scmp.ne.s32.totalorder %s295, %s297
    %p304 = scmp.eq.s32.totalorder %s35, 1
    %p305 = por %p303, %p304
    %p306 = scmp.ne.s32.totalorder %s297, %s298
    %p307 = scmp.eq.s32.totalorder %s35, 0
    %p308 = por %p306, %p307
    %p309 = scmp.ne.s32.totalorder %s297, %s298
    %p310 = scmp.eq.s32.totalorder %s36, 1
    %p311 = por %p309, %p310
    %p313 = scmp.ne.s32.totalorder %s298, %s312
    %p314 = scmp.eq.s32.totalorder %s36, 0
    %p315 = por %p313, %p314
    %s317 = sadd.s32 %s316, 1
    %p320 = scmp.eq.s32.totalorder %s30, 1
    %p321 = scmp.ne.s32.totalorder %s316, %s318
    %p322 = scmp.eq.s32.totalorder %s30, 0
    %p323 = por %p321, %p322
    %p324 = scmp.ne.s32.totalorder %s316, %s318
    %p325 = scmp.eq.s32.totalorder %s35, 1
    %p326 = por %p324, %p325
    %p327 = scmp.ne.s32.totalorder %s318, %s319
    %p328 = scmp.eq.s32.totalorder %s35, 0
    %p329 = por %p327, %p328
    %p330 = scmp.ne.s32.totalorder %s318, %s319
    %p331 = scmp.eq.s32.totalorder %s36, 1
    %p332 = por %p330, %p331
    %p334 = scmp.ne.s32.totalorder %s319, %s333
    %p335 = scmp.eq.s32.totalorder %s36, 0
    %p336 = por %p334, %p335
    %s338 = sadd.s32 %s337, 1
    %p341 = scmp.eq.s32.totalorder %s30, 1
    %p342 = scmp.ne.s32.totalorder %s337, %s339
    %p343 = scmp.eq.s32.totalorder %s30, 0
    %p344 = por %p342, %p343
    %p345 = scmp.ne.s32.totalorder %s337, %s339
    %p346 = scmp.eq.s32.totalorder %s35, 1
    %p347 = por %p345, %p346
    %p348 = scmp.ne.s32.totalorder %s339, %s340
    %p349 = scmp.eq.s32.totalorder %s35, 0
    %p350 = por %p348, %p349
    %p351 = scmp.ne.s32.totalorder %s339, %s340
    %p352 = scmp.eq.s32.totalorder %s36, 1
    %p353 = por %p351, %p352
    %p355 = scmp.ne.s32.totalorder %s340, %s354
    %p356 = scmp.eq.s32.totalorder %s36, 0
    %p357 = por %p355, %p356
    %s359 = sadd.s32 %s358, 1
    %p362 = scmp.eq.s32.totalorder %s30, 1
    %p363 = scmp.ne.s32.totalorder %s358, %s360
    %p364 = scmp.eq.s32.totalorder %s30, 0
    %p365 = por %p363, %p364
    %p366 = scmp.ne.s32.totalorder %s358, %s360
    %p367 = scmp.eq.s32.totalorder %s35, 1
    %p368 = por %p366, %p367
    %p369 = scmp.ne.s32.totalorder %s360, %s361
    %p370 = scmp.eq.s32.totalorder %s35, 0
    %p371 = por %p369, %p370
    %p372 = scmp.ne.s32.totalorder %s360, %s361
    %p373 = scmp.eq.s32.totalorder %s36, 1
    %p374 = por %p372, %p373
    %p376 = scmp.ne.s32.totalorder %s361, %s375
    %p377 = scmp.eq.s32.totalorder %s36, 0
    %p378 = por %p376, %p377
    %s380 = sadd.s32 %s379, 1
    %p383 = scmp.eq.s32.totalorder %s30, 1
    %p384 = scmp.ne.s32.totalorder %s379, %s381
    %p385 = scmp.eq.s32.totalorder %s30, 0
    %p386 = por %p384, %p385
    %p387 = scmp.ne.s32.totalorder %s379, %s381
    %p388 = scmp.eq.s32.totalorder %s35, 1
    %p389 = por %p387, %p388
    %p390 = scmp.ne.s32.totalorder %s381, %s382
    %p391 = scmp.eq.s32.totalorder %s35, 0
    %p392 = por %p390, %p391
    %p393 = scmp.ne.s32.totalorder %s381, %s382
    %p394 = scmp.eq.s32.totalorder %s36, 1
    %p395 = por %p393, %p394
    %p397 = scmp.ne.s32.totalorder %s382, %s396
    %p398 = scmp.eq.s32.totalorder %s36, 0
    %p399 = por %p397, %p398
    %s401 = sadd.s32 %s400, 1
    %p404 = scmp.eq.s32.totalorder %s30, 1
    %p405 = scmp.ne.s32.totalorder %s400, %s402
    %p406 = scmp.eq.s32.totalorder %s30, 0
    %p407 = por %p405, %p406
    %p408 = scmp.ne.s32.totalorder %s400, %s402
    %p409 = scmp.eq.s32.totalorder %s35, 1
    %p410 = por %p408, %p409
    %p411 = scmp.ne.s32.totalorder %s402, %s403
    %p412 = scmp.eq.s32.totalorder %s35, 0
    %p413 = por %p411, %p412
    %p414 = scmp.ne.s32.totalorder %s402, %s403
    %p415 = scmp.eq.s32.totalorder %s36, 1
    %p416 = por %p414, %p415
    %p418 = scmp.ne.s32.totalorder %s403, %s417
    %p419 = scmp.eq.s32.totalorder %s36, 0
    %p420 = por %p418, %p419
    %s422 = sadd.s32 %s421, 1
    %p425 = scmp.eq.s32.totalorder %s30, 1
    %p426 = scmp.ne.s32.totalorder %s421, %s423
    %p427 = scmp.eq.s32.totalorder %s30, 0
    %p428 = por %p426, %p427
    %p429 = scmp.ne.s32.totalorder %s421, %s423
    %p430 = scmp.eq.s32.totalorder %s35, 1
    %p431 = por %p429, %p430
    %p432 = scmp.ne.s32.totalorder %s423, %s424
    %p433 = scmp.eq.s32.totalorder %s35, 0
    %p434 = por %p432, %p433
    %p435 = scmp.ne.s32.totalorder %s423, %s424
    %p436 = scmp.eq.s32.totalorder %s36, 1
    %p437 = por %p435, %p436
    %p439 = scmp.ne.s32.totalorder %s424, %s438
    %p440 = scmp.eq.s32.totalorder %s36, 0
    %p441 = por %p439, %p440
    %s443 = sadd.s32 %s442, 1
    %p446 = scmp.eq.s32.totalorder %s30, 1
    %p447 = scmp.ne.s32.totalorder %s442, %s444
    %p448 = scmp.eq.s32.totalorder %s30, 0
    %p449 = por %p447, %p448
    %p450 = scmp.ne.s32.totalorder %s442, %s444
    %p451 = scmp.eq.s32.totalorder %s35, 1
    %p452 = por %p450, %p451
    %p453 = scmp.ne.s32.totalorder %s444, %s445
    %p454 = scmp.eq.s32.totalorder %s35, 0
    %p455 = por %p453, %p454
    %p456 = scmp.ne.s32.totalorder %s444, %s445
    %p457 = scmp.eq.s32.totalorder %s36, 1
    %p458 = por %p456, %p457
    %p460 = scmp.ne.s32.totalorder %s445, %s459
    %p461 = scmp.eq.s32.totalorder %s36, 0
    %p462 = por %p460, %p461
    %s464 = sadd.s32 %s463, 1
    %p467 = scmp.eq.s32.totalorder %s30, 1
    %p468 = scmp.ne.s32.totalorder %s463, %s465
    %p469 = scmp.eq.s32.totalorder %s30, 0
    %p470 = por %p468, %p469
    %p471 = scmp.ne.s32.totalorder %s463, %s465
    %p472 = scmp.eq.s32.totalorder %s35, 1
    %p473 = por %p471, %p472
    %p474 = scmp.ne.s32.totalorder %s465, %s466
    %p475 = scmp.eq.s32.totalorder %s35, 0
    %p476 = por %p474, %p475
    %p477 = scmp.ne.s32.totalorder %s465, %s466
    %p478 = scmp.eq.s32.totalorder %s36, 1
    %p479 = por %p477, %p478
    %p481 = scmp.ne.s32.totalorder %s466, %s480
    %p482 = scmp.eq.s32.totalorder %s36, 0
    %p483 = por %p481, %p482
    %s485 = sadd.s32 %s484, 1
    %p488 = scmp.eq.s32.totalorder %s30, 1
    %p489 = scmp.ne.s32.totalorder %s484, %s486
    %p490 = scmp.eq.s32.totalorder %s30, 0
    %p491 = por %p489, %p490
    %p492 = scmp.ne.s32.totalorder %s484, %s486
    %p493 = scmp.eq.s32.totalorder %s35, 1
    %p494 = por %p492, %p493
    %p495 = scmp.ne.s32.totalorder %s486, %s487
    %p496 = scmp.eq.s32.totalorder %s35, 0
    %p497 = por %p495, %p496
    %p498 = scmp.ne.s32.totalorder %s486, %s487
    %p499 = scmp.eq.s32.totalorder %s36, 1
    %p500 = por %p498, %p499
    %p502 = scmp.ne.s32.totalorder %s487, %s501
    %p503 = scmp.eq.s32.totalorder %s36, 0
    %p504 = por %p502, %p503
    %s506 = sadd.s32 %s505, 1
    %p509 = scmp.eq.s32.totalorder %s30, 1
    %p510 = scmp.ne.s32.totalorder %s505, %s507
    %p511 = scmp.eq.s32.totalorder %s30, 0
    %p512 = por %p510, %p511
    %p513 = scmp.ne.s32.totalorder %s505, %s507
    %p514 = scmp.eq.s32.totalorder %s35, 1
    %p515 = por %p513, %p514
    %p516 = scmp.ne.s32.totalorder %s507, %s508
    %p517 = scmp.eq.s32.totalorder %s35, 0
    %p518 = por %p516, %p517
    %p519 = scmp.ne.s32.totalorder %s507, %s508
    %p520 = scmp.eq.s32.totalorder %s36, 1
    %p521 = por %p519, %p520
    %p523 = scmp.ne.s32.totalorder %s508, %s522
    %p524 = scmp.eq.s32.totalorder %s36, 0
    %p525 = por %p523, %p524
    %s527 = sadd.s32 %s526, 1
    %p530 = scmp.eq.s32.totalorder %s30, 1
    %p531 = scmp.ne.s32.totalorder %s526, %s528
    %p532 = scmp.eq.s32.totalorder %s30, 0
    %p533 = por %p531, %p532
    %p534 = scmp.ne.s32.totalorder %s526, %s528
    %p535 = scmp.eq.s32.totalorder %s35, 1
    %p536 = por %p534, %p535
    %p537 = scmp.ne.s32.totalorder %s528, %s529
    %p538 = scmp.eq.s32.totalorder %s35, 0
    %p539 = por %p537, %p538
    %p540 = scmp.ne.s32.totalorder %s528, %s529
    %p541 = scmp.eq.s32.totalorder %s36, 1
    %p542 = por %p540, %p541
    %p544 = scmp.ne.s32.totalorder %s529, %s543
    %p545 = scmp.eq.s32.totalorder %s36, 0
    %p546 = por %p544, %p545
    %s547 = ssub.s32 %s30, %s37
    %p548 = scmp.eq.s32.totalorder %s547, 0
    %s550 = sadd.s32 %s549, 1
    %s551 = scalar_select %p548, %s549, %s550
    %p554 = pneg %p548
    %p555 = scmp.eq.s32.totalorder %s30, 1
    %p556 = por %p554, %p555
    %p557 = scmp.ne.s32.totalorder %s549, %s552
    %p558 = scmp.eq.s32.totalorder %s30, 0
    %p559 = por %p557, %p558
    %p560 = scmp.ne.s32.totalorder %s549, %s552
    %p561 = scmp.eq.s32.totalorder %s35, 1
    %p562 = por %p560, %p561
    %p563 = scmp.ne.s32.totalorder %s552, %s553
    %p564 = scmp.eq.s32.totalorder %s35, 0
    %p565 = por %p563, %p564
    %p566 = scmp.ne.s32.totalorder %s552, %s553
    %p567 = scmp.eq.s32.totalorder %s36, 1
    %p568 = por %p566, %p567
    %p570 = scmp.ne.s32.totalorder %s553, %s569
    %p571 = scmp.eq.s32.totalorder %s36, 0
    %p572 = por %p570, %p571
    %p573 = scmp.le.s32.totalorder 1, %s30
    %p574 = scmp.lt.s32.totalorder %s30, 3
    %p575 = pnand %p573, %p574
    %p576 = pneg %p575
    // Predicated region
    $region9: #{vit1d_forward.1} parent=5 // pred_check
      _
    $region10: #{vit1d_forward.1} parent=5 // pred_check_branch
      %578 = sbr.rel (%p575) target = $region12
    $region11: #{vit1d_forward.1} parent=5 // pred_region
      %s579 = ssub.s32 %s30, 1
      // Predicated region
      $region13: #{vit1d_forward.1} parent=11 // pred_check
        %p580 = pneg %p77
      $region14: #{vit1d_forward.1} parent=11 // pred_check_branch
        %582 = sbr.rel (%p580) target = $region16
      $region15: #{vit1d_forward.1} parent=11 // pred_region
        _
      $region16: #{vit1d_forward.1} parent=11 // pred_fallthru
        _
      // Predicated region
      $region17: #{vit1d_forward.1} parent=11 // pred_check
        %p583 = pneg %p98
      $region18: #{vit1d_forward.1} parent=11 // pred_check_branch
        %585 = sbr.rel (%p583) target = $region20
      $region19: #{vit1d_forward.1} parent=11 // pred_region
        _
      $region20: #{vit1d_forward.1} parent=11 // pred_fallthru
        _
      // Predicated region
      $region21: #{vit1d_forward.1} parent=11 // pred_check
        %p586 = pneg %p119
      $region22: #{vit1d_forward.1} parent=11 // pred_check_branch
        %588 = sbr.rel (%p586) target = $region24
      $region23: #{vit1d_forward.1} parent=11 // pred_region
        _
      $region24: #{vit1d_forward.1} parent=11 // pred_fallthru
        _
      // Predicated region
      $region25: #{vit1d_forward.1} parent=11 // pred_check
        %p589 = pneg %p140
      $region26: #{vit1d_forward.1} parent=11 // pred_check_branch
        %591 = sbr.rel (%p589) target = $region28
      $region27: #{vit1d_forward.1} parent=11 // pred_region
        _
      $region28: #{vit1d_forward.1} parent=11 // pred_fallthru
        _
      // Predicated region
      $region29: #{vit1d_forward.1} parent=11 // pred_check
        %p592 = pneg %p161
      $region30: #{vit1d_forward.1} parent=11 // pred_check_branch
        %594 = sbr.rel (%p592) target = $region32
      $region31: #{vit1d_forward.1} parent=11 // pred_region
        _
      $region32: #{vit1d_forward.1} parent=11 // pred_fallthru
        _
      // Predicated region
      $region33: #{vit1d_forward.1} parent=11 // pred_check
        %p595 = pneg %p182
      $region34: #{vit1d_forward.1} parent=11 // pred_check_branch
        %597 = sbr.rel (%p595) target = $region36
      $region35: #{vit1d_forward.1} parent=11 // pred_region
        _
      $region36: #{vit1d_forward.1} parent=11 // pred_fallthru
        _
      // Predicated region
      $region37: #{vit1d_forward.1} parent=11 // pred_check
        %p598 = pneg %p203
      $region38: #{vit1d_forward.1} parent=11 // pred_check_branch
        %600 = sbr.rel (%p598) target = $region40
      $region39: #{vit1d_forward.1} parent=11 // pred_region
        _
      $region40: #{vit1d_forward.1} parent=11 // pred_fallthru
        _
      // Predicated region
      $region41: #{vit1d_forward.1} parent=11 // pred_check
        %p601 = pneg %p224
      $region42: #{vit1d_forward.1} parent=11 // pred_check_branch
        %603 = sbr.rel (%p601) target = $region44
      $region43: #{vit1d_forward.1} parent=11 // pred_region
        _
      $region44: #{vit1d_forward.1} parent=11 // pred_fallthru
        _
      // Predicated region
      $region45: #{vit1d_forward.1} parent=11 // pred_check
        %p604 = pneg %p245
      $region46: #{vit1d_forward.1} parent=11 // pred_check_branch
        %606 = sbr.rel (%p604) target = $region48
      $region47: #{vit1d_forward.1} parent=11 // pred_region
        _
      $region48: #{vit1d_forward.1} parent=11 // pred_fallthru
        _
      // Predicated region
      $region49: #{vit1d_forward.1} parent=11 // pred_check
        %p607 = pneg %p266
      $region50: #{vit1d_forward.1} parent=11 // pred_check_branch
        %609 = sbr.rel (%p607) target = $region52
      $region51: #{vit1d_forward.1} parent=11 // pred_region
        _
      $region52: #{vit1d_forward.1} parent=11 // pred_fallthru
        _
      // Predicated region
      $region53: #{vit1d_forward.1} parent=11 // pred_check
        %p610 = pneg %p287
      $region54: #{vit1d_forward.1} parent=11 // pred_check_branch
        %612 = sbr.rel (%p610) target = $region56
      $region55: #{vit1d_forward.1} parent=11 // pred_region
        _
      $region56: #{vit1d_forward.1} parent=11 // pred_fallthru
        _
      // Predicated region
      $region57: #{vit1d_forward.1} parent=11 // pred_check
        %p613 = pneg %p308
      $region58: #{vit1d_forward.1} parent=11 // pred_check_branch
        %615 = sbr.rel (%p613) target = $region60
      $region59: #{vit1d_forward.1} parent=11 // pred_region
        _
      $region60: #{vit1d_forward.1} parent=11 // pred_fallthru
        _
      // Predicated region
      $region61: #{vit1d_forward.1} parent=11 // pred_check
        %p616 = pneg %p329
      $region62: #{vit1d_forward.1} parent=11 // pred_check_branch
        %618 = sbr.rel (%p616) target = $region64
      $region63: #{vit1d_forward.1} parent=11 // pred_region
        _
      $region64: #{vit1d_forward.1} parent=11 // pred_fallthru
        _
      // Predicated region
      $region65: #{vit1d_forward.1} parent=11 // pred_check
        %p619 = pneg %p350
      $region66: #{vit1d_forward.1} parent=11 // pred_check_branch
        %621 = sbr.rel (%p619) target = $region68
      $region67: #{vit1d_forward.1} parent=11 // pred_region
        _
      $region68: #{vit1d_forward.1} parent=11 // pred_fallthru
        _
      // Predicated region
      $region69: #{vit1d_forward.1} parent=11 // pred_check
        %p622 = pneg %p371
      $region70: #{vit1d_forward.1} parent=11 // pred_check_branch
        %624 = sbr.rel (%p622) target = $region72
      $region71: #{vit1d_forward.1} parent=11 // pred_region
        _
      $region72: #{vit1d_forward.1} parent=11 // pred_fallthru
        _
      // Predicated region
      $region73: #{vit1d_forward.1} parent=11 // pred_check
        %p625 = pneg %p392
      $region74: #{vit1d_forward.1} parent=11 // pred_check_branch
        %627 = sbr.rel (%p625) target = $region76
      $region75: #{vit1d_forward.1} parent=11 // pred_region
        _
      $region76: #{vit1d_forward.1} parent=11 // pred_fallthru
        _
      // Predicated region
      $region77: #{vit1d_forward.1} parent=11 // pred_check
        %p628 = pneg %p413
      $region78: #{vit1d_forward.1} parent=11 // pred_check_branch
        %630 = sbr.rel (%p628) target = $region80
      $region79: #{vit1d_forward.1} parent=11 // pred_region
        _
      $region80: #{vit1d_forward.1} parent=11 // pred_fallthru
        _
      // Predicated region
      $region81: #{vit1d_forward.1} parent=11 // pred_check
        %p631 = pneg %p434
      $region82: #{vit1d_forward.1} parent=11 // pred_check_branch
        %633 = sbr.rel (%p631) target = $region84
      $region83: #{vit1d_forward.1} parent=11 // pred_region
        _
      $region84: #{vit1d_forward.1} parent=11 // pred_fallthru
        _
      // Predicated region
      $region85: #{vit1d_forward.1} parent=11 // pred_check
        %p634 = pneg %p455
      $region86: #{vit1d_forward.1} parent=11 // pred_check_branch
        %636 = sbr.rel (%p634) target = $region88
      $region87: #{vit1d_forward.1} parent=11 // pred_region
        _
      $region88: #{vit1d_forward.1} parent=11 // pred_fallthru
        _
      // Predicated region
      $region89: #{vit1d_forward.1} parent=11 // pred_check
        %p637 = pneg %p476
      $region90: #{vit1d_forward.1} parent=11 // pred_check_branch
        %639 = sbr.rel (%p637) target = $region92
      $region91: #{vit1d_forward.1} parent=11 // pred_region
        _
      $region92: #{vit1d_forward.1} parent=11 // pred_fallthru
        _
      // Predicated region
      $region93: #{vit1d_forward.1} parent=11 // pred_check
        %p640 = pneg %p497
      $region94: #{vit1d_forward.1} parent=11 // pred_check_branch
        %642 = sbr.rel (%p640) target = $region96
      $region95: #{vit1d_forward.1} parent=11 // pred_region
        _
      $region96: #{vit1d_forward.1} parent=11 // pred_fallthru
        _
      // Predicated region
      $region97: #{vit1d_forward.1} parent=11 // pred_check
        %p643 = pneg %p518
      $region98: #{vit1d_forward.1} parent=11 // pred_check_branch
        %645 = sbr.rel (%p643) target = $region100
      $region99: #{vit1d_forward.1} parent=11 // pred_region
        _
      $region100: #{vit1d_forward.1} parent=11 // pred_fallthru
        _
      // Predicated region
      $region101: #{vit1d_forward.1} parent=11 // pred_check
        %p646 = pneg %p539
      $region102: #{vit1d_forward.1} parent=11 // pred_check_branch
        %648 = sbr.rel (%p646) target = $region104
      $region103: #{vit1d_forward.1} parent=11 // pred_region
        _
      $region104: #{vit1d_forward.1} parent=11 // pred_fallthru
        _
    $region12: #{vit1d_forward.1} parent=5 // pred_fallthru
      _
    %p649 = scmp.lt.s32.totalorder %s30, 2
    // Predicated region
    $region105: #{vit1d_forward.1} parent=5 // pred_check
      %p650 = pneg %p649
    $region106: #{vit1d_forward.1} parent=5 // pred_check_branch
      %652 = sbr.rel (%p650) target = $region108
    $region107: #{vit1d_forward.1} parent=5 // pred_region
      // Predicated region
      $region109: #{vit1d_forward.1} parent=107 // pred_check
        %p653 = pneg %p50
      $region110: #{vit1d_forward.1} parent=107 // pred_check_branch
        %655 = sbr.rel (%p653) target = $region112
      $region111: #{vit1d_forward.1} parent=107 // pred_region
        %p656 = scmp.lt.s32.totalorder %s30, 1
        %s657 = scalar_select %p656, %s30, 1
        %s658 = smul.addr %s657, 8
        %s659 = scalar_lea.vmem %s0, %s658
      $region112: #{vit1d_forward.1} parent=107 // pred_fallthru
        _
    $region108: #{vit1d_forward.1} parent=5 // pred_fallthru
      _
    %p660 = scmp.le.s32.totalorder 1, %s30
    %p661 = scmp.lt.s32.totalorder %s30, 3
    %p662 = pnand %p660, %p661
    %p663 = pneg %p662
    // Predicated region
    $region113: #{vit1d_forward.1} parent=5 // pred_check
      _
    $region114: #{vit1d_forward.1} parent=5 // pred_check_branch
      %665 = sbr.rel (%p662) target = $region116
    $region115: #{vit1d_forward.1} parent=5 // pred_region
      %s666 = ssub.s32 %s30, 1
      %p667 = scmp.lt.s32.totalorder %s35, 1
      %s668 = scalar_select %p667, %s35, 1
      %s669 = smul.addr %s668, 8
      %s670 = scalar_lea.vmem %s0, %s669
      %p671 = pneg %p56
      %p672 = pneg %p53
      %p673 = pneg %p77
      %p674 = pneg %p74
      %p675 = pneg %p98
      %p676 = pneg %p95
      %p677 = pneg %p119
      %p678 = pneg %p116
      %p679 = pneg %p140
      %p680 = pneg %p137
      %p681 = pneg %p161
      %p682 = pneg %p158
      %p683 = pneg %p182
      %p684 = pneg %p179
      %p685 = pneg %p203
      %p686 = pneg %p200
      %p687 = pneg %p224
      %p688 = pneg %p221
      %p689 = pneg %p245
      %p690 = pneg %p242
      %p691 = pneg %p266
      %p692 = pneg %p263
      %p693 = pneg %p287
      %p694 = pneg %p284
      %p695 = pneg %p308
      %p696 = pneg %p305
      %p697 = pneg %p329
      %p698 = pneg %p326
      %p699 = pneg %p350
      %p700 = pneg %p347
      %p701 = pneg %p371
      %p702 = pneg %p368
      %p703 = pneg %p392
      %p704 = pneg %p389
      %p705 = pneg %p413
      %p706 = pneg %p410
      %p707 = pneg %p434
      %p708 = pneg %p431
      %p709 = pneg %p455
      %p710 = pneg %p452
      %p711 = pneg %p476
      %p712 = pneg %p473
      %p713 = pneg %p497
      %p714 = pneg %p494
      %p715 = pneg %p518
      %p716 = pneg %p515
      %p717 = pneg %p539
      %p718 = pneg %p536
      %p719 = pneg %p565
      %p720 = pneg %p562
      %p721 = scmp.lt.s32.totalorder %s35, 1
      %s722 = scalar_select %p721, %s35, 1
      %s723 = smul.addr %s722, 2
      %s724 = scalar_lea.vmem %s24, %s723
      %p725 = scmp.lt.s32.totalorder %s35, 1
      %s726 = scalar_select %p725, %s35, 1
      %s727 = smul.addr %s726, 8
      %s728 = scalar_lea.vmem %s0, %s727
      %p729 = scmp.lt.s32.totalorder %s35, 1
      %s730 = scalar_select %p729, %s35, 1
      %s731 = smul.addr %s730, 2
      %s732 = scalar_lea.vmem %s24, %s731
      %v734 = vld [vmem:[%s728] sm:$0xff]
      %v735 = vld [vmem:[%s1] sm:$0x1]
      %v736 = vld [vmem:[%s2] sm:$0x1]
      %vm737 = vcmask 162816
      %v738 = vsel %vm737, %v734, 0.0
      %739 = vadd.xlane.f32.xlu0 %v738
      %v740 = vpop.xlane.xlu0 %739
      %v741 = vrcp.pop 20.0
      %v742 = vmul.f32 %v740, %v741
      %v743 = vsub.f32 %v734, %v742
      %v744 = vmul.f32 %v743, %v743
      %v745 = vsel %vm737, %v744, 0.0
      %746 = vadd.xlane.f32.xlu0 %v745
      %v747 = vpop.xlane.xlu0 %746
      %v748 = vmul.f32 %v747, %v741
      %v749 = vadd.f32 %v748, 1e-05
      %v750 = vrsqrt.pop %v749
      %v751 = vmul.f32 %v743, %v750
      %v753 = vlaneseq
      %v754 = vshrl.u32 %v753, 7
      %v755 = vsub.s32 0, %v754
      %v756 = vrot.slane %v735, %v755
      %v758 = vmul.f32 %v751, %v756
      %v760 = vlaneseq
      %v761 = vshrl.u32 %v760, 7
      %v762 = vsub.s32 0, %v761
      %v763 = vrot.slane %v736, %v762
      %v765 = vadd.f32 %v758, %v763
      %v766 = vpack.c.bf16 %v765, %v765
      %v767 = vld [vmem:[%s3] sm:$0xf]
      %v768 = vld [vmem:[%s3 + $0x4] sm:$0xf]
      %v769 = vld [vmem:[%s3 + $0x8] sm:$0x3]
      %v770 = vld [vmem:[%s4] sm:$0x1]
      %v772 = vlaneseq
      %v773 = vshrl.u32 %v772, 7
      %v774 = vsub.s32 0, %v773
      %v775 = vrot.slane %v770, %v774
      %v780 = vunpack.c.l.b16 %v767
      %v781 = vunpack.c.l.b16 %v768
      %v782 = vunpack.c.l.b16 %v769
      %v783 = vpack.c.b16 %v781, %v780
      %v784 = vpack.c.b16 %v782, %v782
      %v787 = vsel %vm737, %v766, 0
      %vm789 = vcmask 1041408
      %v791 = vsel %vm789, %v784, 0
      %793 = vmatprep.subr.bf16.mxu0 0
      %794 = vmatpush1.bf16.msra.mxu0 %v783
      %795 = vmatprep.subr.bf16.mxu0 0
      %796 = vmatpush1.bf16.msra.mxu0 %v791
      %797 = vmatprep.subr.bf16.mxu0 0
      %798 = vmatpush1.bf16.msra.mxu0 0
      %799 = vmatprep.subr.bf16.mxu0 0
      %800 = vmatpush1.bf16.msra.mxu0 0
      %801 = vmatprep.subr.bf16.mxu0 0
      %802 = vmatpush1.bf16.msra.mxu0 0
      %803 = vmatprep.subr.bf16.mxu0 0
      %804 = vmatpush1.bf16.msra.mxu0 0
      %805 = vmatprep.subr.bf16.mxu0 0
      %806 = vmatpush1.bf16.msra.mxu0 0
      %807 = vmatprep.subr.bf16.mxu0 0
      %808 = vmatpush1.bf16.msra.mxu0 0
      %809 = vmatprep.subr.bf16.mxu0 0
      %810 = vmatpush1.bf16.msra.mxu0 0
      %811 = vmatprep.subr.bf16.mxu0 0
      %812 = vmatpush1.bf16.msra.mxu0 0
      %813 = vmatprep.subr.bf16.mxu0 0
      %814 = vmatpush1.bf16.msra.mxu0 0
      %815 = vmatprep.subr.bf16.mxu0 0
      %816 = vmatpush1.bf16.msra.mxu0 0
      %817 = vmatprep.subr.bf16.mxu0 0
      %818 = vmatpush1.bf16.msra.mxu0 0
      %819 = vmatprep.subr.bf16.mxu0 0
      %820 = vmatpush1.bf16.msra.mxu0 0
      %821 = vmatprep.subr.bf16.mxu0 0
      %822 = vmatpush1.bf16.msra.mxu0 0
      %823 = vmatprep.subr.bf16.mxu0 0
      %824 = vmatpush1.bf16.msra.mxu0 0
      %825 = vmatprep.mubr.bf16.mxu0 0
      %826 = vmatmul.mubr.bf16.gmra.mrb[0].mxu0 %v787
      %v827 = vpop.f32.mrb[0].mxu0
      %v828 = vadd.f32 %v775, %v827
      %v829 = vpop.f32.mrb[0].mxu0
      %v830 = vpop.f32.mrb[0].mxu0
      %v831 = vpop.f32.mrb[0].mxu0
      %832 = vdwg.mxu0
      %v833 = vld [vmem:[%s5] sm:$0x1]
      %v834 = vld [vmem:[%s6] sm:$0x1]
      %vm835 = vcmask 523264
      %v836 = vsel %vm835, %v828, 0.0
      %837 = vadd.xlane.f32.xlu0 %v836
      %v838 = vpop.xlane.xlu0 %837
      %v839 = vrcp.pop 64.0
      %v840 = vmul.f32 %v838, %v839
      %v841 = vsub.f32 %v828, %v840
      %v842 = vmul.f32 %v841, %v841
      %v843 = vsel %vm835, %v842, 0.0
      %844 = vadd.xlane.f32.xlu0 %v843
      %v845 = vpop.xlane.xlu0 %844
      %v846 = vmul.f32 %v845, %v839
      %v847 = vadd.f32 %v846, 1e-05
      %v848 = vrsqrt.pop %v847
      %v849 = vmul.f32 %v841, %v848
      %v851 = vlaneseq
      %v852 = vshrl.u32 %v851, 7
      %v853 = vsub.s32 0, %v852
      %v854 = vrot.slane %v833, %v853
      %v856 = vmul.f32 %v849, %v854
      %v858 = vlaneseq
      %v859 = vshrl.u32 %v858, 7
      %v860 = vsub.s32 0, %v859
      %v861 = vrot.slane %v834, %v860
      %v863 = vadd.f32 %v856, %v861
      %v864 = vld [vmem:[%s7] sm:$0x1]
      %v866 = vrot.slane %v863, 7
      %vm868 = vcmask 1040384
      %v869 = vsel %vm868, %v864, %v866
      %v870 = vld [vmem:[%s8] sm:$0xff]
      %v871 = vld [vmem:[%s8 + $0x8] sm:$0x1]
      %v872 = vadd.f32 %v869, %v870
      %v873 = vadd.f32 %v866, %v871
      %v874 = vld [vmem:[%s9] sm:$0x1]
      %v875 = vld [vmem:[%s10] sm:$0x1]
      %v876 = vsel %vm835, %v872, 0.0
      %877 = vadd.xlane.f32.xlu0 %v876
      %v878 = vpop.xlane.xlu0 %877
      %vm879 = vcmask 516096
      %v880 = vsel %vm879, %v873, 0.0
      %881 = vadd.xlane.f32.xlu0 %v880
      %v882 = vpop.xlane.xlu0 %881
      %v883 = vmul.f32 %v878, %v839
      %v884 = vmul.f32 %v882, %v839
      %v885 = vsub.f32 %v872, %v883
      %v886 = vsub.f32 %v873, %v884
      %v887 = vmul.f32 %v885, %v885
      %v888 = vmul.f32 %v886, %v886
      %v889 = vsel %vm835, %v887, 0.0
      %890 = vadd.xlane.f32.xlu0 %v889
      %v891 = vpop.xlane.xlu0 %890
      %v892 = vsel %vm879, %v888, 0.0
      %893 = vadd.xlane.f32.xlu0 %v892
      %v894 = vpop.xlane.xlu0 %893
      %v895 = vmul.f32 %v891, %v839
      %v896 = vmul.f32 %v894, %v839
      %v897 = vadd.f32 %v895, 1e-05
      %v898 = vadd.f32 %v896, 1e-05
      %v899 = vrsqrt.pop %v897
      %v900 = vrsqrt.pop %v898
      %v901 = vmul.f32 %v885, %v899
      %v902 = vmul.f32 %v886, %v900
      %v904 = vlaneseq
      %v905 = vshrl.u32 %v904, 7
      %v906 = vsub.s32 0, %v905
      %v907 = vrot.slane %v874, %v906
      %v909 = vmul.f32 %v901, %v907
      %v910 = vmul.f32 %v902, %v907
      %v912 = vlaneseq
      %v913 = vshrl.u32 %v912, 7
      %v914 = vsub.s32 0, %v913
      %v915 = vrot.slane %v875, %v914
      %v917 = vadd.f32 %v909, %v915
      %v918 = vadd.f32 %v910, %v915
      %v919 = vpack.c.bf16 %v918, %v917
      %v920 = vld [vmem:[%s11] sm:$0xf]
      %v921 = vld [vmem:[%s11 + $0x4] sm:$0xf]
      %v922 = vld [vmem:[%s11 + $0x8] sm:$0xf]
      %v923 = vld [vmem:[%s11 + $0xc] sm:$0xf]
      %v924 = vld [vmem:[%s11 + $0x10] sm:$0xf]
      %v925 = vld [vmem:[%s11 + $0x14] sm:$0xf]
      %v926 = vld [vmem:[%s11 + $0x18] sm:$0xf]
      %v927 = vld [vmem:[%s11 + $0x1c] sm:$0xf]
      %v928 = vld [vmem:[%s11 + $0x20] sm:$0xf]
      %v929 = vld [vmem:[%s11 + $0x24] sm:$0xf]
      %v930 = vld [vmem:[%s11 + $0x28] sm:$0xf]
      %v931 = vld [vmem:[%s11 + $0x2c] sm:$0xf]
      %v932 = vld [vmem:[%s11 + $0x30] sm:$0xf]
      %v933 = vld [vmem:[%s11 + $0x34] sm:$0xf]
      %v934 = vld [vmem:[%s11 + $0x38] sm:$0xf]
      %v935 = vld [vmem:[%s11 + $0x3c] sm:$0xf]
      %v936 = vld [vmem:[%s11 + $0x40] sm:$0xf]
      %v937 = vld [vmem:[%s11 + $0x44] sm:$0xf]
      %v938 = vld [vmem:[%s11 + $0x48] sm:$0xf]
      %v939 = vld [vmem:[%s11 + $0x4c] sm:$0xf]
      %v940 = vld [vmem:[%s11 + $0x50] sm:$0xf]
      %v941 = vld [vmem:[%s11 + $0x54] sm:$0xf]
      %v942 = vld [vmem:[%s11 + $0x58] sm:$0xf]
      %v943 = vld [vmem:[%s11 + $0x5c] sm:$0xf]
      %v944 = vld [vmem:[%s11 + $0x60] sm:$0xf]
      %v945 = vld [vmem:[%s11 + $0x64] sm:$0xf]
      %v946 = vld [vmem:[%s11 + $0x68] sm:$0xf]
      %v947 = vld [vmem:[%s11 + $0x6c] sm:$0xf]
      %v948 = vld [vmem:[%s11 + $0x70] sm:$0xf]
      %v949 = vld [vmem:[%s11 + $0x74] sm:$0xf]
      %v950 = vld [vmem:[%s11 + $0x78] sm:$0xf]
      %v951 = vld [vmem:[%s11 + $0x7c] sm:$0xf]
      %v952 = vld [vmem:[%s11 + $0x80] sm:$0xf]
      %v953 = vld [vmem:[%s11 + $0x84] sm:$0xf]
      %v954 = vld [vmem:[%s11 + $0x88] sm:$0xf]
      %v955 = vld [vmem:[%s11 + $0x8c] sm:$0xf]
      %v956 = vld [vmem:[%s11 + $0x90] sm:$0xf]
      %v957 = vld [vmem:[%s11 + $0x94] sm:$0xf]
      %v958 = vld [vmem:[%s11 + $0x98] sm:$0xf]
      %v959 = vld [vmem:[%s11 + $0x9c] sm:$0xf]
      %v960 = vld [vmem:[%s11 + $0xa0] sm:$0xf]
      %v961 = vld [vmem:[%s11 + $0xa4] sm:$0xf]
      %v962 = vld [vmem:[%s11 + $0xa8] sm:$0xf]
      %v963 = vld [vmem:[%s11 + $0xac] sm:$0xf]
      %v964 = vld [vmem:[%s11 + $0xb0] sm:$0xf]
      %v965 = vld [vmem:[%s11 + $0xb4] sm:$0xf]
      %v966 = vld [vmem:[%s11 + $0xb8] sm:$0xf]
      %v967 = vld [vmem:[%s11 + $0xbc] sm:$0xf]
      %v976 = vunpack.c.l.b16 %v920
      %v977 = vunpack.c.l.b16 %v921
      %v978 = vunpack.c.l.b16 %v922
      %v979 = vunpack.c.l.b16 %v923
      %v980 = vunpack.c.l.b16 %v924
      %v981 = vunpack.c.l.b16 %v925
      %v982 = vunpack.c.l.b16 %v926
      %v983 = vunpack.c.l.b16 %v927
      %v984 = vpack.c.b16 %v977, %v976
      %v985 = vpack.c.b16 %v979, %v978
      %v986 = vpack.c.b16 %v981, %v980
      %v987 = vpack.c.b16 %v983, %v982
      %v993 = vsel %vm835, %v919, 0
      %995 = vmatprep.subr.bf16.mxu0 0
      %996 = vmatpush1.bf16.msra.mxu0 %v984
      %997 = vmatprep.subr.bf16.mxu0 0
      %998 = vmatpush1.bf16.msra.mxu0 %v985
      %999 = vmatprep.subr.bf16.mxu0 0
      %1000 = vmatpush1.bf16.msra.mxu0 %v986
      %1001 = vmatprep.subr.bf16.mxu0 0
      %1002 = vmatpush1.bf16.msra.mxu0 %v987
      %1003 = vmatprep.subr.bf16.mxu0 0
      %1004 = vmatpush1.bf16.msra.mxu0 0
      %1005 = vmatprep.subr.bf16.mxu0 0
      %1006 = vmatpush1.bf16.msra.mxu0 0
      %1007 = vmatprep.subr.bf16.mxu0 0
      %1008 = vmatpush1.bf16.msra.mxu0 0
      %1009 = vmatprep.subr.bf16.mxu0 0
      %1010 = vmatpush1.bf16.msra.mxu0 0
      %1011 = vmatprep.subr.bf16.mxu0 0
      %1012 = vmatpush1.bf16.msra.mxu0 0
      %1013 = vmatprep.subr.bf16.mxu0 0
      %1014 = vmatpush1.bf16.msra.mxu0 0
      %1015 = vmatprep.subr.bf16.mxu0 0
      %1016 = vmatpush1.bf16.msra.mxu0 0
      %1017 = vmatprep.subr.bf16.mxu0 0
      %1018 = vmatpush1.bf16.msra.mxu0 0
      %1019 = vmatprep.subr.bf16.mxu0 0
      %1020 = vmatpush1.bf16.msra.mxu0 0
      %1021 = vmatprep.subr.bf16.mxu0 0
      %1022 = vmatpush1.bf16.msra.mxu0 0
      %1023 = vmatprep.subr.bf16.mxu0 0
      %1024 = vmatpush1.bf16.msra.mxu0 0
      %1025 = vmatprep.subr.bf16.mxu0 0
      %1026 = vmatpush1.bf16.msra.mxu0 0
      %1027 = vmatprep.mubr.bf16.mxu0 0
      %1028 = vmatmul.mubr.bf16.gmra.mrb[0].mxu0 %v993
      %v1029 = vpop.f32.mrb[0].mxu0
      %v1030 = vadd.f32 0.0, %v1029
      %v1031 = vpop.f32.mrb[0].mxu0
      %v1032 = vpop.f32.mrb[0].mxu0
      %v1033 = vadd.f32 0.0, %v1032
      %v1034 = vpop.f32.mrb[0].mxu0
      %1035 = vdwg.mxu0
      %v1044 = vunpack.c.l.b16 %v928
      %v1045 = vunpack.c.l.b16 %v929
      %v1046 = vunpack.c.l.b16 %v930
      %v1047 = vunpack.c.l.b16 %v931
      %v1048 = vunpack.c.l.b16 %v932
      %v1049 = vunpack.c.l.b16 %v933
      %v1050 = vunpack.c.l.b16 %v934
      %v1051 = vunpack.c.l.b16 %v935
      %v1052 = vpack.c.b16 %v1045, %v1044
      %v1053 = vpack.c.b16 %v1047, %v1046
      %v1054 = vpack.c.b16 %v1049, %v1048
      %v1055 = vpack.c.b16 %v1051, %v1050
      %1060 = vmatprep.subr.bf16.mxu0 0
      %1061 = vmatpush1.bf16.msra.mxu0 %v1052
      %1062 = vmatprep.subr.bf16.mxu0 0
      %1063 = vmatpush1.bf16.msra.mxu0 %v1053
      %1064 = vmatprep.subr.bf16.mxu0 0
      %1065 = vmatpush1.bf16.msra.mxu0 %v1054
      %1066 = vmatprep.subr.bf16.mxu0 0
      %1067 = vmatpush1.bf16.msra.mxu0 %v1055
      %1068 = vmatprep.subr.bf16.mxu0 0
      %1069 = vmatpush1.bf16.msra.mxu0 0
      %1070 = vmatprep.subr.bf16.mxu0 0
      %1071 = vmatpush1.bf16.msra.mxu0 0
      %1072 = vmatprep.subr.bf16.mxu0 0
      %1073 = vmatpush1.bf16.msra.mxu0 0
      %1074 = vmatprep.subr.bf16.mxu0 0
      %1075 = vmatpush1.bf16.msra.mxu0 0
      %1076 = vmatprep.subr.bf16.mxu0 0
      %1077 = vmatpush1.bf16.msra.mxu0 0
      %1078 = vmatprep.subr.bf16.mxu0 0
      %1079 = vmatpush1.bf16.msra.mxu0 0
      %1080 = vmatprep.subr.bf16.mxu0 0
      %1081 = vmatpush1.bf16.msra.mxu0 0
      %1082 = vmatprep.subr.bf16.mxu0 0
      %1083 = vmatpush1.bf16.msra.mxu0 0
      %1084 = vmatprep.subr.bf16.mxu0 0
      %1085 = vmatpush1.bf16.msra.mxu0 0
      %1086 = vmatprep.subr.bf16.mxu0 0
      %1087 = vmatpush1.bf16.msra.mxu0 0
      %1088 = vmatprep.subr.bf16.mxu0 0
      %1089 = vmatpush1.bf16.msra.mxu0 0
      %1090 = vmatprep.subr.bf16.mxu0 0
      %1091 = vmatpush1.bf16.msra.mxu0 0
      %1092 = vmatprep.mubr.bf16.mxu0 0
      %1093 = vmatmul.mubr.bf16.gmra.mrb[0].mxu0 %v993
      %v1094 = vpop.f32.mrb[0].mxu0
      %v1095 = vadd.f32 0.0, %v1094
      %v1096 = vpop.f32.mrb[0].mxu0
      %v1097 = vpop.f32.mrb[0].mxu0
      %v1098 = vadd.f32 0.0, %v1097
      %v1099 = vpop.f32.mrb[0].mxu0
      %1100 = vdwg.mxu0
      %v1109 = vunpack.c.l.b16 %v936
      %v1110 = vunpack.c.l.b16 %v937
      %v1111 = vunpack.c.l.b16 %v938
      %v1112 = vunpack.c.l.b16 %v939
      %v1113 = vunpack.c.l.b16 %v940
      %v1114 = vunpack.c.l.b16 %v941
      %v1115 = vunpack.c.l.b16 %v942
      %v1116 = vunpack.c.l.b16 %v943
      %v1117 = vpack.c.b16 %v1110, %v1109
      %v1118 = vpack.c.b16 %v1112, %v1111
      %v1119 = vpack.c.b16 %v1114, %v1113
      %v1120 = vpack.c.b16 %v1116, %v1115
      %1125 = vmatprep.subr.bf16.mxu0 0
      %1126 = vmatpush1.bf16.msra.mxu0 %v1117
      %1127 = vmatprep.subr.bf16.mxu0 0
      %1128 = vmatpush1.bf16.msra.mxu0 %v1118
      %1129 = vmatprep.subr.bf16.mxu0 0
      %1130 = vmatpush1.bf16.msra.mxu0 %v1119
      %1131 = vmatprep.subr.bf16.mxu0 0
      %1132 = vmatpush1.bf16.msra.mxu0 %v1120
      %1133 = vmatprep.subr.bf16.mxu0 0
      %1134 = vmatpush1.bf16.msra.mxu0 0
      %1135 = vmatprep.subr.bf16.mxu0 0
      %1136 = vmatpush1.bf16.msra.mxu0 0
      %1137 = vmatprep.subr.bf16.mxu0 0
      %1138 = vmatpush1.bf16.msra.mxu0 0
      %1139 = vmatprep.subr.bf16.mxu0 0
      %1140 = vmatpush1.bf16.msra.mxu0 0
      %1141 = vmatprep.subr.bf16.mxu0 0
      %1142 = vmatpush1.bf16.msra.mxu0 0
      %1143 = vmatprep.subr.bf16.mxu0 0
      %1144 = vmatpush1.bf16.msra.mxu0 0
      %1145 = vmatprep.subr.bf16.mxu0 0
      %1146 = vmatpush1.bf16.msra.mxu0 0
      %1147 = vmatprep.subr.bf16.mxu0 0
      %1148 = vmatpush1.bf16.msra.mxu0 0
      %1149 = vmatprep.subr.bf16.mxu0 0
      %1150 = vmatpush1.bf16.msra.mxu0 0
      %1151 = vmatprep.subr.bf16.mxu0 0
      %1152 = vmatpush1.bf16.msra.mxu0 0
      %1153 = vmatprep.subr.bf16.mxu0 0
      %1154 = vmatpush1.bf16.msra.mxu0 0
      %1155 = vmatprep.subr.bf16.mxu0 0
      %1156 = vmatpush1.bf16.msra.mxu0 0
      %1157 = vmatprep.mubr.bf16.mxu0 0
      %1158 = vmatmul.mubr.bf16.gmra.mrb[0].mxu0 %v993
      %v1159 = vpop.f32.mrb[0].mxu0
      %v1160 = vadd.f32 0.0, %v1159
      %v1161 = vpop.f32.mrb[0].mxu0
      %v1162 = vpop.f32.mrb[0].mxu0
      %v1163 = vadd.f32 0.0, %v1162
      %v1164 = vpop.f32.mrb[0].mxu0
      %1165 = vdwg.mxu0
      %v1174 = vunpack.c.l.b16 %v944
      %v1175 = vunpack.c.l.b16 %v945
      %v1176 = vunpack.c.l.b16 %v946
      %v1177 = vunpack.c.l.b16 %v947
      %v1178 = vunpack.c.l.b16 %v948
      %v1179 = vunpack.c.l.b16 %v949
      %v1180 = vunpack.c.l.b16 %v950
      %v1181 = vunpack.c.l.b16 %v951
      %v1182 = vpack.c.b16 %v1175, %v1174
      %v1183 = vpack.c.b16 %v1177, %v1176
      %v1184 = vpack.c.b16 %v1179, %v1178
      %v1185 = vpack.c.b16 %v1181, %v1180
      %1190 = vmatprep.subr.bf16.mxu0 0
      %1191 = vmatpush1.bf16.msra.mxu0 %v1182
      %1192 = vmatprep.subr.bf16.mxu0 0
      %1193 = vmatpush1.bf16.msra.mxu0 %v1183
      %1194 = vmatprep.subr.bf16.mxu0 0
      %1195 = vmatpush1.bf16.msra.mxu0 %v1184
      %1196 = vmatprep.subr.bf16.mxu0 0
      %1197 = vmatpush1.bf16.msra.mxu0 %v1185
      %1198 = vmatprep.subr.bf16.mxu0 0
      %1199 = vmatpush1.bf16.msra.mxu0 0
      %1200 = vmatprep.subr.bf16.mxu0 0
      %1201 = vmatpush1.bf16.msra.mxu0 0
      %1202 = vmatprep.subr.bf16.mxu0 0
      %1203 = vmatpush1.bf16.msra.mxu0 0
      %1204 = vmatprep.subr.bf16.mxu0 0
      %1205 = vmatpush1.bf16.msra.mxu0 0
      %1206 = vmatprep.subr.bf16.mxu0 0
      %1207 = vmatpush1.bf16.msra.mxu0 0
      %1208 = vmatprep.subr.bf16.mxu0 0
      %1209 = vmatpush1.bf16.msra.mxu0 0
      %1210 = vmatprep.subr.bf16.mxu0 0
      %1211 = vmatpush1.bf16.msra.mxu0 0
      %1212 = vmatprep.subr.bf16.mxu0 0
      %1213 = vmatpush1.bf16.msra.mxu0 0
      %1214 = vmatprep.subr.bf16.mxu0 0
      %1215 = vmatpush1.bf16.msra.mxu0 0
      %1216 = vmatprep.subr.bf16.mxu0 0
      %1217 = vmatpush1.bf16.msra.mxu0 0
      %1218 = vmatprep.subr.bf16.mxu0 0
      %1219 = vmatpush1.bf16.msra.mxu0 0
      %1220 = vmatprep.subr.bf16.mxu0 0
      %1221 = vmatpush1.bf16.msra.mxu0 0
      %1222 = vmatprep.mubr.bf16.mxu0 0
      %1223 = vmatmul.mubr.bf16.gmra.mrb[0].mxu0 %v993
      %v1224 = vpop.f32.mrb[0].mxu0
      %v1225 = vadd.f32 0.0, %v1224
      %v1226 = vpop.f32.mrb[0].mxu0
      %v1227 = vpop.f32.mrb[0].mxu0
      %v1228 = vadd.f32 0.0, %v1227
      %v1229 = vpop.f32.mrb[0].mxu0
      %1230 = vdwg.mxu0
      %v1239 = vunpack.c.l.b16 %v952
      %v1240 = vunpack.c.l.b16 %v953
      %v1241 = vunpack.c.l.b16 %v954
      %v1242 = vunpack.c.l.b16 %v955
      %v1243 = vunpack.c.l.b16 %v956
      %v1244 = vunpack.c.l.b16 %v957
      %v1245 = vunpack.c.l.b16 %v958
      %v1246 = vunpack.c.l.b16 %v959
      %v1247 = vpack.c.b16 %v1240, %v1239
      %v1248 = vpack.c.b16 %v1242, %v1241
      %v1249 = vpack.c.b16 %v1244, %v1243
      %v1250 = vpack.c.b16 %v1246, %v1245
      %1255 = vmatprep.subr.bf16.mxu0 0
      %1256 = vmatpush1.bf16.msra.mxu0 %v1247
      %1257 = vmatprep.subr.bf16.mxu0 0
      %1258 = vmatpush1.bf16.msra.mxu0 %v1248
      %1259 = vmatprep.subr.bf16.mxu0 0
      %1260 = vmatpush1.bf16.msra.mxu0 %v1249
      %1261 = vmatprep.subr.bf16.mxu0 0
      %1262 = vmatpush1.bf16.msra.mxu0 %v1250
      %1263 = vmatprep.subr.bf16.mxu0 0
      %1264 = vmatpush1.bf16.msra.mxu0 0
      %1265 = vmatprep.subr.bf16.mxu0 0
      %1266 = vmatpush1.bf16.msra.mxu0 0
      %1267 = vmatprep.subr.bf16.mxu0 0
      %1268 = vmatpush1.bf16.msra.mxu0 0
      %1269 = vmatprep.subr.bf16.mxu0 0
      %1270 = vmatpush1.bf16.msra.mxu0 0
      %1271 = vmatprep.subr.bf16.mxu0 0
      %1272 = vmatpush1.bf16.msra.mxu0 0
      %1273 = vmatprep.subr.bf16.mxu0 0
      %1274 = vmatpush1.bf16.msra.mxu0 0
      %1275 = vmatprep.subr.bf16.mxu0 0
      %1276 = vmatpush1.bf16.msra.mxu0 0
      %1277 = vmatprep.subr.bf16.mxu0 0
      %1278 = vmatpush1.bf16.msra.mxu0 0
      %1279 = vmatprep.subr.bf16.mxu0 0
      %1280 = vmatpush1.bf16.msra.mxu0 0
      %1281 = vmatprep.subr.bf16.mxu0 0
      %1282 = vmatpush1.bf16.msra.mxu0 0
      %1283 = vmatprep.subr.bf16.mxu0 0
      %1284 = vmatpush1.bf16.msra.mxu0 0
      %1285 = vmatprep.subr.bf16.mxu0 0
      %1286 = vmatpush1.bf16.msra.mxu0 0
      %1287 = vmatprep.mubr.bf16.mxu0 0
      %1288 = vmatmul.mubr.bf16.gmra.mrb[0].mxu0 %v993
      %v1289 = vpop.f32.mrb[0].mxu0
      %v1290 = vadd.f32 0.0, %v1289
      %v1291 = vpop.f32.mrb[0].mxu0
      %v1292 = vpop.f32.mrb[0].mxu0
      %v1293 = vadd.f32 0.0, %v1292
      %v1294 = vpop.f32.mrb[0].mxu0
      %1295 = vdwg.mxu0
      %v1304 = vunpack.c.l.b16 %v960
      %v1305 = vunpack.c.l.b16 %v961
      %v1306 = vunpack.c.l.b16 %v962
      %v1307 = vunpack.c.l.b16 %v963
      %v1308 = vunpack.c.l.b16 %v964
      %v1309 = vunpack.c.l.b16 %v965
      %v1310 = vunpack.c.l.b16 %v966
      %v1311 = vunpack.c.l.b16 %v967
      %v1312 = vpack.c.b16 %v1305, %v1304
      %v1313 = vpack.c.b16 %v1307, %v1306
      %v1314 = vpack.c.b16 %v1309, %v1308
      %v1315 = vpack.c.b16 %v1311, %v1310
      %1320 = vmatprep.subr.bf16.mxu0 0
      %1321 = vmatpush1.bf16.msra.mxu0 %v1312
      %1322 = vmatprep.subr.bf16.mxu0 0
      %1323 = vmatpush1.bf16.msra.mxu0 %v1313
      %1324 = vmatprep.subr.bf16.mxu0 0
      %1325 = vmatpush1.bf16.msra.mxu0 %v1314
      %1326 = vmatprep.subr.bf16.mxu0 0
      %1327 = vmatpush1.bf16.msra.mxu0 %v1315
      %1328 = vmatprep.subr.bf16.mxu0 0
      %1329 = vmatpush1.bf16.msra.mxu0 0
      %1330 = vmatprep.subr.bf16.mxu0 0
      %1331 = vmatpush1.bf16.msra.mxu0 0
      %1332 = vmatprep.subr.bf16.mxu0 0
      %1333 = vmatpush1.bf16.msra.mxu0 0
      %1334 = vmatprep.subr.bf16.mxu0 0
      %1335 = vmatpush1.bf16.msra.mxu0 0
      %1336 = vmatprep.subr.bf16.mxu0 0
      %1337 = vmatpush1.bf16.msra.mxu0 0
      %1338 = vmatprep.subr.bf16.mxu0 0
      %1339 = vmatpush1.bf16.msra.mxu0 0
      %1340 = vmatprep.subr.bf16.mxu0 0
      %1341 = vmatpush1.bf16.msra.mxu0 0
      %1342 = vmatprep.subr.bf16.mxu0 0
      %1343 = vmatpush1.bf16.msra.mxu0 0
      %1344 = vmatprep.subr.bf16.mxu0 0
      %1345 = vmatpush1.bf16.msra.mxu0 0
      %1346 = vmatprep.subr.bf16.mxu0 0
      %1347 = vmatpush1.bf16.msra.mxu0 0
      %1348 = vmatprep.subr.bf16.mxu0 0
      %1349 = vmatpush1.bf16.msra.mxu0 0
      %1350 = vmatprep.subr.bf16.mxu0 0
      %1351 = vmatpush1.bf16.msra.mxu0 0
      %1352 = vmatprep.mubr.bf16.mxu0 0
      %1353 = vmatmul.mubr.bf16.gmra.mrb[0].mxu0 %v993
      %v1354 = vpop.f32.mrb[0].mxu0
      %v1355 = vadd.f32 0.0, %v1354
      %v1356 = vpop.f32.mrb[0].mxu0
      %v1357 = vpop.f32.mrb[0].mxu0
      %v1358 = vadd.f32 0.0, %v1357
      %v1359 = vpop.f32.mrb[0].mxu0
      %1360 = vdwg.mxu0
      %v1361 = vpack.c.bf16 %v1033, %v1030
      %v1362 = vpack.c.bf16 %v1098, %v1095
      %v1363 = vpack.c.bf16 %v1163, %v1160
      %v1364 = vpack.c.bf16 %v1228, %v1225
      %vm1365 = vcmask 261120
      %v1367 = vsel %vm1365, %v1361, 0
      %v1370 = vsel %vm1365, %v1363, 0
      %1372 = vmatprep.subr.bf16.mxu0 0
      %1373 = vmatpush1.bf16.xpose.msra.mxu0 %v1370
      %1374 = vmatprep.subr.bf16.mxu0 0
      %1375 = vmatpush1.bf16.xpose.msra.mxu0 0
      %1376 = vmatprep.subr.bf16.mxu0 0
      %1377 = vmatpush1.bf16.xpose.msra.mxu0 0
      %1378 = vmatprep.subr.bf16.mxu0 0
      %1379 = vmatpush1.bf16.xpose.msra.mxu0 0
      %1380 = vmatprep.subr.bf16.mxu0 0
      %1381 = vmatpush1.bf16.xpose.msra.mxu0 0
      %1382 = vmatprep.subr.bf16.mxu0 0
      %1383 = vmatpush1.bf16.xpose.msra.mxu0 0
      %1384 = vmatprep.subr.bf16.mxu0 0
      %1385 = vmatpush1.bf16.xpose.msra.mxu0 0
      %1386 = vmatprep.subr.bf16.mxu0 0
      %1387 = vmatpush1.bf16.xpose.msra.mxu0 0
      %1388 = vmatprep.subr.bf16.mxu0 0
      %1389 = vmatpush1.bf16.xpose.msra.mxu0 0
      %1390 = vmatprep.subr.bf16.mxu0 0
      %1391 = vmatpush1.bf16.xpose.msra.mxu0 0
      %1392 = vmatprep.subr.bf16.mxu0 0
      %1393 = vmatpush1.bf16.xpose.msra.mxu0 0
      %1394 = vmatprep.subr.bf16.mxu0 0
      %1395 = vmatpush1.bf16.xpose.msra.mxu0 0
      %1396 = vmatprep.subr.bf16.mxu0 0
      %1397 = vmatpush1.bf16.xpose.msra.mxu0 0
      %1398 = vmatprep.subr.bf16.mxu0 0
      %1399 = vmatpush1.bf16.xpose.msra.mxu0 0
      %1400 = vmatprep.subr.bf16.mxu0 0
      %1401 = vmatpush1.bf16.xpose.msra.mxu0 0
      %1402 = vmatprep.subr.bf16.mxu0 0
      %1403 = vmatpush1.bf16.xpose.msra.mxu0 0
      %1404 = vmatprep.mubr.bf16.mxu0 0
      %1405 = vmatmul.mubr.bf16.gmra.mrb[0].mxu0 %v1367
      %v1406 = vpop.f32.mrb[0].mxu0
      %v1407 = vadd.f32 0.0, %v1406
      %v1408 = vpop.f32.mrb[0].mxu0
      %v1409 = vpop.f32.mrb[0].mxu0
      %v1410 = vadd.f32 0.0, %v1409
      %v1411 = vpop.f32.mrb[0].mxu0
      %1412 = vdwg.mxu0
      %v1414 = vsel %vm1365, %v1362, 0
      %v1417 = vsel %vm1365, %v1364, 0
      %1419 = vmatprep.subr.bf16.mxu0 0
      %1420 = vmatpush1.bf16.xpose.msra.mxu0 %v1417
      %1421 = vmatprep.subr.bf16.mxu0 0
      %1422 = vmatpush1.bf16.xpose.msra.mxu0 0
      %1423 = vmatprep.subr.bf16.mxu0 0
      %1424 = vmatpush1.bf16.xpose.msra.mxu0 0
      %1425 = vmatprep.subr.bf16.mxu0 0
      %1426 = vmatpush1.bf16.xpose.msra.mxu0 0
      %1427 = vmatprep.subr.bf16.mxu0 0
      %1428 = vmatpush1.bf16.xpose.msra.mxu0 0
      %1429 = vmatprep.subr.bf16.mxu0 0
      %1430 = vmatpush1.bf16.xpose.msra.mxu0 0
      %1431 = vmatprep.subr.bf16.mxu0 0
      %1432 = vmatpush1.bf16.xpose.msra.mxu0 0
      %1433 = vmatprep.subr.bf16.mxu0 0
      %1434 = vmatpush1.bf16.xpose.msra.mxu0 0
      %1435 = vmatprep.subr.bf16.mxu0 0
      %1436 = vmatpush1.bf16.xpose.msra.mxu0 0
      %1437 = vmatprep.subr.bf16.mxu0 0
      %1438 = vmatpush1.bf16.xpose.msra.mxu0 0
      %1439 = vmatprep.subr.bf16.mxu0 0
      %1440 = vmatpush1.bf16.xpose.msra.mxu0 0
      %1441 = vmatprep.subr.bf16.mxu0 0
      %1442 = vmatpush1.bf16.xpose.msra.mxu0 0
      %1443 = vmatprep.subr.bf16.mxu0 0
      %1444 = vmatpush1.bf16.xpose.msra.mxu0 0
      %1445 = vmatprep.subr.bf16.mxu0 0
      %1446 = vmatpush1.bf16.xpose.msra.mxu0 0
      %1447 = vmatprep.subr.bf16.mxu0 0
      %1448 = vmatpush1.bf16.xpose.msra.mxu0 0
      %1449 = vmatprep.subr.bf16.mxu0 0
      %1450 = vmatpush1.bf16.xpose.msra.mxu0 0
      %1451 = vmatprep.mubr.bf16.mxu0 0
      %1452 = vmatmul.mubr.bf16.gmra.mrb[0].mxu0 %v1414
      %v1453 = vpop.f32.mrb[0].mxu0
      %v1454 = vadd.f32 0.0, %v1453
      %v1455 = vpop.f32.mrb[0].mxu0
      %v1456 = vpop.f32.mrb[0].mxu0
      %v1457 = vadd.f32 0.0, %v1456
      %v1458 = vpop.f32.mrb[0].mxu0
      %1459 = vdwg.mxu0
      %v1460 = vmul.f32 %v1407, 0.17677669
      %v1461 = vmul.f32 %v1410, 0.17677669
      %v1462 = vmul.f32 %v1454, 0.17677669
      %v1463 = vmul.f32 %v1457, 0.17677669
      %vm1464 = vcmask 72704
      %v1465 = vsel %vm1464, %v1460, -inf
      %1466 = vmax.xlane.f32.xlu0 %v1465
      %v1467 = vpop.xlane.xlu0 %1466
      %vm1468 = vcmask 65536
      %v1469 = vsel %vm1468, %v1461, -inf
      %1470 = vmax.xlane.f32.xlu0 %v1469
      %v1471 = vpop.xlane.xlu0 %1470
      %v1472 = vsel %vm1464, %v1462, -inf
      %1473 = vmax.xlane.f32.xlu0 %v1472
      %v1474 = vpop.xlane.xlu0 %1473
      %v1475 = vsel %vm1468, %v1463, -inf
      %1476 = vmax.xlane.f32.xlu0 %v1475
      %v1477 = vpop.xlane.xlu0 %1476
      %v1478 = vsub.f32 %v1460, %v1467
      %v1479 = vsub.f32 %v1461, %v1471
      %v1480 = vsub.f32 %v1462, %v1474
      %v1481 = vsub.f32 %v1463, %v1477
      %v1482 = vmul.f32 %v1478, 1.442695
      %v1483 = vpow.pop %v1482
      %v1484 = vmul.f32 %v1479, 1.442695
      %v1485 = vpow.pop %v1484
      %v1486 = vmul.f32 %v1480, 1.442695
      %v1487 = vpow.pop %v1486
      %v1488 = vmul.f32 %v1481, 1.442695
      %v1489 = vpow.pop %v1488
      %v1490 = vsel %vm1464, %v1483, 0.0
      %1491 = vadd.xlane.f32.xlu0 %v1490
      %v1492 = vpop.xlane.xlu0 %1491
      %v1493 = vsel %vm1468, %v1485, 0.0
      %1494 = vadd.xlane.f32.xlu0 %v1493
      %v1495 = vpop.xlane.xlu0 %1494
      %v1496 = vsel %vm1464, %v1487, 0.0
      %1497 = vadd.xlane.f32.xlu0 %v1496
      %v1498 = vpop.xlane.xlu0 %1497
      %v1499 = vsel %vm1468, %v1489, 0.0
      %1500 = vadd.xlane.f32.xlu0 %v1499
      %v1501 = vpop.xlane.xlu0 %1500
      %v1502 = vrcp.pop %v1492
      %v1503 = vrcp.pop %v1495
      %v1504 = vrcp.pop %v1498
      %v1505 = vrcp.pop %v1501
      %v1506 = vmul.f32 %v1483, %v1502
      %v1507 = vmul.f32 %v1485, %v1503
      %v1508 = vmul.f32 %v1487, %v1504
      %v1509 = vmul.f32 %v1489, %v1505
      %v1510 = vpack.c.bf16 %v1507, %v1506
      %v1511 = vpack.c.bf16 %v1509, %v1508
      %v1512 = vpack.c.bf16 %v1293, %v1290
      %v1513 = vpack.c.bf16 %v1358, %v1355
      %v1515 = vsel %vm1464, %v1510, 0
      %vm1517 = vcmask 1043456
      %vm1518 = vcmask 1044480
      %v1519 = vsel %vm1517, 4294967295, 65535
      %v1520 = vsel %vm1518, %v1519, 0
      %v1522 = vand.u32 %v1512, %v1520
      %1524 = vmatprep.subr.bf16.mxu0 0
      %1525 = vmatpush1.bf16.msra.mxu0 %v1522
      %1526 = vmatprep.subr.bf16.mxu0 0
      %1527 = vmatpush1.bf16.msra.mxu0 0
      %1528 = vmatprep.subr.bf16.mxu0 0
      %1529 = vmatpush1.bf16.msra.mxu0 0
      %1530 = vmatprep.subr.bf16.mxu0 0
      %1531 = vmatpush1.bf16.msra.mxu0 0
      %1532 = vmatprep.subr.bf16.mxu0 0
      %1533 = vmatpush1.bf16.msra.mxu0 0
      %1534 = vmatprep.subr.bf16.mxu0 0
      %1535 = vmatpush1.bf16.msra.mxu0 0
      %1536 = vmatprep.subr.bf16.mxu0 0
      %1537 = vmatpush1.bf16.msra.mxu0 0
      %1538 = vmatprep.subr.bf16.mxu0 0
      %1539 = vmatpush1.bf16.msra.mxu0 0
      %1540 = vmatprep.subr.bf16.mxu0 0
      %1541 = vmatpush1.bf16.msra.mxu0 0
      %1542 = vmatprep.subr.bf16.mxu0 0
      %1543 = vmatpush1.bf16.msra.mxu0 0
      %1544 = vmatprep.subr.bf16.mxu0 0
      %1545 = vmatpush1.bf16.msra.mxu0 0
      %1546 = vmatprep.subr.bf16.mxu0 0
      %1547 = vmatpush1.bf16.msra.mxu0 0
      %1548 = vmatprep.subr.bf16.mxu0 0
      %1549 = vmatpush1.bf16.msra.mxu0 0
      %1550 = vmatprep.subr.bf16.mxu0 0
      %1551 = vmatpush1.bf16.msra.mxu0 0
      %1552 = vmatprep.subr.bf16.mxu0 0
      %1553 = vmatpush1.bf16.msra.mxu0 0
      %1554 = vmatprep.subr.bf16.mxu0 0
      %1555 = vmatpush1.bf16.msra.mxu0 0
      %1556 = vmatprep.mubr.bf16.mxu0 0
      %1557 = vmatmul.mubr.bf16.gmra.mrb[0].mxu0 %v1515
      %v1558 = vpop.f32.mrb[0].mxu0
      %v1559 = vadd.f32 0.0, %v1558
      %v1560 = vpop.f32.mrb[0].mxu0
      %v1561 = vpop.f32.mrb[0].mxu0
      %v1562 = vadd.f32 0.0, %v1561
      %v1563 = vpop.f32.mrb[0].mxu0
      %1564 = vdwg.mxu0
      %v1566 = vsel %vm1464, %v1511, 0
      %v1569 = vand.u32 %v1513, %v1520
      %1571 = vmatprep.subr.bf16.mxu0 0
      %1572 = vmatpush1.bf16.msra.mxu0 %v1569
      %1573 = vmatprep.subr.bf16.mxu0 0
      %1574 = vmatpush1.bf16.msra.mxu0 0
      %1575 = vmatprep.subr.bf16.mxu0 0
      %1576 = vmatpush1.bf16.msra.mxu0 0
      %1577 = vmatprep.subr.bf16.mxu0 0
      %1578 = vmatpush1.bf16.msra.mxu0 0
      %1579 = vmatprep.subr.bf16.mxu0 0
      %1580 = vmatpush1.bf16.msra.mxu0 0
      %1581 = vmatprep.subr.bf16.mxu0 0
      %1582 = vmatpush1.bf16.msra.mxu0 0
      %1583 = vmatprep.subr.bf16.mxu0 0
      %1584 = vmatpush1.bf16.msra.mxu0 0
      %1585 = vmatprep.subr.bf16.mxu0 0
      %1586 = vmatpush1.bf16.msra.mxu0 0
      %1587 = vmatprep.subr.bf16.mxu0 0
      %1588 = vmatpush1.bf16.msra.mxu0 0
      %1589 = vmatprep.subr.bf16.mxu0 0
      %1590 = vmatpush1.bf16.msra.mxu0 0
      %1591 = vmatprep.subr.bf16.mxu0 0
      %1592 = vmatpush1.bf16.msra.mxu0 0
      %1593 = vmatprep.subr.bf16.mxu0 0
      %1594 = vmatpush1.bf16.msra.mxu0 0
      %1595 = vmatprep.subr.bf16.mxu0 0
      %1596 = vmatpush1.bf16.msra.mxu0 0
      %1597 = vmatprep.subr.bf16.mxu0 0
      %1598 = vmatpush1.bf16.msra.mxu0 0
      %1599 = vmatprep.subr.bf16.mxu0 0
      %1600 = vmatpush1.bf16.msra.mxu0 0
      %1601 = vmatprep.subr.bf16.mxu0 0
      %1602 = vmatpush1.bf16.msra.mxu0 0
      %1603 = vmatprep.mubr.bf16.mxu0 0
      %1604 = vmatmul.mubr.bf16.gmra.mrb[0].mxu0 %v1566
      %v1605 = vpop.f32.mrb[0].mxu0
      %v1606 = vadd.f32 0.0, %v1605
      %v1607 = vpop.f32.mrb[0].mxu0
      %v1608 = vpop.f32.mrb[0].mxu0
      %v1609 = vadd.f32 0.0, %v1608
      %v1610 = vpop.f32.mrb[0].mxu0
      %1611 = vdwg.mxu0
      %v1612 = vpack.c.bf16 %v1562, %v1559
      %v1613 = vpack.c.bf16 %v1609, %v1606
      %v1614 = vld [vmem:[%s12] sm:$0xf]
      %v1615 = vld [vmem:[%s12 + $0x4] sm:$0xf]
      %v1616 = vld [vmem:[%s12 + $0x8] sm:$0xf]
      %v1617 = vld [vmem:[%s12 + $0xc] sm:$0xf]
      %v1618 = vld [vmem:[%s12 + $0x10] sm:$0xf]
      %v1619 = vld [vmem:[%s12 + $0x14] sm:$0xf]
      %v1620 = vld [vmem:[%s12 + $0x18] sm:$0xf]
      %v1621 = vld [vmem:[%s12 + $0x1c] sm:$0xf]
      %v1626 = vunpack.c.l.b16 %v1614
      %v1627 = vunpack.c.l.b16 %v1615
      %v1628 = vunpack.c.l.b16 %v1616
      %v1629 = vunpack.c.l.b16 %v1617
      %v1630 = vpack.c.b16 %v1627, %v1626
      %v1631 = vpack.c.b16 %v1629, %v1628
      %v1635 = vsel %vm1365, %v1612, 0
      %1637 = vmatprep.subr.bf16.mxu0 0
      %1638 = vmatpush1.bf16.msra.mxu0 %v1630
      %1639 = vmatprep.subr.bf16.mxu0 0
      %1640 = vmatpush1.bf16.msra.mxu0 %v1631
      %1641 = vmatprep.subr.bf16.mxu0 0
      %1642 = vmatpush1.bf16.msra.mxu0 0
      %1643 = vmatprep.subr.bf16.mxu0 0
      %1644 = vmatpush1.bf16.msra.mxu0 0
      %1645 = vmatprep.subr.bf16.mxu0 0
      %1646 = vmatpush1.bf16.msra.mxu0 0
      %1647 = vmatprep.subr.bf16.mxu0 0
      %1648 = vmatpush1.bf16.msra.mxu0 0
      %1649 = vmatprep.subr.bf16.mxu0 0
      %1650 = vmatpush1.bf16.msra.mxu0 0
      %1651 = vmatprep.subr.bf16.mxu0 0
      %1652 = vmatpush1.bf16.msra.mxu0 0
      %1653 = vmatprep.subr.bf16.mxu0 0
      %1654 = vmatpush1.bf16.msra.mxu0 0
      %1655 = vmatprep.subr.bf16.mxu0 0
      %1656 = vmatpush1.bf16.msra.mxu0 0
      %1657 = vmatprep.subr.bf16.mxu0 0
      %1658 = vmatpush1.bf16.msra.mxu0 0
      %1659 = vmatprep.subr.bf16.mxu0 0
      %1660 = vmatpush1.bf16.msra.mxu0 0
      %1661 = vmatprep.subr.bf16.mxu0 0
      %1662 = vmatpush1.bf16.msra.mxu0 0
      %1663 = vmatprep.subr.bf16.mxu0 0
      %1664 = vmatpush1.bf16.msra.mxu0 0
      %1665 = vmatprep.subr.bf16.mxu0 0
      %1666 = vmatpush1.bf16.msra.mxu0 0
      %1667 = vmatprep.subr.bf16.mxu0 0
      %1668 = vmatpush1.bf16.msra.mxu0 0
      %1669 = vmatprep.mubr.bf16.mxu0 0
      %1670 = vmatmul.mubr.bf16.gmra.mrb[0].mxu0 %v1635
      %v1671 = vpop.f32.mrb[0].mxu0
      %v1672 = vadd.f32 0.0, %v1671
      %v1673 = vpop.f32.mrb[0].mxu0
      %v1674 = vpop.f32.mrb[0].mxu0
      %v1675 = vadd.f32 0.0, %v1674
      %v1676 = vpop.f32.mrb[0].mxu0
      %1677 = vdwg.mxu0
      %v1682 = vunpack.c.l.b16 %v1618
      %v1683 = vunpack.c.l.b16 %v1619
      %v1684 = vunpack.c.l.b16 %v1620
      %v1685 = vunpack.c.l.b16 %v1621
      %v1686 = vpack.c.b16 %v1683, %v1682
      %v1687 = vpack.c.b16 %v1685, %v1684
      %v1691 = vsel %vm1365, %v1613, 0
      %1693 = vmatprep.subr.bf16.mxu0 0
      %1694 = vmatpush1.bf16.msra.mxu0 %v1686
      %1695 = vmatprep.subr.bf16.mxu0 0
      %1696 = vmatpush1.bf16.msra.mxu0 %v1687
      %1697 = vmatprep.subr.bf16.mxu0 0
      %1698 = vmatpush1.bf16.msra.mxu0 0
      %1699 = vmatprep.subr.bf16.mxu0 0
      %1700 = vmatpush1.bf16.msra.mxu0 0
      %1701 = vmatprep.subr.bf16.mxu0 0
      %1702 = vmatpush1.bf16.msra.mxu0 0
      %1703 = vmatprep.subr.bf16.mxu0 0
      %1704 = vmatpush1.bf16.msra.mxu0 0
      %1705 = vmatprep.subr.bf16.mxu0 0
      %1706 = vmatpush1.bf16.msra.mxu0 0
      %1707 = vmatprep.subr.bf16.mxu0 0
      %1708 = vmatpush1.bf16.msra.mxu0 0
      %1709 = vmatprep.subr.bf16.mxu0 0
      %1710 = vmatpush1.bf16.msra.mxu0 0
      %1711 = vmatprep.subr.bf16.mxu0 0
      %1712 = vmatpush1.bf16.msra.mxu0 0
      %1713 = vmatprep.subr.bf16.mxu0 0
      %1714 = vmatpush1.bf16.msra.mxu0 0
      %1715 = vmatprep.subr.bf16.mxu0 0
      %1716 = vmatpush1.bf16.msra.mxu0 0
      %1717 = vmatprep.subr.bf16.mxu0 0
      %1718 = vmatpush1.bf16.msra.mxu0 0
      %1719 = vmatprep.subr.bf16.mxu0 0
      %1720 = vmatpush1.bf16.msra.mxu0 0
      %1721 = vmatprep.subr.bf16.mxu0 0
      %1722 = vmatpush1.bf16.msra.mxu0 0
      %1723 = vmatprep.subr.bf16.mxu0 0
      %1724 = vmatpush1.bf16.msra.mxu0 0
      %1725 = vmatprep.mubr.bf16.mxu0 0
      %1726 = vmatmul.mubr.bf16.gmra.mrb[0].mxu0 %v1691
      %v1727 = vpop.f32.mrb[0].mxu0
      %v1728 = vadd.f32 0.0, %v1727
      %v1729 = vpop.f32.mrb[0].mxu0
      %v1730 = vpop.f32.mrb[0].mxu0
      %v1731 = vadd.f32 0.0, %v1730
      %v1732 = vpop.f32.mrb[0].mxu0
      %1733 = vdwg.mxu0
      %v1734 = vsel %vm835, %v1672, 0.0
      %v1735 = vsel %vm835, %v1728, 0.0
      %v1736 = vadd.f32 %v1734, %v1735
      %v1737 = vsel %vm879, %v1675, 0.0
      %v1738 = vsel %vm879, %v1731, 0.0
      %v1739 = vadd.f32 %v1737, %v1738
      %v1740 = vld [vmem:[%s13] sm:$0x1]
      %v1742 = vlaneseq
      %v1743 = vshrl.u32 %v1742, 7
      %v1744 = vsub.s32 0, %v1743
      %v1745 = vrot.slane %v1740, %v1744
      %v1747 = vadd.f32 %v1736, %v1745
      %v1748 = vadd.f32 %v1739, %v1745
      %v1749 = vadd.f32 %v1747, %v872
      %v1750 = vadd.f32 %v1748, %v873
      %v1751 = vld [vmem:[%s14] sm:$0x1]
      %v1752 = vld [vmem:[%s15] sm:$0x1]
      %v1753 = vsel %vm835, %v1749, 0.0
      %1754 = vadd.xlane.f32.xlu0 %v1753
      %v1755 = vpop.xlane.xlu0 %1754
      %v1756 = vsel %vm879, %v1750, 0.0
      %1757 = vadd.xlane.f32.xlu0 %v1756
      %v1758 = vpop.xlane.xlu0 %1757
      %v1759 = vmul.f32 %v1755, %v839
      %v1760 = vmul.f32 %v1758, %v839
      %v1761 = vsub.f32 %v1749, %v1759
      %v1762 = vsub.f32 %v1750, %v1760
      %v1763 = vmul.f32 %v1761, %v1761
      %v1764 = vmul.f32 %v1762, %v1762
      %v1765 = vsel %vm835, %v1763, 0.0
      %1766 = vadd.xlane.f32.xlu0 %v1765
      %v1767 = vpop.xlane.xlu0 %1766
      %v1768 = vsel %vm879, %v1764, 0.0
      %1769 = vadd.xlane.f32.xlu0 %v1768
      %v1770 = vpop.xlane.xlu0 %1769
      %v1771 = vmul.f32 %v1767, %v839
      %v1772 = vmul.f32 %v1770, %v839
      %v1773 = vadd.f32 %v1771, 1e-05
      %v1774 = vadd.f32 %v1772, 1e-05
      %v1775 = vrsqrt.pop %v1773
      %v1776 = vrsqrt.pop %v1774
      %v1777 = vmul.f32 %v1761, %v1775
      %v1778 = vmul.f32 %v1762, %v1776
      %v1780 = vlaneseq
      %v1781 = vshrl.u32 %v1780, 7
      %v1782 = vsub.s32 0, %v1781
      %v1783 = vrot.slane %v1751, %v1782
      %v1785 = vmul.f32 %v1777, %v1783
      %v1786 = vmul.f32 %v1778, %v1783
      %v1788 = vlaneseq
      %v1789 = vshrl.u32 %v1788, 7
      %v1790 = vsub.s32 0, %v1789
      %v1791 = vrot.slane %v1752, %v1790
      %v1793 = vadd.f32 %v1785, %v1791
      %v1794 = vadd.f32 %v1786, %v1791
      %v1795 = vpack.c.bf16 %v1794, %v1793
      %v1796 = vld [vmem:[%s16] sm:$0xf]
      %v1797 = vld [vmem:[%s16 + $0x4] sm:$0xf]
      %v1798 = vld [vmem:[%s16 + $0x8] sm:$0xf]
      %v1799 = vld [vmem:[%s16 + $0xc] sm:$0xf]
      %v1800 = vld [vmem:[%s16 + $0x10] sm:$0xf]
      %v1801 = vld [vmem:[%s16 + $0x14] sm:$0xf]
      %v1802 = vld [vmem:[%s16 + $0x18] sm:$0xf]
      %v1803 = vld [vmem:[%s16 + $0x1c] sm:$0xf]
      %v1804 = vld [vmem:[%s17] sm:$0x1]
      %v1806 = vlaneseq
      %v1807 = vshrl.u32 %v1806, 7
      %v1808 = vsub.s32 0, %v1807
      %v1809 = vrot.slane %v1804, %v1808
      %v1819 = vunpack.c.l.b16 %v1796
      %v1820 = vunpack.c.l.b16 %v1797
      %v1821 = vunpack.c.l.b16 %v1798
      %v1822 = vunpack.c.l.b16 %v1799
      %v1823 = vunpack.c.l.b16 %v1800
      %v1824 = vunpack.c.l.b16 %v1801
      %v1825 = vunpack.c.l.b16 %v1802
      %v1826 = vunpack.c.l.b16 %v1803
      %v1827 = vpack.c.b16 %v1820, %v1819
      %v1828 = vpack.c.b16 %v1822, %v1821
      %v1829 = vpack.c.b16 %v1824, %v1823
      %v1830 = vpack.c.b16 %v1826, %v1825
      %v1836 = vsel %vm835, %v1795, 0
      %1838 = vmatprep.subr.bf16.mxu0 0
      %1839 = vmatpush1.bf16.msra.mxu0 %v1827
      %1840 = vmatprep.subr.bf16.mxu0 0
      %1841 = vmatpush1.bf16.msra.mxu0 %v1828
      %1842 = vmatprep.subr.bf16.mxu0 0
      %1843 = vmatpush1.bf16.msra.mxu0 %v1829
      %1844 = vmatprep.subr.bf16.mxu0 0
      %1845 = vmatpush1.bf16.msra.mxu0 %v1830
      %1846 = vmatprep.subr.bf16.mxu0 0
      %1847 = vmatpush1.bf16.msra.mxu0 0
      %1848 = vmatprep.subr.bf16.mxu0 0
      %1849 = vmatpush1.bf16.msra.mxu0 0
      %1850 = vmatprep.subr.bf16.mxu0 0
      %1851 = vmatpush1.bf16.msra.mxu0 0
      %1852 = vmatprep.subr.bf16.mxu0 0
      %1853 = vmatpush1.bf16.msra.mxu0 0
      %1854 = vmatprep.subr.bf16.mxu0 0
      %1855 = vmatpush1.bf16.msra.mxu0 0
      %1856 = vmatprep.subr.bf16.mxu0 0
      %1857 = vmatpush1.bf16.msra.mxu0 0
      %1858 = vmatprep.subr.bf16.mxu0 0
      %1859 = vmatpush1.bf16.msra.mxu0 0
      %1860 = vmatprep.subr.bf16.mxu0 0
      %1861 = vmatpush1.bf16.msra.mxu0 0
      %1862 = vmatprep.subr.bf16.mxu0 0
      %1863 = vmatpush1.bf16.msra.mxu0 0
      %1864 = vmatprep.subr.bf16.mxu0 0
      %1865 = vmatpush1.bf16.msra.mxu0 0
      %1866 = vmatprep.subr.bf16.mxu0 0
      %1867 = vmatpush1.bf16.msra.mxu0 0
      %1868 = vmatprep.subr.bf16.mxu0 0
      %1869 = vmatpush1.bf16.msra.mxu0 0
      %1870 = vmatprep.mubr.bf16.mxu0 0
      %1871 = vmatmul.mubr.bf16.gmra.mrb[0].mxu0 %v1836
      %v1872 = vpop.f32.mrb[0].mxu0
      %v1873 = vadd.f32 %v1809, %v1872
      %v1874 = vpop.f32.mrb[0].mxu0
      %v1875 = vpop.f32.mrb[0].mxu0
      %v1876 = vadd.f32 %v1809, %v1875
      %v1877 = vpop.f32.mrb[0].mxu0
      %1878 = vdwg.mxu0
      %v1879 = vmul.f32 %v1873, 0.5
      %v1880 = vmul.f32 %v1876, 0.5
      %v1881 = vmul.f32 %v1873, 0.70710677
      %v1882 = vmul.f32 %v1876, 0.70710677
      %v1883 = verf.f32.pop %v1881
      %v1884 = verf.f32.pop %v1882
      %v1885 = vadd.f32 %v1883, 1.0
      %v1886 = vadd.f32 %v1884, 1.0
      %v1887 = vmul.f32 %v1879, %v1885
      %v1888 = vmul.f32 %v1880, %v1886
      %v1889 = vpack.c.bf16 %v1888, %v1887
      %v1890 = vld [vmem:[%s18] sm:$0xf]
      %v1891 = vld [vmem:[%s18 + $0x4] sm:$0xf]
      %v1892 = vld [vmem:[%s18 + $0x8] sm:$0xf]
      %v1893 = vld [vmem:[%s18 + $0xc] sm:$0xf]
      %v1894 = vld [vmem:[%s18 + $0x10] sm:$0xf]
      %v1895 = vld [vmem:[%s18 + $0x14] sm:$0xf]
      %v1896 = vld [vmem:[%s18 + $0x18] sm:$0xf]
      %v1897 = vld [vmem:[%s18 + $0x1c] sm:$0xf]
      %v1898 = vld [vmem:[%s18 + $0x20] sm:$0xf]
      %v1899 = vld [vmem:[%s18 + $0x24] sm:$0xf]
      %v1900 = vld [vmem:[%s18 + $0x28] sm:$0xf]
      %v1901 = vld [vmem:[%s18 + $0x2c] sm:$0xf]
      %v1902 = vld [vmem:[%s18 + $0x30] sm:$0xf]
      %v1903 = vld [vmem:[%s18 + $0x34] sm:$0xf]
      %v1904 = vld [vmem:[%s18 + $0x38] sm:$0xf]
      %v1905 = vld [vmem:[%s18 + $0x3c] sm:$0xf]
      %v1906 = vld [vmem:[%s19] sm:$0x1]
      %v1908 = vlaneseq
      %v1909 = vshrl.u32 %v1908, 7
      %v1910 = vsub.s32 0, %v1909
      %v1911 = vrot.slane %v1906, %v1910
      %v1929 = vunpack.c.l.b16 %v1890
      %v1930 = vunpack.c.l.b16 %v1891
      %v1931 = vunpack.c.l.b16 %v1892
      %v1932 = vunpack.c.l.b16 %v1893
      %v1933 = vunpack.c.l.b16 %v1894
      %v1934 = vunpack.c.l.b16 %v1895
      %v1935 = vunpack.c.l.b16 %v1896
      %v1936 = vunpack.c.l.b16 %v1897
      %v1937 = vunpack.c.l.b16 %v1898
      %v1938 = vunpack.c.l.b16 %v1899
      %v1939 = vunpack.c.l.b16 %v1900
      %v1940 = vunpack.c.l.b16 %v1901
      %v1941 = vunpack.c.l.b16 %v1902
      %v1942 = vunpack.c.l.b16 %v1903
      %v1943 = vunpack.c.l.b16 %v1904
      %v1944 = vunpack.c.l.b16 %v1905
      %v1945 = vpack.c.b16 %v1930, %v1929
      %v1946 = vpack.c.b16 %v1932, %v1931
      %v1947 = vpack.c.b16 %v1934, %v1933
      %v1948 = vpack.c.b16 %v1936, %v1935
      %v1949 = vpack.c.b16 %v1938, %v1937
      %v1950 = vpack.c.b16 %v1940, %v1939
      %v1951 = vpack.c.b16 %v1942, %v1941
      %v1952 = vpack.c.b16 %v1944, %v1943
      %1961 = vmatprep.subr.bf16.mxu0 0
      %1962 = vmatpush1.bf16.msra.mxu0 %v1945
      %1963 = vmatprep.subr.bf16.mxu0 0
      %1964 = vmatpush1.bf16.msra.mxu0 %v1946
      %1965 = vmatprep.subr.bf16.mxu0 0
      %1966 = vmatpush1.bf16.msra.mxu0 %v1947
      %1967 = vmatprep.subr.bf16.mxu0 0
      %1968 = vmatpush1.bf16.msra.mxu0 %v1948
      %1969 = vmatprep.subr.bf16.mxu0 0
      %1970 = vmatpush1.bf16.msra.mxu0 %v1949
      %1971 = vmatprep.subr.bf16.mxu0 0
      %1972 = vmatpush1.bf16.msra.mxu0 %v1950
      %1973 = vmatprep.subr.bf16.mxu0 0
      %1974 = vmatpush1.bf16.msra.mxu0 %v1951
      %1975 = vmatprep.subr.bf16.mxu0 0
      %1976 = vmatpush1.bf16.msra.mxu0 %v1952
      %1977 = vmatprep.subr.bf16.mxu0 0
      %1978 = vmatpush1.bf16.msra.mxu0 0
      %1979 = vmatprep.subr.bf16.mxu0 0
      %1980 = vmatpush1.bf16.msra.mxu0 0
      %1981 = vmatprep.subr.bf16.mxu0 0
      %1982 = vmatpush1.bf16.msra.mxu0 0
      %1983 = vmatprep.subr.bf16.mxu0 0
      %1984 = vmatpush1.bf16.msra.mxu0 0
      %1985 = vmatprep.subr.bf16.mxu0 0
      %1986 = vmatpush1.bf16.msra.mxu0 0
      %1987 = vmatprep.subr.bf16.mxu0 0
      %1988 = vmatpush1.bf16.msra.mxu0 0
      %1989 = vmatprep.subr.bf16.mxu0 0
      %1990 = vmatpush1.bf16.msra.mxu0 0
      %1991 = vmatprep.subr.bf16.mxu0 0
      %1992 = vmatpush1.bf16.msra.mxu0 0
      %1993 = vmatprep.mubr.bf16.mxu0 0
      %1994 = vmatmul.mubr.bf16.gmra.mrb[0].mxu0 %v1889
      %v1995 = vpop.f32.mrb[0].mxu0
      %v1996 = vadd.f32 %v1911, %v1995
      %v1997 = vpop.f32.mrb[0].mxu0
      %v1998 = vpop.f32.mrb[0].mxu0
      %v1999 = vadd.f32 %v1911, %v1998
      %v2000 = vpop.f32.mrb[0].mxu0
      %2001 = vdwg.mxu0
      %v2002 = vadd.f32 %v1996, %v1749
      %v2003 = vadd.f32 %v1999, %v1750
      %s2004 = scalar_lea.vmem %s9, 1
      %v2005 = vld [vmem:[%s2004] sm:$0x1]
      %s2006 = scalar_lea.vmem %s10, 1
      %v2007 = vld [vmem:[%s2006] sm:$0x1]
      %v2008 = vsel %vm835, %v2002, 0.0
      %2009 = vadd.xlane.f32.xlu0 %v2008
      %v2010 = vpop.xlane.xlu0 %2009
      %v2011 = vsel %vm879, %v2003, 0.0
      %2012 = vadd.xlane.f32.xlu0 %v2011
      %v2013 = vpop.xlane.xlu0 %2012
      %v2014 = vmul.f32 %v2010, %v839
      %v2015 = vmul.f32 %v2013, %v839
      %v2016 = vsub.f32 %v2002, %v2014
      %v2017 = vsub.f32 %v2003, %v2015
      %v2018 = vmul.f32 %v2016, %v2016
      %v2019 = vmul.f32 %v2017, %v2017
      %v2020 = vsel %vm835, %v2018, 0.0
      %2021 = vadd.xlane.f32.xlu0 %v2020
      %v2022 = vpop.xlane.xlu0 %2021
      %v2023 = vsel %vm879, %v2019, 0.0
      %2024 = vadd.xlane.f32.xlu0 %v2023
      %v2025 = vpop.xlane.xlu0 %2024
      %v2026 = vmul.f32 %v2022, %v839
      %v2027 = vmul.f32 %v2025, %v839
      %v2028 = vadd.f32 %v2026, 1e-05
      %v2029 = vadd.f32 %v2027, 1e-05
      %v2030 = vrsqrt.pop %v2028
      %v2031 = vrsqrt.pop %v2029
      %v2032 = vmul.f32 %v2016, %v2030
      %v2033 = vmul.f32 %v2017, %v2031
      %v2035 = vlaneseq
      %v2036 = vshrl.u32 %v2035, 7
      %v2037 = vsub.s32 0, %v2036
      %v2038 = vrot.slane %v2005, %v2037
      %v2040 = vmul.f32 %v2032, %v2038
      %v2041 = vmul.f32 %v2033, %v2038
      %v2043 = vlaneseq
      %v2044 = vshrl.u32 %v2043, 7
      %v2045 = vsub.s32 0, %v2044
      %v2046 = vrot.slane %v2007, %v2045
      %v2048 = vadd.f32 %v2040, %v2046
      %v2049 = vadd.f32 %v2041, %v2046
      %v2050 = vpack.c.bf16 %v2049, %v2048
      %s2051 = scalar_lea.vmem %s11, 192
      %v2052 = vld [vmem:[%s2051] sm:$0xf]
      %v2053 = vld [vmem:[%s2051 + $0x4] sm:$0xf]
      %v2054 = vld [vmem:[%s2051 + $0x8] sm:$0xf]
      %v2055 = vld [vmem:[%s2051 + $0xc] sm:$0xf]
      %v2056 = vld [vmem:[%s2051 + $0x10] sm:$0xf]
      %v2057 = vld [vmem:[%s2051 + $0x14] sm:$0xf]
      %v2058 = vld [vmem:[%s2051 + $0x18] sm:$0xf]
      %v2059 = vld [vmem:[%s2051 + $0x1c] sm:$0xf]
      %v2060 = vld [vmem:[%s2051 + $0x20] sm:$0xf]
      %v2061 = vld [vmem:[%s2051 + $0x24] sm:$0xf]
      %v2062 = vld [vmem:[%s2051 + $0x28] sm:$0xf]
      %v2063 = vld [vmem:[%s2051 + $0x2c] sm:$0xf]
      %v2064 = vld [vmem:[%s2051 + $0x30] sm:$0xf]
      %v2065 = vld [vmem:[%s2051 + $0x34] sm:$0xf]
      %v2066 = vld [vmem:[%s2051 + $0x38] sm:$0xf]
      %v2067 = vld [vmem:[%s2051 + $0x3c] sm:$0xf]
      %v2068 = vld [vmem:[%s2051 + $0x40] sm:$0xf]
      %v2069 = vld [vmem:[%s2051 + $0x44] sm:$0xf]
      %v2070 = vld [vmem:[%s2051 + $0x48] sm:$0xf]
      %v2071 = vld [vmem:[%s2051 + $0x4c] sm:$0xf]
      %v2072 = vld [vmem:[%s2051 + $0x50] sm:$0xf]
      %v2073 = vld [vmem:[%s2051 + $0x54] sm:$0xf]
      %v2074 = vld [vmem:[%s2051 + $0x58] sm:$0xf]
      %v2075 = vld [vmem:[%s2051 + $0x5c] sm:$0xf]
      %v2076 = vld [vmem:[%s2051 + $0x60] sm:$0xf]
      %v2077 = vld [vmem:[%s2051 + $0x64] sm:$0xf]
      %v2078 = vld [vmem:[%s2051 + $0x68] sm:$0xf]
      %v2079 = vld [vmem:[%s2051 + $0x6c] sm:$0xf]
      %v2080 = vld [vmem:[%s2051 + $0x70] sm:$0xf]
      %v2081 = vld [vmem:[%s2051 + $0x74] sm:$0xf]
      %v2082 = vld [vmem:[%s2051 + $0x78] sm:$0xf]
      %v2083 = vld [vmem:[%s2051 + $0x7c] sm:$0xf]
      %v2084 = vld [vmem:[%s2051 + $0x80] sm:$0xf]
      %v2085 = vld [vmem:[%s2051 + $0x84] sm:$0xf]
      %v2086 = vld [vmem:[%s2051 + $0x88] sm:$0xf]
      %v2087 = vld [vmem:[%s2051 + $0x8c] sm:$0xf]
      %v2088 = vld [vmem:[%s2051 + $0x90] sm:$0xf]
      %v2089 = vld [vmem:[%s2051 + $0x94] sm:$0xf]
      %v2090 = vld [vmem:[%s2051 + $0x98] sm:$0xf]
      %v2091 = vld [vmem:[%s2051 + $0x9c] sm:$0xf]
      %v2092 = vld [vmem:[%s2051 + $0xa0] sm:$0xf]
      %v2093 = vld [vmem:[%s2051 + $0xa4] sm:$0xf]
      %v2094 = vld [vmem:[%s2051 + $0xa8] sm:$0xf]
      %v2095 = vld [vmem:[%s2051 + $0xac] sm:$0xf]
      %v2096 = vld [vmem:[%s2051 + $0xb0] sm:$0xf]
      %v2097 = vld [vmem:[%s2051 + $0xb4] sm:$0xf]
      %v2098 = vld [vmem:[%s2051 + $0xb8] sm:$0xf]
      %v2099 = vld [vmem:[%s2051 + $0xbc] sm:$0xf]
      %v2108 = vunpack.c.l.b16 %v2052
      %v2109 = vunpack.c.l.b16 %v2053
      %v2110 = vunpack.c.l.b16 %v2054
      %v2111 = vunpack.c.l.b16 %v2055
      %v2112 = vunpack.c.l.b16 %v2056
      %v2113 = vunpack.c.l.b16 %v2057
      %v2114 = vunpack.c.l.b16 %v2058
      %v2115 = vunpack.c.l.b16 %v2059
      %v2116 = vpack.c.b16 %v2109, %v2108
      %v2117 = vpack.c.b16 %v2111, %v2110
      %v2118 = vpack.c.b16 %v2113, %v2112
      %v2119 = vpack.c.b16 %v2115, %v2114
      %v2125 = vsel %vm835, %v2050, 0
      %2127 = vmatprep.subr.bf16.mxu0 0
      %2128 = vmatpush1.bf16.msra.mxu0 %v2116
      %2129 = vmatprep.subr.bf16.mxu0 0
      %2130 = vmatpush1.bf16.msra.mxu0 %v2117
      %2131 = vmatprep.subr.bf16.mxu0 0
      %2132 = vmatpush1.bf16.msra.mxu0 %v2118
      %2133 = vmatprep.subr.bf16.mxu0 0
      %2134 = vmatpush1.bf16.msra.mxu0 %v2119
      %2135 = vmatprep.subr.bf16.mxu0 0
      %2136 = vmatpush1.bf16.msra.mxu0 0
      %2137 = vmatprep.subr.bf16.mxu0 0
      %2138 = vmatpush1.bf16.msra.mxu0 0
      %2139 = vmatprep.subr.bf16.mxu0 0
      %2140 = vmatpush1.bf16.msra.mxu0 0
      %2141 = vmatprep.subr.bf16.mxu0 0
      %2142 = vmatpush1.bf16.msra.mxu0 0
      %2143 = vmatprep.subr.bf16.mxu0 0
      %2144 = vmatpush1.bf16.msra.mxu0 0
      %2145 = vmatprep.subr.bf16.mxu0 0
      %2146 = vmatpush1.bf16.msra.mxu0 0
      %2147 = vmatprep.subr.bf16.mxu0 0
      %2148 = vmatpush1.bf16.msra.mxu0 0
      %2149 = vmatprep.subr.bf16.mxu0 0
      %2150 = vmatpush1.bf16.msra.mxu0 0
      %2151 = vmatprep.subr.bf16.mxu0 0
      %2152 = vmatpush1.bf16.msra.mxu0 0
      %2153 = vmatprep.subr.bf16.mxu0 0
      %2154 = vmatpush1.bf16.msra.mxu0 0
      %2155 = vmatprep.subr.bf16.mxu0 0
      %2156 = vmatpush1.bf16.msra.mxu0 0
      %2157 = vmatprep.subr.bf16.mxu0 0
      %2158 = vmatpush1.bf16.msra.mxu0 0
      %2159 = vmatprep.mubr.bf16.mxu0 0
      %2160 = vmatmul.mubr.bf16.gmra.mrb[0].mxu0 %v2125
      %v2161 = vpop.f32.mrb[0].mxu0
      %v2162 = vadd.f32 0.0, %v2161
      %v2163 = vpop.f32.mrb[0].mxu0
      %v2164 = vpop.f32.mrb[0].mxu0
      %v2165 = vadd.f32 0.0, %v2164
      %v2166 = vpop.f32.mrb[0].mxu0
      %2167 = vdwg.mxu0
      %v2176 = vunpack.c.l.b16 %v2060
      %v2177 = vunpack.c.l.b16 %v2061
      %v2178 = vunpack.c.l.b16 %v2062
      %v2179 = vunpack.c.l.b16 %v2063
      %v2180 = vunpack.c.l.b16 %v2064
      %v2181 = vunpack.c.l.b16 %v2065
      %v2182 = vunpack.c.l.b16 %v2066
      %v2183 = vunpack.c.l.b16 %v2067
      %v2184 = vpack.c.b16 %v2177, %v2176
      %v2185 = vpack.c.b16 %v2179, %v2178
      %v2186 = vpack.c.b16 %v2181, %v2180
      %v2187 = vpack.c.b16 %v2183, %v2182
      %2192 = vmatprep.subr.bf16.mxu0 0
      %2193 = vmatpush1.bf16.msra.mxu0 %v2184
      %2194 = vmatprep.subr.bf16.mxu0 0
      %2195 = vmatpush1.bf16.msra.mxu0 %v2185
      %2196 = vmatprep.subr.bf16.mxu0 0
      %2197 = vmatpush1.bf16.msra.mxu0 %v2186
      %2198 = vmatprep.subr.bf16.mxu0 0
      %2199 = vmatpush1.bf16.msra.mxu0 %v2187
      %2200 = vmatprep.subr.bf16.mxu0 0
      %2201 = vmatpush1.bf16.msra.mxu0 0
      %2202 = vmatprep.subr.bf16.mxu0 0
      %2203 = vmatpush1.bf16.msra.mxu0 0
      %2204 = vmatprep.subr.bf16.mxu0 0
      %2205 = vmatpush1.bf16.msra.mxu0 0
      %2206 = vmatprep.subr.bf16.mxu0 0
      %2207 = vmatpush1.bf16.msra.mxu0 0
      %2208 = vmatprep.subr.bf16.mxu0 0
      %2209 = vmatpush1.bf16.msra.mxu0 0
      %2210 = vmatprep.subr.bf16.mxu0 0
      %2211 = vmatpush1.bf16.msra.mxu0 0
      %2212 = vmatprep.subr.bf16.mxu0 0
      %2213 = vmatpush1.bf16.msra.mxu0 0
      %2214 = vmatprep.subr.bf16.mxu0 0
      %2215 = vmatpush1.bf16.msra.mxu0 0
      %2216 = vmatprep.subr.bf16.mxu0 0
      %2217 = vmatpush1.bf16.msra.mxu0 0
      %2218 = vmatprep.subr.bf16.mxu0 0
      %2219 = vmatpush1.bf16.msra.mxu0 0
      %2220 = vmatprep.subr.bf16.mxu0 0
      %2221 = vmatpush1.bf16.msra.mxu0 0
      %2222 = vmatprep.subr.bf16.mxu0 0
      %2223 = vmatpush1.bf16.msra.mxu0 0
      %2224 = vmatprep.mubr.bf16.mxu0 0
      %2225 = vmatmul.mubr.bf16.gmra.mrb[0].mxu0 %v2125
      %v2226 = vpop.f32.mrb[0].mxu0
      %v2227 = vadd.f32 0.0, %v2226
      %v2228 = vpop.f32.mrb[0].mxu0
      %v2229 = vpop.f32.mrb[0].mxu0
      %v2230 = vadd.f32 0.0, %v2229
      %v2231 = vpop.f32.mrb[0].mxu0
      %2232 = vdwg.mxu0
      %v2241 = vunpack.c.l.b16 %v2068
      %v2242 = vunpack.c.l.b16 %v2069
      %v2243 = vunpack.c.l.b16 %v2070
      %v2244 = vunpack.c.l.b16 %v2071
      %v2245 = vunpack.c.l.b16 %v2072
      %v2246 = vunpack.c.l.b16 %v2073
      %v2247 = vunpack.c.l.b16 %v2074
      %v2248 = vunpack.c.l.b16 %v2075
      %v2249 = vpack.c.b16 %v2242, %v2241
      %v2250 = vpack.c.b16 %v2244, %v2243
      %v2251 = vpack.c.b16 %v2246, %v2245
      %v2252 = vpack.c.b16 %v2248, %v2247
      %2257 = vmatprep.subr.bf16.mxu0 0
      %2258 = vmatpush1.bf16.msra.mxu0 %v2249
      %2259 = vmatprep.subr.bf16.mxu0 0
      %2260 = vmatpush1.bf16.msra.mxu0 %v2250
      %2261 = vmatprep.subr.bf16.mxu0 0
      %2262 = vmatpush1.bf16.msra.mxu0 %v2251
      %2263 = vmatprep.subr.bf16.mxu0 0
      %2264 = vmatpush1.bf16.msra.mxu0 %v2252
      %2265 = vmatprep.subr.bf16.mxu0 0
      %2266 = vmatpush1.bf16.msra.mxu0 0
      %2267 = vmatprep.subr.bf16.mxu0 0
      %2268 = vmatpush1.bf16.msra.mxu0 0
      %2269 = vmatprep.subr.bf16.mxu0 0
      %2270 = vmatpush1.bf16.msra.mxu0 0
      %2271 = vmatprep.subr.bf16.mxu0 0
      %2272 = vmatpush1.bf16.msra.mxu0 0
      %2273 = vmatprep.subr.bf16.mxu0 0
      %2274 = vmatpush1.bf16.msra.mxu0 0
      %2275 = vmatprep.subr.bf16.mxu0 0
      %2276 = vmatpush1.bf16.msra.mxu0 0
      %2277 = vmatprep.subr.bf16.mxu0 0
      %2278 = vmatpush1.bf16.msra.mxu0 0
      %2279 = vmatprep.subr.bf16.mxu0 0
      %2280 = vmatpush1.bf16.msra.mxu0 0
      %2281 = vmatprep.subr.bf16.mxu0 0
      %2282 = vmatpush1.bf16.msra.mxu0 0
      %2283 = vmatprep.subr.bf16.mxu0 0
      %2284 = vmatpush1.bf16.msra.mxu0 0
      %2285 = vmatprep.subr.bf16.mxu0 0
      %2286 = vmatpush1.bf16.msra.mxu0 0
      %2287 = vmatprep.subr.bf16.mxu0 0
      %2288 = vmatpush1.bf16.msra.mxu0 0
      %2289 = vmatprep.mubr.bf16.mxu0 0
      %2290 = vmatmul.mubr.bf16.gmra.mrb[0].mxu0 %v2125
      %v2291 = vpop.f32.mrb[0].mxu0
      %v2292 = vadd.f32 0.0, %v2291
      %v2293 = vpop.f32.mrb[0].mxu0
      %v2294 = vpop.f32.mrb[0].mxu0
      %v2295 = vadd.f32 0.0, %v2294
      %v2296 = vpop.f32.mrb[0].mxu0
      %2297 = vdwg.mxu0
      %v2306 = vunpack.c.l.b16 %v2076
      %v2307 = vunpack.c.l.b16 %v2077
      %v2308 = vunpack.c.l.b16 %v2078
      %v2309 = vunpack.c.l.b16 %v2079
      %v2310 = vunpack.c.l.b16 %v2080
      %v2311 = vunpack.c.l.b16 %v2081
      %v2312 = vunpack.c.l.b16 %v2082
      %v2313 = vunpack.c.l.b16 %v2083
      %v2314 = vpack.c.b16 %v2307, %v2306
      %v2315 = vpack.c.b16 %v2309, %v2308
      %v2316 = vpack.c.b16 %v2311, %v2310
      %v2317 = vpack.c.b16 %v2313, %v2312
      %2322 = vmatprep.subr.bf16.mxu0 0
      %2323 = vmatpush1.bf16.msra.mxu0 %v2314
      %2324 = vmatprep.subr.bf16.mxu0 0
      %2325 = vmatpush1.bf16.msra.mxu0 %v2315
      %2326 = vmatprep.subr.bf16.mxu0 0
      %2327 = vmatpush1.bf16.msra.mxu0 %v2316
      %2328 = vmatprep.subr.bf16.mxu0 0
      %2329 = vmatpush1.bf16.msra.mxu0 %v2317
      %2330 = vmatprep.subr.bf16.mxu0 0
      %2331 = vmatpush1.bf16.msra.mxu0 0
      %2332 = vmatprep.subr.bf16.mxu0 0
      %2333 = vmatpush1.bf16.msra.mxu0 0
      %2334 = vmatprep.subr.bf16.mxu0 0
      %2335 = vmatpush1.bf16.msra.mxu0 0
      %2336 = vmatprep.subr.bf16.mxu0 0
      %2337 = vmatpush1.bf16.msra.mxu0 0
      %2338 = vmatprep.subr.bf16.mxu0 0
      %2339 = vmatpush1.bf16.msra.mxu0 0
      %2340 = vmatprep.subr.bf16.mxu0 0
      %2341 = vmatpush1.bf16.msra.mxu0 0
      %2342 = vmatprep.subr.bf16.mxu0 0
      %2343 = vmatpush1.bf16.msra.mxu0 0
      %2344 = vmatprep.subr.bf16.mxu0 0
      %2345 = vmatpush1.bf16.msra.mxu0 0
      %2346 = vmatprep.subr.bf16.mxu0 0
      %2347 = vmatpush1.bf16.msra.mxu0 0
      %2348 = vmatprep.subr.bf16.mxu0 0
      %2349 = vmatpush1.bf16.msra.mxu0 0
      %2350 = vmatprep.subr.bf16.mxu0 0
      %2351 = vmatpush1.bf16.msra.mxu0 0
      %2352 = vmatprep.subr.bf16.mxu0 0
      %2353 = vmatpush1.bf16.msra.mxu0 0
      %2354 = vmatprep.mubr.bf16.mxu0 0
      %2355 = vmatmul.mubr.bf16.gmra.mrb[0].mxu0 %v2125
      %v2356 = vpop.f32.mrb[0].mxu0
      %v2357 = vadd.f32 0.0, %v2356
      %v2358 = vpop.f32.mrb[0].mxu0
      %v2359 = vpop.f32.mrb[0].mxu0
      %v2360 = vadd.f32 0.0, %v2359
      %v2361 = vpop.f32.mrb[0].mxu0
      %2362 = vdwg.mxu0
      %v2371 = vunpack.c.l.b16 %v2084
      %v2372 = vunpack.c.l.b16 %v2085
      %v2373 = vunpack.c.l.b16 %v2086
      %v2374 = vunpack.c.l.b16 %v2087
      %v2375 = vunpack.c.l.b16 %v2088
      %v2376 = vunpack.c.l.b16 %v2089
      %v2377 = vunpack.c.l.b16 %v2090
      %v2378 = vunpack.c.l.b16 %v2091
      %v2379 = vpack.c.b16 %v2372, %v2371
      %v2380 = vpack.c.b16 %v2374, %v2373
      %v2381 = vpack.c.b16 %v2376, %v2375
      %v2382 = vpack.c.b16 %v2378, %v2377
      %2387 = vmatprep.subr.bf16.mxu0 0
      %2388 = vmatpush1.bf16.msra.mxu0 %v2379
      %2389 = vmatprep.subr.bf16.mxu0 0
      %2390 = vmatpush1.bf16.msra.mxu0 %v2380
      %2391 = vmatprep.subr.bf16.mxu0 0
      %2392 = vmatpush1.bf16.msra.mxu0 %v2381
      %2393 = vmatprep.subr.bf16.mxu0 0
      %2394 = vmatpush1.bf16.msra.mxu0 %v2382
      %2395 = vmatprep.subr.bf16.mxu0 0
      %2396 = vmatpush1.bf16.msra.mxu0 0
      %2397 = vmatprep.subr.bf16.mxu0 0
      %2398 = vmatpush1.bf16.msra.mxu0 0
      %2399 = vmatprep.subr.bf16.mxu0 0
      %2400 = vmatpush1.bf16.msra.mxu0 0
      %2401 = vmatprep.subr.bf16.mxu0 0
      %2402 = vmatpush1.bf16.msra.mxu0 0
      %2403 = vmatprep.subr.bf16.mxu0 0
      %2404 = vmatpush1.bf16.msra.mxu0 0
      %2405 = vmatprep.subr.bf16.mxu0 0
      %2406 = vmatpush1.bf16.msra.mxu0 0
      %2407 = vmatprep.subr.bf16.mxu0 0
      %2408 = vmatpush1.bf16.msra.mxu0 0
      %2409 = vmatprep.subr.bf16.mxu0 0
      %2410 = vmatpush1.bf16.msra.mxu0 0
      %2411 = vmatprep.subr.bf16.mxu0 0
      %2412 = vmatpush1.bf16.msra.mxu0 0
      %2413 = vmatprep.subr.bf16.mxu0 0
      %2414 = vmatpush1.bf16.msra.mxu0 0
      %2415 = vmatprep.subr.bf16.mxu0 0
      %2416 = vmatpush1.bf16.msra.mxu0 0
      %2417 = vmatprep.subr.bf16.mxu0 0
      %2418 = vmatpush1.bf16.msra.mxu0 0
      %2419 = vmatprep.mubr.bf16.mxu0 0
      %2420 = vmatmul.mubr.bf16.gmra.mrb[0].mxu0 %v2125
      %v2421 = vpop.f32.mrb[0].mxu0
      %v2422 = vadd.f32 0.0, %v2421
      %v2423 = vpop.f32.mrb[0].mxu0
      %v2424 = vpop.f32.mrb[0].mxu0
      %v2425 = vadd.f32 0.0, %v2424
      %v2426 = vpop.f32.mrb[0].mxu0
      %2427 = vdwg.mxu0
      %v2436 = vunpack.c.l.b16 %v2092
      %v2437 = vunpack.c.l.b16 %v2093
      %v2438 = vunpack.c.l.b16 %v2094
      %v2439 = vunpack.c.l.b16 %v2095
      %v2440 = vunpack.c.l.b16 %v2096
      %v2441 = vunpack.c.l.b16 %v2097
      %v2442 = vunpack.c.l.b16 %v2098
      %v2443 = vunpack.c.l.b16 %v2099
      %v2444 = vpack.c.b16 %v2437, %v2436
      %v2445 = vpack.c.b16 %v2439, %v2438
      %v2446 = vpack.c.b16 %v2441, %v2440
      %v2447 = vpack.c.b16 %v2443, %v2442
      %2452 = vmatprep.subr.bf16.mxu0 0
      %2453 = vmatpush1.bf16.msra.mxu0 %v2444
      %2454 = vmatprep.subr.bf16.mxu0 0
      %2455 = vmatpush1.bf16.msra.mxu0 %v2445
      %2456 = vmatprep.subr.bf16.mxu0 0
      %2457 = vmatpush1.bf16.msra.mxu0 %v2446
      %2458 = vmatprep.subr.bf16.mxu0 0
      %2459 = vmatpush1.bf16.msra.mxu0 %v2447
      %2460 = vmatprep.subr.bf16.mxu0 0
      %2461 = vmatpush1.bf16.msra.mxu0 0
      %2462 = vmatprep.subr.bf16.mxu0 0
      %2463 = vmatpush1.bf16.msra.mxu0 0
      %2464 = vmatprep.subr.bf16.mxu0 0
      %2465 = vmatpush1.bf16.msra.mxu0 0
      %2466 = vmatprep.subr.bf16.mxu0 0
      %2467 = vmatpush1.bf16.msra.mxu0 0
      %2468 = vmatprep.subr.bf16.mxu0 0
      %2469 = vmatpush1.bf16.msra.mxu0 0
      %2470 = vmatprep.subr.bf16.mxu0 0
      %2471 = vmatpush1.bf16.msra.mxu0 0
      %2472 = vmatprep.subr.bf16.mxu0 0
      %2473 = vmatpush1.bf16.msra.mxu0 0
      %2474 = vmatprep.subr.bf16.mxu0 0
      %2475 = vmatpush1.bf16.msra.mxu0 0
      %2476 = vmatprep.subr.bf16.mxu0 0
      %2477 = vmatpush1.bf16.msra.mxu0 0
      %2478 = vmatprep.subr.bf16.mxu0 0
      %2479 = vmatpush1.bf16.msra.mxu0 0
      %2480 = vmatprep.subr.bf16.mxu0 0
      %2481 = vmatpush1.bf16.msra.mxu0 0
      %2482 = vmatprep.subr.bf16.mxu0 0
      %2483 = vmatpush1.bf16.msra.mxu0 0
      %2484 = vmatprep.mubr.bf16.mxu0 0
      %2485 = vmatmul.mubr.bf16.gmra.mrb[0].mxu0 %v2125
      %v2486 = vpop.f32.mrb[0].mxu0
      %v2487 = vadd.f32 0.0, %v2486
      %v2488 = vpop.f32.mrb[0].mxu0
      %v2489 = vpop.f32.mrb[0].mxu0
      %v2490 = vadd.f32 0.0, %v2489
      %v2491 = vpop.f32.mrb[0].mxu0
      %2492 = vdwg.mxu0
      %v2493 = vpack.c.bf16 %v2165, %v2162
      %v2494 = vpack.c.bf16 %v2230, %v2227
      %v2495 = vpack.c.bf16 %v2295, %v2292
      %v2496 = vpack.c.bf16 %v2360, %v2357
      %v2498 = vsel %vm1365, %v2493, 0
      %v2501 = vsel %vm1365, %v2495, 0
      %2503 = vmatprep.subr.bf16.mxu0 0
      %2504 = vmatpush1.bf16.xpose.msra.mxu0 %v2501
      %2505 = vmatprep.subr.bf16.mxu0 0
      %2506 = vmatpush1.bf16.xpose.msra.mxu0 0
      %2507 = vmatprep.subr.bf16.mxu0 0
      %2508 = vmatpush1.bf16.xpose.msra.mxu0 0
      %2509 = vmatprep.subr.bf16.mxu0 0
      %2510 = vmatpush1.bf16.xpose.msra.mxu0 0
      %2511 = vmatprep.subr.bf16.mxu0 0
      %2512 = vmatpush1.bf16.xpose.msra.mxu0 0
      %2513 = vmatprep.subr.bf16.mxu0 0
      %2514 = vmatpush1.bf16.xpose.msra.mxu0 0
      %2515 = vmatprep.subr.bf16.mxu0 0
      %2516 = vmatpush1.bf16.xpose.msra.mxu0 0
      %2517 = vmatprep.subr.bf16.mxu0 0
      %2518 = vmatpush1.bf16.xpose.msra.mxu0 0
      %2519 = vmatprep.subr.bf16.mxu0 0
      %2520 = vmatpush1.bf16.xpose.msra.mxu0 0
      %2521 = vmatprep.subr.bf16.mxu0 0
      %2522 = vmatpush1.bf16.xpose.msra.mxu0 0
      %2523 = vmatprep.subr.bf16.mxu0 0
      %2524 = vmatpush1.bf16.xpose.msra.mxu0 0
      %2525 = vmatprep.subr.bf16.mxu0 0
      %2526 = vmatpush1.bf16.xpose.msra.mxu0 0
      %2527 = vmatprep.subr.bf16.mxu0 0
      %2528 = vmatpush1.bf16.xpose.msra.mxu0 0
      %2529 = vmatprep.subr.bf16.mxu0 0
      %2530 = vmatpush1.bf16.xpose.msra.mxu0 0
      %2531 = vmatprep.subr.bf16.mxu0 0
      %2532 = vmatpush1.bf16.xpose.msra.mxu0 0
      %2533 = vmatprep.subr.bf16.mxu0 0
      %2534 = vmatpush1.bf16.xpose.msra.mxu0 0
      %2535 = vmatprep.mubr.bf16.mxu0 0
      %2536 = vmatmul.mubr.bf16.gmra.mrb[0].mxu0 %v2498
      %v2537 = vpop.f32.mrb[0].mxu0
      %v2538 = vadd.f32 0.0, %v2537
      %v2539 = vpop.f32.mrb[0].mxu0
      %v2540 = vpop.f32.mrb[0].mxu0
      %v2541 = vadd.f32 0.0, %v2540
      %v2542 = vpop.f32.mrb[0].mxu0
      %2543 = vdwg.mxu0
      %v2545 = vsel %vm1365, %v2494, 0
      %v2548 = vsel %vm1365, %v2496, 0
      %2550 = vmatprep.subr.bf16.mxu0 0
      %2551 = vmatpush1.bf16.xpose.msra.mxu0 %v2548
      %2552 = vmatprep.subr.bf16.mxu0 0
      %2553 = vmatpush1.bf16.xpose.msra.mxu0 0
      %2554 = vmatprep.subr.bf16.mxu0 0
      %2555 = vmatpush1.bf16.xpose.msra.mxu0 0
      %2556 = vmatprep.subr.bf16.mxu0 0
      %2557 = vmatpush1.bf16.xpose.msra.mxu0 0
      %2558 = vmatprep.subr.bf16.mxu0 0
      %2559 = vmatpush1.bf16.xpose.msra.mxu0 0
      %2560 = vmatprep.subr.bf16.mxu0 0
      %2561 = vmatpush1.bf16.xpose.msra.mxu0 0
      %2562 = vmatprep.subr.bf16.mxu0 0
      %2563 = vmatpush1.bf16.xpose.msra.mxu0 0
      %2564 = vmatprep.subr.bf16.mxu0 0
      %2565 = vmatpush1.bf16.xpose.msra.mxu0 0
      %2566 = vmatprep.subr.bf16.mxu0 0
      %2567 = vmatpush1.bf16.xpose.msra.mxu0 0
      %2568 = vmatprep.subr.bf16.mxu0 0
      %2569 = vmatpush1.bf16.xpose.msra.mxu0 0
      %2570 = vmatprep.subr.bf16.mxu0 0
      %2571 = vmatpush1.bf16.xpose.msra.mxu0 0
      %2572 = vmatprep.subr.bf16.mxu0 0
      %2573 = vmatpush1.bf16.xpose.msra.mxu0 0
      %2574 = vmatprep.subr.bf16.mxu0 0
      %2575 = vmatpush1.bf16.xpose.msra.mxu0 0
      %2576 = vmatprep.subr.bf16.mxu0 0
      %2577 = vmatpush1.bf16.xpose.msra.mxu0 0
      %2578 = vmatprep.subr.bf16.mxu0 0
      %2579 = vmatpush1.bf16.xpose.msra.mxu0 0
      %2580 = vmatprep.subr.bf16.mxu0 0
      %2581 = vmatpush1.bf16.xpose.msra.mxu0 0
      %2582 = vmatprep.mubr.bf16.mxu0 0
      %2583 = vmatmul.mubr.bf16.gmra.mrb[0].mxu0 %v2545
      %v2584 = vpop.f32.mrb[0].mxu0
      %v2585 = vadd.f32 0.0, %v2584
      %v2586 = vpop.f32.mrb[0].mxu0
      %v2587 = vpop.f32.mrb[0].mxu0
      %v2588 = vadd.f32 0.0, %v2587
      %v2589 = vpop.f32.mrb[0].mxu0
      %2590 = vdwg.mxu0
      %v2591 = vmul.f32 %v2538, 0.17677669
      %v2592 = vmul.f32 %v2541, 0.17677669
      %v2593 = vmul.f32 %v2585, 0.17677669
      %v2594 = vmul.f32 %v2588, 0.17677669
      %v2595 = vsel %vm1464, %v2591, -inf
      %2596 = vmax.xlane.f32.xlu0 %v2595
      %v2597 = vpop.xlane.xlu0 %2596
      %v2598 = vsel %vm1468, %v2592, -inf
      %2599 = vmax.xlane.f32.xlu0 %v2598
      %v2600 = vpop.xlane.xlu0 %2599
      %v2601 = vsel %vm1464, %v2593, -inf
      %2602 = vmax.xlane.f32.xlu0 %v2601
      %v2603 = vpop.xlane.xlu0 %2602
      %v2604 = vsel %vm1468, %v2594, -inf
      %2605 = vmax.xlane.f32.xlu0 %v2604
      %v2606 = vpop.xlane.xlu0 %2605
      %v2607 = vsub.f32 %v2591, %v2597
      %v2608 = vsub.f32 %v2592, %v2600
      %v2609 = vsub.f32 %v2593, %v2603
      %v2610 = vsub.f32 %v2594, %v2606
      %v2611 = vmul.f32 %v2607, 1.442695
      %v2612 = vpow.pop %v2611
      %v2613 = vmul.f32 %v2608, 1.442695
      %v2614 = vpow.pop %v2613
      %v2615 = vmul.f32 %v2609, 1.442695
      %v2616 = vpow.pop %v2615
      %v2617 = vmul.f32 %v2610, 1.442695
      %v2618 = vpow.pop %v2617
      %v2619 = vsel %vm1464, %v2612, 0.0
      %2620 = vadd.xlane.f32.xlu0 %v2619
      %v2621 = vpop.xlane.xlu0 %2620
      %v2622 = vsel %vm1468, %v2614, 0.0
      %2623 = vadd.xlane.f32.xlu0 %v2622
      %v2624 = vpop.xlane.xlu0 %2623
      %v2625 = vsel %vm1464, %v2616, 0.0
      %2626 = vadd.xlane.f32.xlu0 %v2625
      %v2627 = vpop.xlane.xlu0 %2626
      %v2628 = vsel %vm1468, %v2618, 0.0
      %2629 = vadd.xlane.f32.xlu0 %v2628
      %v2630 = vpop.xlane.xlu0 %2629
      %v2631 = vrcp.pop %v2621
      %v2632 = vrcp.pop %v2624
      %v2633 = vrcp.pop %v2627
      %v2634 = vrcp.pop %v2630
      %v2635 = vmul.f32 %v2612, %v2631
      %v2636 = vmul.f32 %v2614, %v2632
      %v2637 = vmul.f32 %v2616, %v2633
      %v2638 = vmul.f32 %v2618, %v2634
      %v2639 = vpack.c.bf16 %v2636, %v2635
      %v2640 = vpack.c.bf16 %v2638, %v2637
      %v2641 = vpack.c.bf16 %v2425, %v2422
      %v2642 = vpack.c.bf16 %v2490, %v2487
      %v2644 = vsel %vm1464, %v2639, 0
      %v2647 = vand.u32 %v2641, %v1520
      %2649 = vmatprep.subr.bf16.mxu0 0
      %2650 = vmatpush1.bf16.msra.mxu0 %v2647
      %2651 = vmatprep.subr.bf16.mxu0 0
      %2652 = vmatpush1.bf16.msra.mxu0 0
      %2653 = vmatprep.subr.bf16.mxu0 0
      %2654 = vmatpush1.bf16.msra.mxu0 0
      %2655 = vmatprep.subr.bf16.mxu0 0
      %2656 = vmatpush1.bf16.msra.mxu0 0
      %2657 = vmatprep.subr.bf16.mxu0 0
      %2658 = vmatpush1.bf16.msra.mxu0 0
      %2659 = vmatprep.subr.bf16.mxu0 0
      %2660 = vmatpush1.bf16.msra.mxu0 0
      %2661 = vmatprep.subr.bf16.mxu0 0
      %2662 = vmatpush1.bf16.msra.mxu0 0
      %2663 = vmatprep.subr.bf16.mxu0 0
      %2664 = vmatpush1.bf16.msra.mxu0 0
      %2665 = vmatprep.subr.bf16.mxu0 0
      %2666 = vmatpush1.bf16.msra.mxu0 0
      %2667 = vmatprep.subr.bf16.mxu0 0
      %2668 = vmatpush1.bf16.msra.mxu0 0
      %2669 = vmatprep.subr.bf16.mxu0 0
      %2670 = vmatpush1.bf16.msra.mxu0 0
      %2671 = vmatprep.subr.bf16.mxu0 0
      %2672 = vmatpush1.bf16.msra.mxu0 0
      %2673 = vmatprep.subr.bf16.mxu0 0
      %2674 = vmatpush1.bf16.msra.mxu0 0
      %2675 = vmatprep.subr.bf16.mxu0 0
      %2676 = vmatpush1.bf16.msra.mxu0 0
      %2677 = vmatprep.subr.bf16.mxu0 0
      %2678 = vmatpush1.bf16.msra.mxu0 0
      %2679 = vmatprep.subr.bf16.mxu0 0
      %2680 = vmatpush1.bf16.msra.mxu0 0
      %2681 = vmatprep.mubr.bf16.mxu0 0
      %2682 = vmatmul.mubr.bf16.gmra.mrb[0].mxu0 %v2644
      %v2683 = vpop.f32.mrb[0].mxu0
      %v2684 = vadd.f32 0.0, %v2683
      %v2685 = vpop.f32.mrb[0].mxu0
      %v2686 = vpop.f32.mrb[0].mxu0
      %v2687 = vadd.f32 0.0, %v2686
      %v2688 = vpop.f32.mrb[0].mxu0
      %2689 = vdwg.mxu0
      %v2691 = vsel %vm1464, %v2640, 0
      %v2694 = vand.u32 %v2642, %v1520
      %2696 = vmatprep.subr.bf16.mxu0 0
      %2697 = vmatpush1.bf16.msra.mxu0 %v2694
      %2698 = vmatprep.subr.bf16.mxu0 0
      %2699 = vmatpush1.bf16.msra.mxu0 0
      %2700 = vmatprep.subr.bf16.mxu0 0
      %2701 = vmatpush1.bf16.msra.mxu0 0
      %2702 = vmatprep.subr.bf16.mxu0 0
      %2703 = vmatpush1.bf16.msra.mxu0 0
      %2704 = vmatprep.subr.bf16.mxu0 0
      %2705 = vmatpush1.bf16.msra.mxu0 0
      %2706 = vmatprep.subr.bf16.mxu0 0
      %2707 = vmatpush1.bf16.msra.mxu0 0
      %2708 = vmatprep.subr.bf16.mxu0 0
      %2709 = vmatpush1.bf16.msra.mxu0 0
      %2710 = vmatprep.subr.bf16.mxu0 0
      %2711 = vmatpush1.bf16.msra.mxu0 0
      %2712 = vmatprep.subr.bf16.mxu0 0
      %2713 = vmatpush1.bf16.msra.mxu0 0
      %2714 = vmatprep.subr.bf16.mxu0 0
      %2715 = vmatpush1.bf16.msra.mxu0 0
      %2716 = vmatprep.subr.bf16.mxu0 0
      %2717 = vmatpush1.bf16.msra.mxu0 0
      %2718 = vmatprep.subr.bf16.mxu0 0
      %2719 = vmatpush1.bf16.msra.mxu0 0
      %2720 = vmatprep.subr.bf16.mxu0 0
      %2721 = vmatpush1.bf16.msra.mxu0 0
      %2722 = vmatprep.subr.bf16.mxu0 0
      %2723 = vmatpush1.bf16.msra.mxu0 0
      %2724 = vmatprep.subr.bf16.mxu0 0
      %2725 = vmatpush1.bf16.msra.mxu0 0
      %2726 = vmatprep.subr.bf16.mxu0 0
      %2727 = vmatpush1.bf16.msra.mxu0 0
      %2728 = vmatprep.mubr.bf16.mxu0 0
      %2729 = vmatmul.mubr.bf16.gmra.mrb[0].mxu0 %v2691
      %v2730 = vpop.f32.mrb[0].mxu0
      %v2731 = vadd.f32 0.0, %v2730
      %v2732 = vpop.f32.mrb[0].mxu0
      %v2733 = vpop.f32.mrb[0].mxu0
      %v2734 = vadd.f32 0.0, %v2733
      %v2735 = vpop.f32.mrb[0].mxu0
      %2736 = vdwg.mxu0
      %v2737 = vpack.c.bf16 %v2687, %v2684
      %v2738 = vpack.c.bf16 %v2734, %v2731
      %s2739 = scalar_lea.vmem %s12, 32
      %v2740 = vld [vmem:[%s2739] sm:$0xf]
      %v2741 = vld [vmem:[%s2739 + $0x4] sm:$0xf]
      %v2742 = vld [vmem:[%s2739 + $0x8] sm:$0xf]
      %v2743 = vld [vmem:[%s2739 + $0xc] sm:$0xf]
      %v2744 = vld [vmem:[%s2739 + $0x10] sm:$0xf]
      %v2745 = vld [vmem:[%s2739 + $0x14] sm:$0xf]
      %v2746 = vld [vmem:[%s2739 + $0x18] sm:$0xf]
      %v2747 = vld [vmem:[%s2739 + $0x1c] sm:$0xf]
      %v2752 = vunpack.c.l.b16 %v2740
      %v2753 = vunpack.c.l.b16 %v2741
      %v2754 = vunpack.c.l.b16 %v2742
      %v2755 = vunpack.c.l.b16 %v2743
      %v2756 = vpack.c.b16 %v2753, %v2752
      %v2757 = vpack.c.b16 %v2755, %v2754
      %v2761 = vsel %vm1365, %v2737, 0
      %2763 = vmatprep.subr.bf16.mxu0 0
      %2764 = vmatpush1.bf16.msra.mxu0 %v2756
      %2765 = vmatprep.subr.bf16.mxu0 0
      %2766 = vmatpush1.bf16.msra.mxu0 %v2757
      %2767 = vmatprep.subr.bf16.mxu0 0
      %2768 = vmatpush1.bf16.msra.mxu0 0
      %2769 = vmatprep.subr.bf16.mxu0 0
      %2770 = vmatpush1.bf16.msra.mxu0 0
      %2771 = vmatprep.subr.bf16.mxu0 0
      %2772 = vmatpush1.bf16.msra.mxu0 0
      %2773 = vmatprep.subr.bf16.mxu0 0
      %2774 = vmatpush1.bf16.msra.mxu0 0
      %2775 = vmatprep.subr.bf16.mxu0 0
      %2776 = vmatpush1.bf16.msra.mxu0 0
      %2777 = vmatprep.subr.bf16.mxu0 0
      %2778 = vmatpush1.bf16.msra.mxu0 0
      %2779 = vmatprep.subr.bf16.mxu0 0
      %2780 = vmatpush1.bf16.msra.mxu0 0
      %2781 = vmatprep.subr.bf16.mxu0 0
      %2782 = vmatpush1.bf16.msra.mxu0 0
      %2783 = vmatprep.subr.bf16.mxu0 0
      %2784 = vmatpush1.bf16.msra.mxu0 0
      %2785 = vmatprep.subr.bf16.mxu0 0
      %2786 = vmatpush1.bf16.msra.mxu0 0
      %2787 = vmatprep.subr.bf16.mxu0 0
      %2788 = vmatpush1.bf16.msra.mxu0 0
      %2789 = vmatprep.subr.bf16.mxu0 0
      %2790 = vmatpush1.bf16.msra.mxu0 0
      %2791 = vmatprep.subr.bf16.mxu0 0
      %2792 = vmatpush1.bf16.msra.mxu0 0
      %2793 = vmatprep.subr.bf16.mxu0 0
      %2794 = vmatpush1.bf16.msra.mxu0 0
      %2795 = vmatprep.mubr.bf16.mxu0 0
      %2796 = vmatmul.mubr.bf16.gmra.mrb[0].mxu0 %v2761
      %v2797 = vpop.f32.mrb[0].mxu0
      %v2798 = vadd.f32 0.0, %v2797
      %v2799 = vpop.f32.mrb[0].mxu0
      %v2800 = vpop.f32.mrb[0].mxu0
      %v2801 = vadd.f32 0.0, %v2800
      %v2802 = vpop.f32.mrb[0].mxu0
      %2803 = vdwg.mxu0
      %v2808 = vunpack.c.l.b16 %v2744
      %v2809 = vunpack.c.l.b16 %v2745
      %v2810 = vunpack.c.l.b16 %v2746
      %v2811 = vunpack.c.l.b16 %v2747
      %v2812 = vpack.c.b16 %v2809, %v2808
      %v2813 = vpack.c.b16 %v2811, %v2810
      %v2817 = vsel %vm1365, %v2738, 0
      %2819 = vmatprep.subr.bf16.mxu0 0
      %2820 = vmatpush1.bf16.msra.mxu0 %v2812
      %2821 = vmatprep.subr.bf16.mxu0 0
      %2822 = vmatpush1.bf16.msra.mxu0 %v2813
      %2823 = vmatprep.subr.bf16.mxu0 0
      %2824 = vmatpush1.bf16.msra.mxu0 0
      %2825 = vmatprep.subr.bf16.mxu0 0
      %2826 = vmatpush1.bf16.msra.mxu0 0
      %2827 = vmatprep.subr.bf16.mxu0 0
      %2828 = vmatpush1.bf16.msra.mxu0 0
      %2829 = vmatprep.subr.bf16.mxu0 0
      %2830 = vmatpush1.bf16.msra.mxu0 0
      %2831 = vmatprep.subr.bf16.mxu0 0
      %2832 = vmatpush1.bf16.msra.mxu0 0
      %2833 = vmatprep.subr.bf16.mxu0 0
      %2834 = vmatpush1.bf16.msra.mxu0 0
      %2835 = vmatprep.subr.bf16.mxu0 0
      %2836 = vmatpush1.bf16.msra.mxu0 0
      %2837 = vmatprep.subr.bf16.mxu0 0
      %2838 = vmatpush1.bf16.msra.mxu0 0
      %2839 = vmatprep.subr.bf16.mxu0 0
      %2840 = vmatpush1.bf16.msra.mxu0 0
      %2841 = vmatprep.subr.bf16.mxu0 0
      %2842 = vmatpush1.bf16.msra.mxu0 0
      %2843 = vmatprep.subr.bf16.mxu0 0
      %2844 = vmatpush1.bf16.msra.mxu0 0
      %2845 = vmatprep.subr.bf16.mxu0 0
      %2846 = vmatpush1.bf16.msra.mxu0 0
      %2847 = vmatprep.subr.bf16.mxu0 0
      %2848 = vmatpush1.bf16.msra.mxu0 0
      %2849 = vmatprep.subr.bf16.mxu0 0
      %2850 = vmatpush1.bf16.msra.mxu0 0
      %2851 = vmatprep.mubr.bf16.mxu0 0
      %2852 = vmatmul.mubr.bf16.gmra.mrb[0].mxu0 %v2817
      %v2853 = vpop.f32.mrb[0].mxu0
      %v2854 = vadd.f32 0.0, %v2853
      %v2855 = vpop.f32.mrb[0].mxu0
      %v2856 = vpop.f32.mrb[0].mxu0
      %v2857 = vadd.f32 0.0, %v2856
      %v2858 = vpop.f32.mrb[0].mxu0
      %2859 = vdwg.mxu0
      %v2860 = vsel %vm835, %v2798, 0.0
      %v2861 = vsel %vm835, %v2854, 0.0
      %v2862 = vadd.f32 %v2860, %v2861
      %v2863 = vsel %vm879, %v2801, 0.0
      %v2864 = vsel %vm879, %v2857, 0.0
      %v2865 = vadd.f32 %v2863, %v2864
      %s2866 = scalar_lea.vmem %s13, 1
      %v2867 = vld [vmem:[%s2866] sm:$0x1]
      %v2869 = vlaneseq
      %v2870 = vshrl.u32 %v2869, 7
      %v2871 = vsub.s32 0, %v2870
      %v2872 = vrot.slane %v2867, %v2871
      %v2874 = vadd.f32 %v2862, %v2872
      %v2875 = vadd.f32 %v2865, %v2872
      %v2876 = vadd.f32 %v2874, %v2002
      %v2877 = vadd.f32 %v2875, %v2003
      %s2878 = scalar_lea.vmem %s14, 1
      %v2879 = vld [vmem:[%s2878] sm:$0x1]
      %s2880 = scalar_lea.vmem %s15, 1
      %v2881 = vld [vmem:[%s2880] sm:$0x1]
      %v2882 = vsel %vm835, %v2876, 0.0
      %2883 = vadd.xlane.f32.xlu0 %v2882
      %v2884 = vpop.xlane.xlu0 %2883
      %v2885 = vsel %vm879, %v2877, 0.0
      %2886 = vadd.xlane.f32.xlu0 %v2885
      %v2887 = vpop.xlane.xlu0 %2886
      %v2888 = vmul.f32 %v2884, %v839
      %v2889 = vmul.f32 %v2887, %v839
      %v2890 = vsub.f32 %v2876, %v2888
      %v2891 = vsub.f32 %v2877, %v2889
      %v2892 = vmul.f32 %v2890, %v2890
      %v2893 = vmul.f32 %v2891, %v2891
      %v2894 = vsel %vm835, %v2892, 0.0
      %2895 = vadd.xlane.f32.xlu0 %v2894
      %v2896 = vpop.xlane.xlu0 %2895
      %v2897 = vsel %vm879, %v2893, 0.0
      %2898 = vadd.xlane.f32.xlu0 %v2897
      %v2899 = vpop.xlane.xlu0 %2898
      %v2900 = vmul.f32 %v2896, %v839
      %v2901 = vmul.f32 %v2899, %v839
      %v2902 = vadd.f32 %v2900, 1e-05
      %v2903 = vadd.f32 %v2901, 1e-05
      %v2904 = vrsqrt.pop %v2902
      %v2905 = vrsqrt.pop %v2903
      %v2906 = vmul.f32 %v2890, %v2904
      %v2907 = vmul.f32 %v2891, %v2905
      %v2909 = vlaneseq
      %v2910 = vshrl.u32 %v2909, 7
      %v2911 = vsub.s32 0, %v2910
      %v2912 = vrot.slane %v2879, %v2911
      %v2914 = vmul.f32 %v2906, %v2912
      %v2915 = vmul.f32 %v2907, %v2912
      %v2917 = vlaneseq
      %v2918 = vshrl.u32 %v2917, 7
      %v2919 = vsub.s32 0, %v2918
      %v2920 = vrot.slane %v2881, %v2919
      %v2922 = vadd.f32 %v2914, %v2920
      %v2923 = vadd.f32 %v2915, %v2920
      %v2924 = vpack.c.bf16 %v2923, %v2922
      %s2925 = scalar_lea.vmem %s16, 32
      %v2926 = vld [vmem:[%s2925] sm:$0xf]
      %v2927 = vld [vmem:[%s2925 + $0x4] sm:$0xf]
      %v2928 = vld [vmem:[%s2925 + $0x8] sm:$0xf]
      %v2929 = vld [vmem:[%s2925 + $0xc] sm:$0xf]
      %v2930 = vld [vmem:[%s2925 + $0x10] sm:$0xf]
      %v2931 = vld [vmem:[%s2925 + $0x14] sm:$0xf]
      %v2932 = vld [vmem:[%s2925 + $0x18] sm:$0xf]
      %v2933 = vld [vmem:[%s2925 + $0x1c] sm:$0xf]
      %s2934 = scalar_lea.vmem %s17, 1
      %v2935 = vld [vmem:[%s2934] sm:$0x1]
      %v2937 = vlaneseq
      %v2938 = vshrl.u32 %v2937, 7
      %v2939 = vsub.s32 0, %v2938
      %v2940 = vrot.slane %v2935, %v2939
      %v2950 = vunpack.c.l.b16 %v2926
      %v2951 = vunpack.c.l.b16 %v2927
      %v2952 = vunpack.c.l.b16 %v2928
      %v2953 = vunpack.c.l.b16 %v2929
      %v2954 = vunpack.c.l.b16 %v2930
      %v2955 = vunpack.c.l.b16 %v2931
      %v2956 = vunpack.c.l.b16 %v2932
      %v2957 = vunpack.c.l.b16 %v2933
      %v2958 = vpack.c.b16 %v2951, %v2950
      %v2959 = vpack.c.b16 %v2953, %v2952
      %v2960 = vpack.c.b16 %v2955, %v2954
      %v2961 = vpack.c.b16 %v2957, %v2956
      %v2967 = vsel %vm835, %v2924, 0
      %2969 = vmatprep.subr.bf16.mxu0 0
      %2970 = vmatpush1.bf16.msra.mxu0 %v2958
      %2971 = vmatprep.subr.bf16.mxu0 0
      %2972 = vmatpush1.bf16.msra.mxu0 %v2959
      %2973 = vmatprep.subr.bf16.mxu0 0
      %2974 = vmatpush1.bf16.msra.mxu0 %v2960
      %2975 = vmatprep.subr.bf16.mxu0 0
      %2976 = vmatpush1.bf16.msra.mxu0 %v2961
      %2977 = vmatprep.subr.bf16.mxu0 0
      %2978 = vmatpush1.bf16.msra.mxu0 0
      %2979 = vmatprep.subr.bf16.mxu0 0
      %2980 = vmatpush1.bf16.msra.mxu0 0
      %2981 = vmatprep.subr.bf16.mxu0 0
      %2982 = vmatpush1.bf16.msra.mxu0 0
      %2983 = vmatprep.subr.bf16.mxu0 0
      %2984 = vmatpush1.bf16.msra.mxu0 0
      %2985 = vmatprep.subr.bf16.mxu0 0
      %2986 = vmatpush1.bf16.msra.mxu0 0
      %2987 = vmatprep.subr.bf16.mxu0 0
      %2988 = vmatpush1.bf16.msra.mxu0 0
      %2989 = vmatprep.subr.bf16.mxu0 0
      %2990 = vmatpush1.bf16.msra.mxu0 0
      %2991 = vmatprep.subr.bf16.mxu0 0
      %2992 = vmatpush1.bf16.msra.mxu0 0
      %2993 = vmatprep.subr.bf16.mxu0 0
      %2994 = vmatpush1.bf16.msra.mxu0 0
      %2995 = vmatprep.subr.bf16.mxu0 0
      %2996 = vmatpush1.bf16.msra.mxu0 0
      %2997 = vmatprep.subr.bf16.mxu0 0
      %2998 = vmatpush1.bf16.msra.mxu0 0
      %2999 = vmatprep.subr.bf16.mxu0 0
      %3000 = vmatpush1.bf16.msra.mxu0 0
      %3001 = vmatprep.mubr.bf16.mxu0 0
      %3002 = vmatmul.mubr.bf16.gmra.mrb[0].mxu0 %v2967
      %v3003 = vpop.f32.mrb[0].mxu0
      %v3004 = vadd.f32 %v2940, %v3003
      %v3005 = vpop.f32.mrb[0].mxu0
      %v3006 = vpop.f32.mrb[0].mxu0
      %v3007 = vadd.f32 %v2940, %v3006
      %v3008 = vpop.f32.mrb[0].mxu0
      %3009 = vdwg.mxu0
      %v3010 = vmul.f32 %v3004, 0.5
      %v3011 = vmul.f32 %v3007, 0.5
      %v3012 = vmul.f32 %v3004, 0.70710677
      %v3013 = vmul.f32 %v3007, 0.70710677
      %v3014 = verf.f32.pop %v3012
      %v3015 = verf.f32.pop %v3013
      %v3016 = vadd.f32 %v3014, 1.0
      %v3017 = vadd.f32 %v3015, 1.0
      %v3018 = vmul.f32 %v3010, %v3016
      %v3019 = vmul.f32 %v3011, %v3017
      %v3020 = vpack.c.bf16 %v3019, %v3018
      %s3021 = scalar_lea.vmem %s18, 64
      %v3022 = vld [vmem:[%s3021] sm:$0xf]
      %v3023 = vld [vmem:[%s3021 + $0x4] sm:$0xf]
      %v3024 = vld [vmem:[%s3021 + $0x8] sm:$0xf]
      %v3025 = vld [vmem:[%s3021 + $0xc] sm:$0xf]
      %v3026 = vld [vmem:[%s3021 + $0x10] sm:$0xf]
      %v3027 = vld [vmem:[%s3021 + $0x14] sm:$0xf]
      %v3028 = vld [vmem:[%s3021 + $0x18] sm:$0xf]
      %v3029 = vld [vmem:[%s3021 + $0x1c] sm:$0xf]
      %v3030 = vld [vmem:[%s3021 + $0x20] sm:$0xf]
      %v3031 = vld [vmem:[%s3021 + $0x24] sm:$0xf]
      %v3032 = vld [vmem:[%s3021 + $0x28] sm:$0xf]
      %v3033 = vld [vmem:[%s3021 + $0x2c] sm:$0xf]
      %v3034 = vld [vmem:[%s3021 + $0x30] sm:$0xf]
      %v3035 = vld [vmem:[%s3021 + $0x34] sm:$0xf]
      %v3036 = vld [vmem:[%s3021 + $0x38] sm:$0xf]
      %v3037 = vld [vmem:[%s3021 + $0x3c] sm:$0xf]
      %s3038 = scalar_lea.vmem %s19, 1
      %v3039 = vld [vmem:[%s3038] sm:$0x1]
      %v3041 = vlaneseq
      %v3042 = vshrl.u32 %v3041, 7
      %v3043 = vsub.s32 0, %v3042
      %v3044 = vrot.slane %v3039, %v3043
      %v3062 = vunpack.c.l.b16 %v3022
      %v3063 = vunpack.c.l.b16 %v3023
      %v3064 = vunpack.c.l.b16 %v3024
      %v3065 = vunpack.c.l.b16 %v3025
      %v3066 = vunpack.c.l.b16 %v3026
      %v3067 = vunpack.c.l.b16 %v3027
      %v3068 = vunpack.c.l.b16 %v3028
      %v3069 = vunpack.c.l.b16 %v3029
      %v3070 = vunpack.c.l.b16 %v3030
      %v3071 = vunpack.c.l.b16 %v3031
      %v3072 = vunpack.c.l.b16 %v3032
      %v3073 = vunpack.c.l.b16 %v3033
      %v3074 = vunpack.c.l.b16 %v3034
      %v3075 = vunpack.c.l.b16 %v3035
      %v3076 = vunpack.c.l.b16 %v3036
      %v3077 = vunpack.c.l.b16 %v3037
      %v3078 = vpack.c.b16 %v3063, %v3062
      %v3079 = vpack.c.b16 %v3065, %v3064
      %v3080 = vpack.c.b16 %v3067, %v3066
      %v3081 = vpack.c.b16 %v3069, %v3068
      %v3082 = vpack.c.b16 %v3071, %v3070
      %v3083 = vpack.c.b16 %v3073, %v3072
      %v3084 = vpack.c.b16 %v3075, %v3074
      %v3085 = vpack.c.b16 %v3077, %v3076
      %3094 = vmatprep.subr.bf16.mxu0 0
      %3095 = vmatpush1.bf16.msra.mxu0 %v3078
      %3096 = vmatprep.subr.bf16.mxu0 0
      %3097 = vmatpush1.bf16.msra.mxu0 %v3079
      %3098 = vmatprep.subr.bf16.mxu0 0
      %3099 = vmatpush1.bf16.msra.mxu0 %v3080
      %3100 = vmatprep.subr.bf16.mxu0 0
      %3101 = vmatpush1.bf16.msra.mxu0 %v3081
      %3102 = vmatprep.subr.bf16.mxu0 0
      %3103 = vmatpush1.bf16.msra.mxu0 %v3082
      %3104 = vmatprep.subr.bf16.mxu0 0
      %3105 = vmatpush1.bf16.msra.mxu0 %v3083
      %3106 = vmatprep.subr.bf16.mxu0 0
      %3107 = vmatpush1.bf16.msra.mxu0 %v3084
      %3108 = vmatprep.subr.bf16.mxu0 0
      %3109 = vmatpush1.bf16.msra.mxu0 %v3085
      %3110 = vmatprep.subr.bf16.mxu0 0
      %3111 = vmatpush1.bf16.msra.mxu0 0
      %3112 = vmatprep.subr.bf16.mxu0 0
      %3113 = vmatpush1.bf16.msra.mxu0 0
      %3114 = vmatprep.subr.bf16.mxu0 0
      %3115 = vmatpush1.bf16.msra.mxu0 0
      %3116 = vmatprep.subr.bf16.mxu0 0
      %3117 = vmatpush1.bf16.msra.mxu0 0
      %3118 = vmatprep.subr.bf16.mxu0 0
      %3119 = vmatpush1.bf16.msra.mxu0 0
      %3120 = vmatprep.subr.bf16.mxu0 0
      %3121 = vmatpush1.bf16.msra.mxu0 0
      %3122 = vmatprep.subr.bf16.mxu0 0
      %3123 = vmatpush1.bf16.msra.mxu0 0
      %3124 = vmatprep.subr.bf16.mxu0 0
      %3125 = vmatpush1.bf16.msra.mxu0 0
      %3126 = vmatprep.mubr.bf16.mxu0 0
      %3127 = vmatmul.mubr.bf16.gmra.mrb[0].mxu0 %v3020
      %v3128 = vpop.f32.mrb[0].mxu0
      %v3129 = vadd.f32 %v3044, %v3128
      %v3130 = vpop.f32.mrb[0].mxu0
      %v3131 = vpop.f32.mrb[0].mxu0
      %v3132 = vpop.f32.mrb[0].mxu0
      %3133 = vdwg.mxu0
      %v3134 = vadd.f32 %v3129, %v2876
      %v3135 = vld [vmem:[%s20] sm:$0x1]
      %v3136 = vld [vmem:[%s21] sm:$0x1]
      %v3137 = vsel %vm879, %v3134, 0.0
      %3138 = vadd.xlane.f32.xlu0 %v3137
      %v3139 = vpop.xlane.xlu0 %3138
      %v3140 = vmul.f32 %v3139, %v839
      %v3141 = vsub.f32 %v3134, %v3140
      %v3142 = vmul.f32 %v3141, %v3141
      %v3143 = vsel %vm879, %v3142, 0.0
      %3144 = vadd.xlane.f32.xlu0 %v3143
      %v3145 = vpop.xlane.xlu0 %3144
      %v3146 = vmul.f32 %v3145, %v839
      %v3147 = vadd.f32 %v3146, 1e-05
      %v3148 = vrsqrt.pop %v3147
      %v3149 = vmul.f32 %v3141, %v3148
      %v3150 = vmul.f32 %v3149, %v3135
      %v3151 = vadd.f32 %v3150, %v3136
      %v3152 = vpack.c.bf16 %v3151, %v3151
      %v3153 = vld [vmem:[%s22] sm:$0xff]
      %v3154 = vld [vmem:[%s22 + $0x8] sm:$0xff]
      %v3155 = vld [vmem:[%s22 + $0x10] sm:$0xff]
      %v3156 = vld [vmem:[%s22 + $0x18] sm:$0xff]
      %v3157 = vld [vmem:[%s22 + $0x20] sm:$0xff]
      %v3158 = vld [vmem:[%s22 + $0x28] sm:$0xff]
      %v3159 = vld [vmem:[%s22 + $0x30] sm:$0xff]
      %v3160 = vld [vmem:[%s22 + $0x38] sm:$0xff]
      %v3161 = vld [vmem:[%s23] sm:$0x3]
      %v3170 = vunpack.c.l.b16 %v3153
      %v3171 = vunpack.c.h.b16 %v3153
      %v3172 = vunpack.c.l.b16 %v3154
      %v3173 = vunpack.c.h.b16 %v3154
      %v3174 = vunpack.c.l.b16 %v3155
      %v3175 = vunpack.c.h.b16 %v3155
      %v3176 = vunpack.c.l.b16 %v3156
      %v3177 = vunpack.c.h.b16 %v3156
      %v3178 = vunpack.c.l.b16 %v3157
      %v3179 = vunpack.c.h.b16 %v3157
      %v3180 = vunpack.c.l.b16 %v3158
      %v3181 = vunpack.c.h.b16 %v3158
      %v3182 = vunpack.c.l.b16 %v3159
      %v3183 = vunpack.c.h.b16 %v3159
      %v3184 = vunpack.c.l.b16 %v3160
      %v3185 = vunpack.c.h.b16 %v3160
      %v3186 = vpack.c.b16 %v3172, %v3170
      %v3187 = vpack.c.b16 %v3173, %v3171
      %v3188 = vpack.c.b16 %v3176, %v3174
      %v3189 = vpack.c.b16 %v3177, %v3175
      %v3190 = vpack.c.b16 %v3180, %v3178
      %v3191 = vpack.c.b16 %v3181, %v3179
      %v3192 = vpack.c.b16 %v3184, %v3182
      %v3193 = vpack.c.b16 %v3185, %v3183
      %v3203 = vlaneseq
      %v3204 = vshrl.u32 %v3203, 7
      %v3205 = vsub.s32 0, %v3204
      %v3206 = vrot.slane %v3161, %v3205
      %v3207 = vlaneseq
      %v3208 = vshrl.u32 %v3207, 7
      %v3209 = vsub.s32 1, %v3208
      %v3210 = vrot.slane %v3161, %v3209
      %v3214 = vsel %vm835, %v3152, 0
      %3216 = vmatprep.subr.bf16.mxu0 %v3187
      %3217 = vmatpush1.bf16.msra.mxu0 %v3186
      %3218 = vmatprep.subr.bf16.mxu0 %v3189
      %3219 = vmatpush1.bf16.msra.mxu0 %v3188
      %3220 = vmatprep.subr.bf16.mxu0 %v3191
      %3221 = vmatpush1.bf16.msra.mxu0 %v3190
      %3222 = vmatprep.subr.bf16.mxu0 %v3193
      %3223 = vmatpush1.bf16.msra.mxu0 %v3192
      %3224 = vmatprep.subr.bf16.mxu0 0
      %3225 = vmatpush1.bf16.msra.mxu0 0
      %3226 = vmatprep.subr.bf16.mxu0 0
      %3227 = vmatpush1.bf16.msra.mxu0 0
      %3228 = vmatprep.subr.bf16.mxu0 0
      %3229 = vmatpush1.bf16.msra.mxu0 0
      %3230 = vmatprep.subr.bf16.mxu0 0
      %3231 = vmatpush1.bf16.msra.mxu0 0
      %3232 = vmatprep.subr.bf16.mxu0 0
      %3233 = vmatpush1.bf16.msra.mxu0 0
      %3234 = vmatprep.subr.bf16.mxu0 0
      %3235 = vmatpush1.bf16.msra.mxu0 0
      %3236 = vmatprep.subr.bf16.mxu0 0
      %3237 = vmatpush1.bf16.msra.mxu0 0
      %3238 = vmatprep.subr.bf16.mxu0 0
      %3239 = vmatpush1.bf16.msra.mxu0 0
      %3240 = vmatprep.subr.bf16.mxu0 0
      %3241 = vmatpush1.bf16.msra.mxu0 0
      %3242 = vmatprep.subr.bf16.mxu0 0
      %3243 = vmatpush1.bf16.msra.mxu0 0
      %3244 = vmatprep.subr.bf16.mxu0 0
      %3245 = vmatpush1.bf16.msra.mxu0 0
      %3246 = vmatprep.subr.bf16.mxu0 0
      %3247 = vmatpush1.bf16.msra.mxu0 0
      %3248 = vmatprep.mubr.bf16.mxu0 0
      %3249 = vmatmul.mubr.bf16.gmra.mrb[0].mxu0 %v3214
      %v3250 = vpop.f32.mrb[0].mxu0
      %v3251 = vadd.f32 %v3206, %v3250
      %v3252 = vpop.f32.mrb[0].mxu0
      %v3253 = vadd.f32 %v3210, %v3252
      %v3254 = vpop.f32.mrb[0].mxu0
      %v3255 = vpop.f32.mrb[0].mxu0
      %3256 = vdwg.mxu0
      %v3259 = vcombine.low %v3251, %v3253
      %v3261 = vunpack.c.l.s4 1966171168
      %v3262 = vunpack.c.0.s8 %v3261
      %v3263 = vlaneseq
      %v3264 = vshrl.u32 %v3263, 7
      %v3265 = vsub.s32 %v3262, %v3264
      %v3266 = vrot.slane %v3259, %v3265
      %v3268 = vunpack.c.l.s4 1966171168
      %v3269 = vunpack.c.0.s8 %v3268
      %v3270 = vlaneseq
      %v3271 = vshrl.u32 %v3270, 7
      %v3272 = vsub.s32 %v3269, %v3271
      %v3273 = vrot.slane %v3266, %v3272
      %v3275 = vlaneseq
      %vm3276 = vcmp.ge.s32.totalorder %v3275, 0
      %vm3277 = vcmp.lt.s32.totalorder %v3275, 256
      %vm3278 = vmand %vm3276, %vm3277
      %3279 = vst.msk [vmem:[%s732] sm:$0x3] %vm3278, %v3273
      %p3280 = scmp.lt.s32.totalorder %s35, 1
      %s3281 = scalar_select %p3280, %s35, 1
      %s3282 = smul.addr %s3281, 2
      %s3283 = scalar_lea.vmem %s24, %s3282
      // Predicated region
      $region117: #{vit1d_forward.1} parent=115 // pred_check
        %p3284 = pneg %p562
      $region118: #{vit1d_forward.1} parent=115 // pred_check_branch
        %3286 = sbr.rel (%p3284) target = $region120
      $region119: #{vit1d_forward.1} parent=115 // pred_region
        _
      $region120: #{vit1d_forward.1} parent=115 // pred_fallthru
        _
    $region116: #{vit1d_forward.1} parent=5 // pred_fallthru
      _
    %p3287 = scmp.le.s32.totalorder 2, %s30
    // Predicated region
    $region121: #{vit1d_forward.1} parent=5 // pred_check
      %p3288 = pneg %p3287
    $region122: #{vit1d_forward.1} parent=5 // pred_check_branch
      %3290 = sbr.rel (%p3288) target = $region124
    $region123: #{vit1d_forward.1} parent=5 // pred_region
      %s3291 = ssub.s32 %s30, 2
      // Predicated region
      $region125: #{vit1d_forward.1} parent=123 // pred_check
        %p3292 = pneg %p568
      $region126: #{vit1d_forward.1} parent=123 // pred_check_branch
        %3294 = sbr.rel (%p3292) target = $region128
      $region127: #{vit1d_forward.1} parent=123 // pred_region
        %p3295 = scmp.lt.s32.totalorder %s36, 1
        %s3296 = scalar_select %p3295, %s36, 1
        %s3297 = smul.addr %s3296, 2
        %s3298 = scalar_lea.vmem %s24, %s3297
      $region128: #{vit1d_forward.1} parent=123 // pred_fallthru
        _
    $region124: #{vit1d_forward.1} parent=5 // pred_fallthru
      _
  $region6: #{vit1d_forward.1} parent=0 // loop_footer
    %s34 = sadd.s32 1, %s30
  $region7: #{vit1d_forward.1} parent=0 // loop_footer_branch
    %29 = sbr.rel target = $region3
  $region8: #{vit1d_forward.1} parent=0 // loop_exit
    _

</llo_original>
